<compile_context>
chip_gen: v5e
topology: v5e:2x2
jax: 0.10.0
libtpu: 0.0.40
codegen_flags: <defaults>
</compile_context>

<pallas_src>
import numpy as np
import jax
import jax.numpy as jnp
from jax.experimental import pallas as pl
from jax.experimental.pallas import tpu as pltpu

# --- Fixed supernet choices (NNI LayerChoice / InputChoice) ------------------
CONV1_KERNEL = 3   # LayerChoice 'conv1' -> 'conv3x3->16'
CONV2_KERNEL = 3   # LayerChoice 'conv2' -> 'conv3x3->32'
DM_CHOICE = 0      # InputChoice 'dm' (n_chosen=1) -> x1 (fc11 -> fc12 branch)
# TODO(synk): NNI supernet "mixed" (weighted-sum-over-candidates) semantics of
# LayerChoice/InputChoice are not modeled; a single fixed candidate is used.


def _vmem():
    return pl.BlockSpec(memory_space=pltpu.MemorySpace.VMEM)


# ------------------------------ fused kernel ---------------------------------
def _fused_lenet_kernel(r_ref, wb1_ref, b1_ref, w2b_ref, b2_ref,
                        w11_ref, b11_ref, w12_ref, b12_ref,
                        out_ref, m_scr, halo_o, halo_e):
    f32, bf16 = jnp.float32, jnp.bfloat16
    rows = m_scr.shape[0]            # 8 * N   (rows ordered (h, n): batch fastest)
    n = rows // 8

    # ---- conv1 (+bias+ReLU) fused with 2x2 max-pool --------------------------
    # r_ref[s]   : (8N, 128) bf16 = 3 padded input rows feeding conv1 row 4j+s
    # wb1_ref[px]: (128, 256) bf16 = conv1 taps scattered over (w1, c1) lanes
    def conv1_pool(s0, s1):
        c = None
        for s in (s0, s1):
            rp = r_ref[s]
            for px in range(2):
                v = jnp.dot(rp, wb1_ref[px], preferred_element_type=f32)
                c = v if c is None else jnp.maximum(c, v)
        return jnp.maximum(c + b1_ref[...], 0.0)     # (8N,256) lanes (w1*16+c1)

    p1_even = conv1_pool(0, 1)       # pool1 rows h1 = 2j
    p1_odd = conv1_pool(2, 3)        # pool1 rows h1 = 2j+1

    # ---- conv2 dh taps: +-1 pooled-row shifts via zero-padded halo scratches --
    # (exact by construction; replaces the old O(N^2) `place` routing matmuls)
    halo_o[pl.ds(0, n), :] = jnp.zeros((n, 256), f32)
    halo_o[pl.ds(n, rows), :] = p1_odd
    halo_e[pl.ds(0, rows), :] = p1_even
    halo_e[pl.ds(rows, n), :] = jnp.zeros((n, 256), f32)

    pe = p1_even.astype(bf16)                        # p1[2j]
    po = p1_odd.astype(bf16)                         # p1[2j+1]
    po_up = halo_o[pl.ds(0, rows), :].astype(bf16)   # p1[2j-1] (zero at j==0)
    pe_dn = halo_e[pl.ds(n, rows), :].astype(bf16)   # p1[2j+2] (zero at j==7)

    # ---- conv2 (+bias+ReLU) fused with 2x2 max-pool ---------------------------
    # w2b_ref[2*dh+px]: (256,256) bf16 taps (dw,cin) scattered over (w3,c2) lanes
    def conv2_pooled_w(t0, t1, t2):                  # taps for dh = 0, 1, 2
        a0 = jnp.dot(t0, w2b_ref[0], preferred_element_type=f32)
        a1 = jnp.dot(t0, w2b_ref[1], preferred_element_type=f32)
        a0 = a0 + jnp.dot(t1, w2b_ref[2], preferred_element_type=f32)
        a1 = a1 + jnp.dot(t1, w2b_ref[3], preferred_element_type=f32)
        a0 = a0 + jnp.dot(t2, w2b_ref[4], preferred_element_type=f32)
        a1 = a1 + jnp.dot(t2, w2b_ref[5], preferred_element_type=f32)
        a0 = jnp.maximum(a0 + b2_ref[...], 0.0)
        a1 = jnp.maximum(a1 + b2_ref[...], 0.0)
        return jnp.maximum(a0, a1)                   # max-pool over px2

    m_even = conv2_pooled_w(po_up, pe, po)           # conv2 rows h2 = 2*h3
    m_odd = conv2_pooled_w(pe, po, pe_dn)            # conv2 rows h2 = 2*h3+1
    m_scr[...] = jnp.maximum(m_even, m_odd)          # pool2: rows (h3,n), lanes (w3*32+c2)

    # ---- head: fc11 (NCHW flatten folded into weights, single long-K dot) -----
    xcat = jnp.concatenate(
        [m_scr[pl.ds(h3 * n, n), :] for h3 in range(8)], axis=1).astype(bf16)  # (N,2048)
    hfc = jnp.dot(xcat, w11_ref[...], preferred_element_type=f32)
    hfc = jnp.maximum(hfc + b11_ref[...], 0.0)
    z = jnp.dot(hfc.astype(bf16), w12_ref[...], preferred_element_type=f32)
    z = jnp.maximum(z + b12_ref[...], 0.0)

    # log_softmax along dim=1
    zc = z - jnp.max(z, axis=1, keepdims=True)
    out_ref[...] = zc - jnp.log(jnp.sum(jnp.exp(zc), axis=1, keepdims=True))


# ------------------------ one-time weight repacking ----------------------------
def prepare_params(p):
    """Repack PyTorch-layout weights into bf16 kernel layouts (done once)."""
    assert DM_CHOICE == 0  # TODO(synk): fc2 head (InputChoice candidate 1) not lowered.
    bf16 = jnp.bfloat16

    # conv1: scatter 3x3 taps over (w1, c1) output lanes, one (128,256) matrix per px.
    t1 = np.zeros((2, 3, 34, 16), np.float32)        # [px, kw, padded_col, w1]
    for px in range(2):
        for kw in range(3):
            for w1 in range(16):
                t1[px, kw, 2 * w1 + px + kw, w1] = 1.0
    w1s = np.asarray(p["w_conv1"])[:, :, 0, :]       # (kh, kw, cout) = (3,3,16)
    wb1 = np.einsum("ptvw,hto->phvwo", t1, w1s).reshape(2, 102, 256)
    wb1 = np.pad(wb1, ((0, 0), (0, 26), (0, 0)))     # K: 102 -> 128

    # conv2: scatter (dw, cin) taps over (w3, c2) lanes, per (dh, px2).
    t2 = np.zeros((2, 3, 16, 8), np.float32)         # [px, dw, w_in, w3]
    for px in range(2):
        for dw in range(3):
            for w3 in range(8):
                w_in = 2 * w3 + px + dw - 1
                if 0 <= w_in <= 15:
                    t2[px, dw, w_in, w3] = 1.0
    w2b = np.einsum("pdiw,hdco->hpicwo",
                    t2, np.asarray(p["w_conv2"])).reshape(6, 256, 256)

    # fc11: fold NCHW flatten (c2,h3,w3) into kernel order (h3, w3*32+c2).
    w11 = np.asarray(p["w_fc11"]).reshape(32, 8, 8, 256)       # (c2, h3, w3, out)
    w11cat = np.transpose(w11, (1, 2, 0, 3)).reshape(2048, 256)

    return {
        "wb1": jnp.asarray(wb1, bf16),
        "b1lane": jnp.asarray(np.tile(np.asarray(p["b_conv1"]), 16).reshape(1, 256),
                              jnp.float32),
        "w2b": jnp.asarray(w2b, bf16),
        "b2lane": jnp.asarray(np.tile(np.asarray(p["b_conv2"]), 8).reshape(1, 256),
                              jnp.float32),
        "w11cat": jnp.asarray(w11cat, bf16),
        "b11": jnp.asarray(np.asarray(p["b_fc11"]).reshape(1, 256), jnp.float32),
        "w12": jnp.asarray(np.asarray(p["w_fc12"]), bf16),
        "b12": jnp.asarray(np.asarray(p["b_fc12"]).reshape(1, 10), jnp.float32),
    }


# ------------------------------ forward wrapper --------------------------------
def lenet_supernet_forward(x_nchw, kp):
    n, cin, h, w = x_nchw.shape
    assert (cin, h, w) == (1, 32, 32)
    rows = 8 * n

    # conv1 operand: for s in 0..3, the 3 padded input rows feeding conv1 output
    # row h1' = 4*j + s, flattened to 102 features, padded to 128 lanes, laid out
    # batch-fastest (row = j*N + n).  Tiny XLA glue on the raw input only.
    xpad = jnp.pad(x_nchw.reshape(n, 32, 32), ((0, 0), (1, 1), (1, 1)))      # (n,34,34)
    rows3 = jnp.stack([xpad[:, t:t + 32, :] for t in range(3)], axis=2)      # (n,32,3,34)
    rows3 = rows3.reshape(n, 32, 102)
    r = jnp.stack([jnp.transpose(rows3[:, s::4, :], (1, 0, 2)).reshape(rows, 102)
                   for s in range(4)], axis=0)
    r = jnp.pad(r, ((0, 0), (0, 0), (0, 26))).astype(jnp.bfloat16)           # (4,8N,128)

    mm = lambda a, b, c: 2 * a * b * c
    cost = pl.CostEstimate(
        flops=(8 * mm(rows, 128, 256) + 12 * mm(rows, 256, 256)
               + mm(n, 2048, 256) + mm(n, 256, 10)),
        transcendentals=11 * n,
        bytes_accessed=(2 * (4 * rows * 128 + 2 * 128 * 256 + 6 * 256 * 256
                             + 2048 * 256 + 256 * 10)
                        + 4 * (3 * 256 + 10 + n * 10)),
    )

    return pl.pallas_call(
        _fused_lenet_kernel,
        out_shape=jax.ShapeDtypeStruct((n, 10), jnp.float32),
        in_specs=[_vmem()] * 9,
        out_specs=_vmem(),
        scratch_shapes=[pltpu.VMEM((rows, 256), jnp.float32),       # pooled conv2
                        pltpu.VMEM((rows + n, 256), jnp.float32),   # halo (odd rows)
                        pltpu.VMEM((rows + n, 256), jnp.float32)],  # halo (even rows)
        cost_estimate=cost,
    )(r, kp["wb1"], kp["b1lane"], kp["w2b"], kp["b2lane"],
      kp["w11cat"], kp["b11"], kp["w12"], kp["b12"])


# ------------------------------ params / reference -----------------------------
def init_params(key, input_ts=32):
    ks = jax.random.split(key, 10)

    def u(k, shape, fan_in):
        bound = 1.0 / np.sqrt(fan_in)
        return jax.random.uniform(k, shape, jnp.float32, -bound, bound)

    flat_dim = input_ts * 8 * 8
    return {
        # conv weights stored HWIO (kh, kw, Cin, Cout)
        "w_conv1": u(ks[0], (CONV1_KERNEL, CONV1_KERNEL, 1, 16), 1 * CONV1_KERNEL ** 2),
        "b_conv1": u(ks[1], (16,), 1 * CONV1_KERNEL ** 2),
        "w_conv2": u(ks[2], (CONV2_KERNEL, CONV2_KERNEL, 16, 32), 16 * CONV2_KERNEL ** 2),
        "b_conv2": u(ks[3], (32,), 16 * CONV2_KERNEL ** 2),
        "w_fc11": u(ks[4], (flat_dim, 256), flat_dim),
        "b_fc11": u(ks[5], (256,), flat_dim),
        "w_fc12": u(ks[6], (256, 10), 256),
        "b_fc12": u(ks[7], (10,), 256),
        "w_fc2": u(ks[8], (flat_dim, 10), flat_dim),
        "b_fc2": u(ks[9], (10,), flat_dim),
    }


def reference_forward(x_nchw, p):
    x = jnp.transpose(x_nchw, (0, 2, 3, 1))
    dn = ("NHWC", "HWIO", "NHWC")
    y = jax.lax.conv_general_dilated(x, p["w_conv1"], (1, 1), "SAME", dimension_numbers=dn)
    y = jax.nn.relu(y + p["b_conv1"])
    y = jax.lax.reduce_window(y, -jnp.inf, jax.lax.max, (1, 2, 2, 1), (1, 2, 2, 1), "VALID")
    y = jax.lax.conv_general_dilated(y, p["w_conv2"], (1, 1), "SAME", dimension_numbers=dn)
    y = jax.nn.relu(y + p["b_conv2"])
    y = jax.lax.reduce_window(y, -jnp.inf, jax.lax.max, (1, 2, 2, 1), (1, 2, 2, 1), "VALID")
    flat = jnp.transpose(y, (0, 3, 1, 2)).reshape(y.shape[0], -1)   # NCHW flatten
    x1 = jax.nn.relu(flat @ p["w_fc11"] + p["b_fc11"])
    x1 = jax.nn.relu(x1 @ p["w_fc12"] + p["b_fc12"])
    x2 = jax.nn.relu(flat @ p["w_fc2"] + p["b_fc2"])
    sel = x1 if DM_CHOICE == 0 else x2
    return jax.nn.log_softmax(sel, axis=1)


if __name__ == "__main__":
    key = jax.random.PRNGKey(0)
    kx, kparam = jax.random.split(key)
    # MNIST-like input implied by the module: 1 channel, 32x32 spatial (so that
    # fc11's input is input_ts*8*8 = 2048), small batch of 2.
    x = jax.random.normal(kx, (2, 1, 32, 32), jnp.float32)
    params = init_params(kparam, input_ts=32)
    kparams = prepare_params(params)          # one-time weight repack (bf16)

    fwd = jax.jit(lenet_supernet_forward)
    out = jax.block_until_ready(fwd(x, kparams))

    ref = reference_forward(x, params)
    np.testing.assert_allclose(np.asarray(out), np.asarray(ref), rtol=5e-2, atol=5e-2)
    print("KERNEL_OK")
</pallas_src>

<mosaic_0001>
module attributes {stable_mosaic.version = 11 : i64} {
  func.func @_fused_lenet_kernel(%arg0: memref<4x16x128xbf16, #tpu.memory_space<vmem>>, %arg1: memref<2x128x256xbf16, #tpu.memory_space<vmem>>, %arg2: memref<1x256xf32, #tpu.memory_space<vmem>>, %arg3: memref<6x256x256xbf16, #tpu.memory_space<vmem>>, %arg4: memref<1x256xf32, #tpu.memory_space<vmem>>, %arg5: memref<2048x256xbf16, #tpu.memory_space<vmem>>, %arg6: memref<1x256xf32, #tpu.memory_space<vmem>>, %arg7: memref<256x10xbf16, #tpu.memory_space<vmem>>, %arg8: memref<1x10xf32, #tpu.memory_space<vmem>>, %arg9: memref<2x10xf32, #tpu.memory_space<vmem>>, %arg10: memref<16x256xf32, #tpu.memory_space<vmem>>, %arg11: memref<18x256xf32, #tpu.memory_space<vmem>>, %arg12: memref<18x256xf32, #tpu.memory_space<vmem>>) attributes {dimension_semantics = [], scalar_prefetch = 0 : i64, scratch_operands = 3 : i64, tpu.core_type = #tpu.core_type<tc>} {
    %c0 = arith.constant 0 : index
    %c0_0 = arith.constant 0 : index
    %c0_1 = arith.constant 0 : index
    %0 = vector.load %arg0[%c0, %c0_0, %c0_1] : memref<4x16x128xbf16, #tpu.memory_space<vmem>>, vector<1x16x128xbf16>
    %1 = vector.shape_cast %0 : vector<1x16x128xbf16> to vector<16x128xbf16>
    %c0_2 = arith.constant 0 : index
    %c0_3 = arith.constant 0 : index
    %c0_4 = arith.constant 0 : index
    %2 = vector.load %arg1[%c0_2, %c0_3, %c0_4] : memref<2x128x256xbf16, #tpu.memory_space<vmem>>, vector<1x128x256xbf16>
    %3 = vector.shape_cast %2 : vector<1x128x256xbf16> to vector<128x256xbf16>
    %cst = arith.constant dense<0.000000e+00> : vector<16x256xf32>
    %4 = tpu.matmul %1, %3, %cst {dimension_numbers = #tpu.dot_dimension_numbers<[1], [0], [0], [1], [0, 0, 1, 1], [], []>} : vector<16x128xbf16>, vector<128x256xbf16>, vector<16x256xf32> -> vector<16x256xf32>
    %c1 = arith.constant 1 : index
    %c0_5 = arith.constant 0 : index
    %c0_6 = arith.constant 0 : index
    %5 = vector.load %arg1[%c1, %c0_5, %c0_6] : memref<2x128x256xbf16, #tpu.memory_space<vmem>>, vector<1x128x256xbf16>
    %6 = vector.shape_cast %5 : vector<1x128x256xbf16> to vector<128x256xbf16>
    %cst_7 = arith.constant dense<0.000000e+00> : vector<16x256xf32>
    %7 = tpu.matmul %1, %6, %cst_7 {dimension_numbers = #tpu.dot_dimension_numbers<[1], [0], [0], [1], [0, 0, 1, 1], [], []>} : vector<16x128xbf16>, vector<128x256xbf16>, vector<16x256xf32> -> vector<16x256xf32>
    %8 = arith.maximumf %4, %7 : vector<16x256xf32>
    %c1_8 = arith.constant 1 : index
    %c0_9 = arith.constant 0 : index
    %c0_10 = arith.constant 0 : index
    %9 = vector.load %arg0[%c1_8, %c0_9, %c0_10] : memref<4x16x128xbf16, #tpu.memory_space<vmem>>, vector<1x16x128xbf16>
    %10 = vector.shape_cast %9 : vector<1x16x128xbf16> to vector<16x128xbf16>
    %c0_11 = arith.constant 0 : index
    %c0_12 = arith.constant 0 : index
    %c0_13 = arith.constant 0 : index
    %11 = vector.load %arg1[%c0_11, %c0_12, %c0_13] : memref<2x128x256xbf16, #tpu.memory_space<vmem>>, vector<1x128x256xbf16>
    %12 = vector.shape_cast %11 : vector<1x128x256xbf16> to vector<128x256xbf16>
    %cst_14 = arith.constant dense<0.000000e+00> : vector<16x256xf32>
    %13 = tpu.matmul %10, %12, %cst_14 {dimension_numbers = #tpu.dot_dimension_numbers<[1], [0], [0], [1], [0, 0, 1, 1], [], []>} : vector<16x128xbf16>, vector<128x256xbf16>, vector<16x256xf32> -> vector<16x256xf32>
    %14 = arith.maximumf %8, %13 : vector<16x256xf32>
    %c1_15 = arith.constant 1 : index
    %c0_16 = arith.constant 0 : index
    %c0_17 = arith.constant 0 : index
    %15 = vector.load %arg1[%c1_15, %c0_16, %c0_17] : memref<2x128x256xbf16, #tpu.memory_space<vmem>>, vector<1x128x256xbf16>
    %16 = vector.shape_cast %15 : vector<1x128x256xbf16> to vector<128x256xbf16>
    %cst_18 = arith.constant dense<0.000000e+00> : vector<16x256xf32>
    %17 = tpu.matmul %10, %16, %cst_18 {dimension_numbers = #tpu.dot_dimension_numbers<[1], [0], [0], [1], [0, 0, 1, 1], [], []>} : vector<16x128xbf16>, vector<128x256xbf16>, vector<16x256xf32> -> vector<16x256xf32>
    %18 = arith.maximumf %14, %17 : vector<16x256xf32>
    %c0_19 = arith.constant 0 : index
    %c0_20 = arith.constant 0 : index
    %19 = vector.load %arg2[%c0_19, %c0_20] : memref<1x256xf32, #tpu.memory_space<vmem>>, vector<1x256xf32>
    %20 = vector.broadcast %19 : vector<1x256xf32> to vector<16x256xf32>
    %21 = arith.addf %18, %20 : vector<16x256xf32>
    %cst_21 = arith.constant 0.000000e+00 : f32
    %22 = vector.broadcast %cst_21 : f32 to vector<16x256xf32>
    %23 = arith.maximumf %21, %22 : vector<16x256xf32>
    %c2 = arith.constant 2 : index
    %c0_22 = arith.constant 0 : index
    %c0_23 = arith.constant 0 : index
    %24 = vector.load %arg0[%c2, %c0_22, %c0_23] : memref<4x16x128xbf16, #tpu.memory_space<vmem>>, vector<1x16x128xbf16>
    %25 = vector.shape_cast %24 : vector<1x16x128xbf16> to vector<16x128xbf16>
    %c0_24 = arith.constant 0 : index
    %c0_25 = arith.constant 0 : index
    %c0_26 = arith.constant 0 : index
    %26 = vector.load %arg1[%c0_24, %c0_25, %c0_26] : memref<2x128x256xbf16, #tpu.memory_space<vmem>>, vector<1x128x256xbf16>
    %27 = vector.shape_cast %26 : vector<1x128x256xbf16> to vector<128x256xbf16>
    %cst_27 = arith.constant dense<0.000000e+00> : vector<16x256xf32>
    %28 = tpu.matmul %25, %27, %cst_27 {dimension_numbers = #tpu.dot_dimension_numbers<[1], [0], [0], [1], [0, 0, 1, 1], [], []>} : vector<16x128xbf16>, vector<128x256xbf16>, vector<16x256xf32> -> vector<16x256xf32>
    %c1_28 = arith.constant 1 : index
    %c0_29 = arith.constant 0 : index
    %c0_30 = arith.constant 0 : index
    %29 = vector.load %arg1[%c1_28, %c0_29, %c0_30] : memref<2x128x256xbf16, #tpu.memory_space<vmem>>, vector<1x128x256xbf16>
    %30 = vector.shape_cast %29 : vector<1x128x256xbf16> to vector<128x256xbf16>
    %cst_31 = arith.constant dense<0.000000e+00> : vector<16x256xf32>
    %31 = tpu.matmul %25, %30, %cst_31 {dimension_numbers = #tpu.dot_dimension_numbers<[1], [0], [0], [1], [0, 0, 1, 1], [], []>} : vector<16x128xbf16>, vector<128x256xbf16>, vector<16x256xf32> -> vector<16x256xf32>
    %32 = arith.maximumf %28, %31 : vector<16x256xf32>
    %c3 = arith.constant 3 : index
    %c0_32 = arith.constant 0 : index
    %c0_33 = arith.constant 0 : index
    %33 = vector.load %arg0[%c3, %c0_32, %c0_33] : memref<4x16x128xbf16, #tpu.memory_space<vmem>>, vector<1x16x128xbf16>
    %34 = vector.shape_cast %33 : vector<1x16x128xbf16> to vector<16x128xbf16>
    %c0_34 = arith.constant 0 : index
    %c0_35 = arith.constant 0 : index
    %c0_36 = arith.constant 0 : index
    %35 = vector.load %arg1[%c0_34, %c0_35, %c0_36] : memref<2x128x256xbf16, #tpu.memory_space<vmem>>, vector<1x128x256xbf16>
    %36 = vector.shape_cast %35 : vector<1x128x256xbf16> to vector<128x256xbf16>
    %cst_37 = arith.constant dense<0.000000e+00> : vector<16x256xf32>
    %37 = tpu.matmul %34, %36, %cst_37 {dimension_numbers = #tpu.dot_dimension_numbers<[1], [0], [0], [1], [0, 0, 1, 1], [], []>} : vector<16x128xbf16>, vector<128x256xbf16>, vector<16x256xf32> -> vector<16x256xf32>
    %38 = arith.maximumf %32, %37 : vector<16x256xf32>
    %c1_38 = arith.constant 1 : index
    %c0_39 = arith.constant 0 : index
    %c0_40 = arith.constant 0 : index
    %39 = vector.load %arg1[%c1_38, %c0_39, %c0_40] : memref<2x128x256xbf16, #tpu.memory_space<vmem>>, vector<1x128x256xbf16>
    %40 = vector.shape_cast %39 : vector<1x128x256xbf16> to vector<128x256xbf16>
    %cst_41 = arith.constant dense<0.000000e+00> : vector<16x256xf32>
    %41 = tpu.matmul %34, %40, %cst_41 {dimension_numbers = #tpu.dot_dimension_numbers<[1], [0], [0], [1], [0, 0, 1, 1], [], []>} : vector<16x128xbf16>, vector<128x256xbf16>, vector<16x256xf32> -> vector<16x256xf32>
    %42 = arith.maximumf %38, %41 : vector<16x256xf32>
    %c0_42 = arith.constant 0 : index
    %c0_43 = arith.constant 0 : index
    %43 = vector.load %arg2[%c0_42, %c0_43] : memref<1x256xf32, #tpu.memory_space<vmem>>, vector<1x256xf32>
    %44 = vector.broadcast %43 : vector<1x256xf32> to vector<16x256xf32>
    %45 = arith.addf %42, %44 : vector<16x256xf32>
    %cst_44 = arith.constant 0.000000e+00 : f32
    %46 = vector.broadcast %cst_44 : f32 to vector<16x256xf32>
    %47 = arith.maximumf %45, %46 : vector<16x256xf32>
    %cst_45 = arith.constant 0.000000e+00 : f32
    %48 = vector.broadcast %cst_45 : f32 to vector<2x256xf32>
    %c0_46 = arith.constant 0 : index
    %c0_47 = arith.constant 0 : index
    %49 = vector.load %arg11[%c0_46, %c0_47] : memref<18x256xf32, #tpu.memory_space<vmem>>, vector<2x256xf32>
    tpu.vector_store %arg11[%c0_46, %c0_47], %48 {strides = array<i32>} : memref<18x256xf32, #tpu.memory_space<vmem>>, vector<2x256xf32>,
    %c2_48 = arith.constant 2 : index
    %c0_49 = arith.constant 0 : index
    %50 = vector.load %arg11[%c2_48, %c0_49] : memref<18x256xf32, #tpu.memory_space<vmem>>, vector<16x256xf32>
    tpu.vector_store %arg11[%c2_48, %c0_49], %47 {strides = array<i32>} : memref<18x256xf32, #tpu.memory_space<vmem>>, vector<16x256xf32>,
    %c0_50 = arith.constant 0 : index
    %c0_51 = arith.constant 0 : index
    %51 = vector.load %arg12[%c0_50, %c0_51] : memref<18x256xf32, #tpu.memory_space<vmem>>, vector<16x256xf32>
    tpu.vector_store %arg12[%c0_50, %c0_51], %23 {strides = array<i32>} : memref<18x256xf32, #tpu.memory_space<vmem>>, vector<16x256xf32>,
    %cst_52 = arith.constant 0.000000e+00 : f32
    %52 = vector.broadcast %cst_52 : f32 to vector<2x256xf32>
    %c16 = arith.constant 16 : index
    %c0_53 = arith.constant 0 : index
    %53 = vector.load %arg12[%c16, %c0_53] : memref<18x256xf32, #tpu.memory_space<vmem>>, vector<2x256xf32>
    tpu.vector_store %arg12[%c16, %c0_53], %52 {strides = array<i32>} : memref<18x256xf32, #tpu.memory_space<vmem>>, vector<2x256xf32>,
    %54 = arith.truncf %23 : vector<16x256xf32> to vector<16x256xbf16>
    %55 = arith.truncf %47 : vector<16x256xf32> to vector<16x256xbf16>
    %c0_54 = arith.constant 0 : index
    %c0_55 = arith.constant 0 : index
    %56 = vector.load %arg11[%c0_54, %c0_55] : memref<18x256xf32, #tpu.memory_space<vmem>>, vector<16x256xf32>
    %57 = arith.truncf %56 : vector<16x256xf32> to vector<16x256xbf16>
    %c2_56 = arith.constant 2 : index
    %c0_57 = arith.constant 0 : index
    %58 = vector.load %arg12[%c2_56, %c0_57] : memref<18x256xf32, #tpu.memory_space<vmem>>, vector<16x256xf32>
    %59 = arith.truncf %58 : vector<16x256xf32> to vector<16x256xbf16>
    %c0_58 = arith.constant 0 : index
    %c0_59 = arith.constant 0 : index
    %c0_60 = arith.constant 0 : index
    %60 = vector.load %arg3[%c0_58, %c0_59, %c0_60] : memref<6x256x256xbf16, #tpu.memory_space<vmem>>, vector<1x256x256xbf16>
    %61 = vector.shape_cast %60 : vector<1x256x256xbf16> to vector<256x256xbf16>
    %cst_61 = arith.constant dense<0.000000e+00> : vector<16x256xf32>
    %62 = tpu.matmul %57, %61, %cst_61 {dimension_numbers = #tpu.dot_dimension_numbers<[1], [0], [0], [1], [0, 0, 1, 1], [], []>} : vector<16x256xbf16>, vector<256x256xbf16>, vector<16x256xf32> -> vector<16x256xf32>
    %c1_62 = arith.constant 1 : index
    %c0_63 = arith.constant 0 : index
    %c0_64 = arith.constant 0 : index
    %63 = vector.load %arg3[%c1_62, %c0_63, %c0_64] : memref<6x256x256xbf16, #tpu.memory_space<vmem>>, vector<1x256x256xbf16>
    %64 = vector.shape_cast %63 : vector<1x256x256xbf16> to vector<256x256xbf16>
    %cst_65 = arith.constant dense<0.000000e+00> : vector<16x256xf32>
    %65 = tpu.matmul %57, %64, %cst_65 {dimension_numbers = #tpu.dot_dimension_numbers<[1], [0], [0], [1], [0, 0, 1, 1], [], []>} : vector<16x256xbf16>, vector<256x256xbf16>, vector<16x256xf32> -> vector<16x256xf32>
    %c2_66 = arith.constant 2 : index
    %c0_67 = arith.constant 0 : index
    %c0_68 = arith.constant 0 : index
    %66 = vector.load %arg3[%c2_66, %c0_67, %c0_68] : memref<6x256x256xbf16, #tpu.memory_space<vmem>>, vector<1x256x256xbf16>
    %67 = vector.shape_cast %66 : vector<1x256x256xbf16> to vector<256x256xbf16>
    %cst_69 = arith.constant dense<0.000000e+00> : vector<16x256xf32>
    %68 = tpu.matmul %54, %67, %cst_69 {dimension_numbers = #tpu.dot_dimension_numbers<[1], [0], [0], [1], [0, 0, 1, 1], [], []>} : vector<16x256xbf16>, vector<256x256xbf16>, vector<16x256xf32> -> vector<16x256xf32>
    %69 = arith.addf %62, %68 : vector<16x256xf32>
    %c3_70 = arith.constant 3 : index
    %c0_71 = arith.constant 0 : index
    %c0_72 = arith.constant 0 : index
    %70 = vector.load %arg3[%c3_70, %c0_71, %c0_72] : memref<6x256x256xbf16, #tpu.memory_space<vmem>>, vector<1x256x256xbf16>
    %71 = vector.shape_cast %70 : vector<1x256x256xbf16> to vector<256x256xbf16>
    %cst_73 = arith.constant dense<0.000000e+00> : vector<16x256xf32>
    %72 = tpu.matmul %54, %71, %cst_73 {dimension_numbers = #tpu.dot_dimension_numbers<[1], [0], [0], [1], [0, 0, 1, 1], [], []>} : vector<16x256xbf16>, vector<256x256xbf16>, vector<16x256xf32> -> vector<16x256xf32>
    %73 = arith.addf %65, %72 : vector<16x256xf32>
    %c4 = arith.constant 4 : index
    %c0_74 = arith.constant 0 : index
    %c0_75 = arith.constant 0 : index
    %74 = vector.load %arg3[%c4, %c0_74, %c0_75] : memref<6x256x256xbf16, #tpu.memory_space<vmem>>, vector<1x256x256xbf16>
    %75 = vector.shape_cast %74 : vector<1x256x256xbf16> to vector<256x256xbf16>
    %cst_76 = arith.constant dense<0.000000e+00> : vector<16x256xf32>
    %76 = tpu.matmul %55, %75, %cst_76 {dimension_numbers = #tpu.dot_dimension_numbers<[1], [0], [0], [1], [0, 0, 1, 1], [], []>} : vector<16x256xbf16>, vector<256x256xbf16>, vector<16x256xf32> -> vector<16x256xf32>
    %77 = arith.addf %69, %76 : vector<16x256xf32>
    %c5 = arith.constant 5 : index
    %c0_77 = arith.constant 0 : index
    %c0_78 = arith.constant 0 : index
    %78 = vector.load %arg3[%c5, %c0_77, %c0_78] : memref<6x256x256xbf16, #tpu.memory_space<vmem>>, vector<1x256x256xbf16>
    %79 = vector.shape_cast %78 : vector<1x256x256xbf16> to vector<256x256xbf16>
    %cst_79 = arith.constant dense<0.000000e+00> : vector<16x256xf32>
    %80 = tpu.matmul %55, %79, %cst_79 {dimension_numbers = #tpu.dot_dimension_numbers<[1], [0], [0], [1], [0, 0, 1, 1], [], []>} : vector<16x256xbf16>, vector<256x256xbf16>, vector<16x256xf32> -> vector<16x256xf32>
    %81 = arith.addf %73, %80 : vector<16x256xf32>
    %c0_80 = arith.constant 0 : index
    %c0_81 = arith.constant 0 : index
    %82 = vector.load %arg4[%c0_80, %c0_81] : memref<1x256xf32, #tpu.memory_space<vmem>>, vector<1x256xf32>
    %83 = vector.broadcast %82 : vector<1x256xf32> to vector<16x256xf32>
    %84 = arith.addf %77, %83 : vector<16x256xf32>
    %cst_82 = arith.constant 0.000000e+00 : f32
    %85 = vector.broadcast %cst_82 : f32 to vector<16x256xf32>
    %86 = arith.maximumf %84, %85 : vector<16x256xf32>
    %c0_83 = arith.constant 0 : index
    %c0_84 = arith.constant 0 : index
    %87 = vector.load %arg4[%c0_83, %c0_84] : memref<1x256xf32, #tpu.memory_space<vmem>>, vector<1x256xf32>
    %88 = vector.broadcast %87 : vector<1x256xf32> to vector<16x256xf32>
    %89 = arith.addf %81, %88 : vector<16x256xf32>
    %cst_85 = arith.constant 0.000000e+00 : f32
    %90 = vector.broadcast %cst_85 : f32 to vector<16x256xf32>
    %91 = arith.maximumf %89, %90 : vector<16x256xf32>
    %92 = arith.maximumf %86, %91 : vector<16x256xf32>
    %c0_86 = arith.constant 0 : index
    %c0_87 = arith.constant 0 : index
    %c0_88 = arith.constant 0 : index
    %93 = vector.load %arg3[%c0_86, %c0_87, %c0_88] : memref<6x256x256xbf16, #tpu.memory_space<vmem>>, vector<1x256x256xbf16>
    %94 = vector.shape_cast %93 : vector<1x256x256xbf16> to vector<256x256xbf16>
    %cst_89 = arith.constant dense<0.000000e+00> : vector<16x256xf32>
    %95 = tpu.matmul %54, %94, %cst_89 {dimension_numbers = #tpu.dot_dimension_numbers<[1], [0], [0], [1], [0, 0, 1, 1], [], []>} : vector<16x256xbf16>, vector<256x256xbf16>, vector<16x256xf32> -> vector<16x256xf32>
    %c1_90 = arith.constant 1 : index
    %c0_91 = arith.constant 0 : index
    %c0_92 = arith.constant 0 : index
    %96 = vector.load %arg3[%c1_90, %c0_91, %c0_92] : memref<6x256x256xbf16, #tpu.memory_space<vmem>>, vector<1x256x256xbf16>
    %97 = vector.shape_cast %96 : vector<1x256x256xbf16> to vector<256x256xbf16>
    %cst_93 = arith.constant dense<0.000000e+00> : vector<16x256xf32>
    %98 = tpu.matmul %54, %97, %cst_93 {dimension_numbers = #tpu.dot_dimension_numbers<[1], [0], [0], [1], [0, 0, 1, 1], [], []>} : vector<16x256xbf16>, vector<256x256xbf16>, vector<16x256xf32> -> vector<16x256xf32>
    %c2_94 = arith.constant 2 : index
    %c0_95 = arith.constant 0 : index
    %c0_96 = arith.constant 0 : index
    %99 = vector.load %arg3[%c2_94, %c0_95, %c0_96] : memref<6x256x256xbf16, #tpu.memory_space<vmem>>, vector<1x256x256xbf16>
    %100 = vector.shape_cast %99 : vector<1x256x256xbf16> to vector<256x256xbf16>
    %cst_97 = arith.constant dense<0.000000e+00> : vector<16x256xf32>
    %101 = tpu.matmul %55, %100, %cst_97 {dimension_numbers = #tpu.dot_dimension_numbers<[1], [0], [0], [1], [0, 0, 1, 1], [], []>} : vector<16x256xbf16>, vector<256x256xbf16>, vector<16x256xf32> -> vector<16x256xf32>
    %102 = arith.addf %95, %101 : vector<16x256xf32>
    %c3_98 = arith.constant 3 : index
    %c0_99 = arith.constant 0 : index
    %c0_100 = arith.constant 0 : index
    %103 = vector.load %arg3[%c3_98, %c0_99, %c0_100] : memref<6x256x256xbf16, #tpu.memory_space<vmem>>, vector<1x256x256xbf16>
    %104 = vector.shape_cast %103 : vector<1x256x256xbf16> to vector<256x256xbf16>
    %cst_101 = arith.constant dense<0.000000e+00> : vector<16x256xf32>
    %105 = tpu.matmul %55, %104, %cst_101 {dimension_numbers = #tpu.dot_dimension_numbers<[1], [0], [0], [1], [0, 0, 1, 1], [], []>} : vector<16x256xbf16>, vector<256x256xbf16>, vector<16x256xf32> -> vector<16x256xf32>
    %106 = arith.addf %98, %105 : vector<16x256xf32>
    %c4_102 = arith.constant 4 : index
    %c0_103 = arith.constant 0 : index
    %c0_104 = arith.constant 0 : index
    %107 = vector.load %arg3[%c4_102, %c0_103, %c0_104] : memref<6x256x256xbf16, #tpu.memory_space<vmem>>, vector<1x256x256xbf16>
    %108 = vector.shape_cast %107 : vector<1x256x256xbf16> to vector<256x256xbf16>
    %cst_105 = arith.constant dense<0.000000e+00> : vector<16x256xf32>
    %109 = tpu.matmul %59, %108, %cst_105 {dimension_numbers = #tpu.dot_dimension_numbers<[1], [0], [0], [1], [0, 0, 1, 1], [], []>} : vector<16x256xbf16>, vector<256x256xbf16>, vector<16x256xf32> -> vector<16x256xf32>
    %110 = arith.addf %102, %109 : vector<16x256xf32>
    %c5_106 = arith.constant 5 : index
    %c0_107 = arith.constant 0 : index
    %c0_108 = arith.constant 0 : index
    %111 = vector.load %arg3[%c5_106, %c0_107, %c0_108] : memref<6x256x256xbf16, #tpu.memory_space<vmem>>, vector<1x256x256xbf16>
    %112 = vector.shape_cast %111 : vector<1x256x256xbf16> to vector<256x256xbf16>
    %cst_109 = arith.constant dense<0.000000e+00> : vector<16x256xf32>
    %113 = tpu.matmul %59, %112, %cst_109 {dimension_numbers = #tpu.dot_dimension_numbers<[1], [0], [0], [1], [0, 0, 1, 1], [], []>} : vector<16x256xbf16>, vector<256x256xbf16>, vector<16x256xf32> -> vector<16x256xf32>
    %114 = arith.addf %106, %113 : vector<16x256xf32>
    %c0_110 = arith.constant 0 : index
    %c0_111 = arith.constant 0 : index
    %115 = vector.load %arg4[%c0_110, %c0_111] : memref<1x256xf32, #tpu.memory_space<vmem>>, vector<1x256xf32>
    %116 = vector.broadcast %115 : vector<1x256xf32> to vector<16x256xf32>
    %117 = arith.addf %110, %116 : vector<16x256xf32>
    %cst_112 = arith.constant 0.000000e+00 : f32
    %118 = vector.broadcast %cst_112 : f32 to vector<16x256xf32>
    %119 = arith.maximumf %117, %118 : vector<16x256xf32>
    %c0_113 = arith.constant 0 : index
    %c0_114 = arith.constant 0 : index
    %120 = vector.load %arg4[%c0_113, %c0_114] : memref<1x256xf32, #tpu.memory_space<vmem>>, vector<1x256xf32>
    %121 = vector.broadcast %120 : vector<1x256xf32> to vector<16x256xf32>
    %122 = arith.addf %114, %121 : vector<16x256xf32>
    %cst_115 = arith.constant 0.000000e+00 : f32
    %123 = vector.broadcast %cst_115 : f32 to vector<16x256xf32>
    %124 = arith.maximumf %122, %123 : vector<16x256xf32>
    %125 = arith.maximumf %119, %124 : vector<16x256xf32>
    %126 = arith.maximumf %92, %125 : vector<16x256xf32>
    %c0_116 = arith.constant 0 : index
    %c0_117 = arith.constant 0 : index
    %127 = vector.load %arg10[%c0_116, %c0_117] : memref<16x256xf32, #tpu.memory_space<vmem>>, vector<16x256xf32>
    tpu.vector_store %arg10[%c0_116, %c0_117], %126 {strides = array<i32>} : memref<16x256xf32, #tpu.memory_space<vmem>>, vector<16x256xf32>,
    %c0_118 = arith.constant 0 : index
    %c0_119 = arith.constant 0 : index
    %128 = vector.load %arg10[%c0_118, %c0_119] : memref<16x256xf32, #tpu.memory_space<vmem>>, vector<2x256xf32>
    %c2_120 = arith.constant 2 : index
    %c0_121 = arith.constant 0 : index
    %129 = vector.load %arg10[%c2_120, %c0_121] : memref<16x256xf32, #tpu.memory_space<vmem>>, vector<2x256xf32>
    %c4_122 = arith.constant 4 : index
    %c0_123 = arith.constant 0 : index
    %130 = vector.load %arg10[%c4_122, %c0_123] : memref<16x256xf32, #tpu.memory_space<vmem>>, vector<2x256xf32>
    %c6 = arith.constant 6 : index
    %c0_124 = arith.constant 0 : index
    %131 = vector.load %arg10[%c6, %c0_124] : memref<16x256xf32, #tpu.memory_space<vmem>>, vector<2x256xf32>
    %c8 = arith.constant 8 : index
    %c0_125 = arith.constant 0 : index
    %132 = vector.load %arg10[%c8, %c0_125] : memref<16x256xf32, #tpu.memory_space<vmem>>, vector<2x256xf32>
    %c10 = arith.constant 10 : index
    %c0_126 = arith.constant 0 : index
    %133 = vector.load %arg10[%c10, %c0_126] : memref<16x256xf32, #tpu.memory_space<vmem>>, vector<2x256xf32>
    %c12 = arith.constant 12 : index
    %c0_127 = arith.constant 0 : index
    %134 = vector.load %arg10[%c12, %c0_127] : memref<16x256xf32, #tpu.memory_space<vmem>>, vector<2x256xf32>
    %c14 = arith.constant 14 : index
    %c0_128 = arith.constant 0 : index
    %135 = vector.load %arg10[%c14, %c0_128] : memref<16x256xf32, #tpu.memory_space<vmem>>, vector<2x256xf32>
    %136 = tpu.concatenate %128, %129, %130, %131, %132, %133, %134, %135 in 1 : vector<2x256xf32>, vector<2x256xf32>, vector<2x256xf32>, vector<2x256xf32>, vector<2x256xf32>, vector<2x256xf32>, vector<2x256xf32>, vector<2x256xf32> -> vector<2x2048xf32>
    %137 = arith.truncf %136 : vector<2x2048xf32> to vector<2x2048xbf16>
    %c0_129 = arith.constant 0 : index
    %c0_130 = arith.constant 0 : index
    %138 = vector.load %arg5[%c0_129, %c0_130] : memref<2048x256xbf16, #tpu.memory_space<vmem>>, vector<2048x256xbf16>
    %cst_131 = arith.constant dense<0.000000e+00> : vector<2x256xf32>
    %139 = tpu.matmul %137, %138, %cst_131 {dimension_numbers = #tpu.dot_dimension_numbers<[1], [0], [0], [1], [0, 0, 1, 1], [], []>} : vector<2x2048xbf16>, vector<2048x256xbf16>, vector<2x256xf32> -> vector<2x256xf32>
    %c0_132 = arith.constant 0 : index
    %c0_133 = arith.constant 0 : index
    %140 = vector.load %arg6[%c0_132, %c0_133] : memref<1x256xf32, #tpu.memory_space<vmem>>, vector<1x256xf32>
    %141 = vector.broadcast %140 : vector<1x256xf32> to vector<2x256xf32>
    %142 = arith.addf %139, %141 : vector<2x256xf32>
    %cst_134 = arith.constant 0.000000e+00 : f32
    %143 = vector.broadcast %cst_134 : f32 to vector<2x256xf32>
    %144 = arith.maximumf %142, %143 : vector<2x256xf32>
    %145 = arith.truncf %144 : vector<2x256xf32> to vector<2x256xbf16>
    %c0_135 = arith.constant 0 : index
    %c0_136 = arith.constant 0 : index
    %146 = vector.load %arg7[%c0_135, %c0_136] : memref<256x10xbf16, #tpu.memory_space<vmem>>, vector<256x10xbf16>
    %cst_137 = arith.constant dense<0.000000e+00> : vector<2x10xf32>
    %147 = tpu.matmul %145, %146, %cst_137 {dimension_numbers = #tpu.dot_dimension_numbers<[1], [0], [0], [1], [0, 0, 1, 1], [], []>} : vector<2x256xbf16>, vector<256x10xbf16>, vector<2x10xf32> -> vector<2x10xf32>
    %c0_138 = arith.constant 0 : index
    %c0_139 = arith.constant 0 : index
    %148 = vector.load %arg8[%c0_138, %c0_139] : memref<1x10xf32, #tpu.memory_space<vmem>>, vector<1x10xf32>
    %149 = vector.broadcast %148 : vector<1x10xf32> to vector<2x10xf32>
    %150 = arith.addf %147, %149 : vector<2x10xf32>
    %cst_140 = arith.constant 0.000000e+00 : f32
    %151 = vector.broadcast %cst_140 : f32 to vector<2x10xf32>
    %152 = arith.maximumf %150, %151 : vector<2x10xf32>
    %cst_141 = arith.constant dense<0xFF800000> : vector<2xf32>
    %153 = vector.multi_reduction <maximumf>, %152, %cst_141 [1] : vector<2x10xf32> to vector<2xf32>
    %154 = vector.shape_cast %153 : vector<2xf32> to vector<2x1xf32>
    %155 = vector.broadcast %154 : vector<2x1xf32> to vector<2x10xf32>
    %156 = arith.subf %152, %155 : vector<2x10xf32>
    %157 = math.exp %156 : vector<2x10xf32>
    %cst_142 = arith.constant dense<0.000000e+00> : vector<2xf32>
    %158 = vector.multi_reduction <add>, %157, %cst_142 [1] : vector<2x10xf32> to vector<2xf32>
    %159 = vector.shape_cast %158 : vector<2xf32> to vector<2x1xf32>
    %160 = math.log %159 : vector<2x1xf32>
    %161 = vector.broadcast %160 : vector<2x1xf32> to vector<2x10xf32>
    %162 = arith.subf %156, %161 : vector<2x10xf32>
    %c0_143 = arith.constant 0 : index
    %c0_144 = arith.constant 0 : index
    %163 = vector.load %arg9[%c0_143, %c0_144] : memref<2x10xf32, #tpu.memory_space<vmem>>, vector<2x10xf32>
    tpu.vector_store %arg9[%c0_143, %c0_144], %162 {strides = array<i32>} : memref<2x10xf32, #tpu.memory_space<vmem>>, vector<2x10xf32>,
    return
  }
}

</mosaic_0001>

<llo_original>
// kernel: lenet_supernet_forward.1
$region0: #{lenet_supernet_forward.1}
  #allocation0 [shape = 'u32[]', space=smem, size = 0x4, offset = 0x4, fixed_abs, tag = 'smem constant byte address 0x4 - core index']
  #allocation1 [shape = 'u32[72,128]{1,0:T(1,128)}', space=vmem, size = 0x9000, scoped, tag = 'internal scratch']
  #allocation2 [shape = 'f32[16,256]{1,0:T(8,128)}', space=vmem, size = 0x4000, scoped, tag = 'scratch operand']
  #allocation3 [shape = 'f32[18,256]{1,0:T(8,128)}', space=vmem, size = 0x6000, scoped, tag = 'scratch operand']
  #allocation4 [shape = 'f32[18,256]{1,0:T(8,128)}', space=vmem, size = 0x6000, scoped, tag = 'scratch operand']
  %s0 = inlined_call_operand.vmem [shape: bf16[4,16,128], index: 0, kind: input, shape index: {}]
  %s1 = inlined_call_operand.vmem [shape: bf16[2,128,256], index: 1, kind: input, shape index: {}]
  %s2 = inlined_call_operand.vmem [shape: f32[1,256], index: 2, kind: input, shape index: {}]
  %s3 = inlined_call_operand.hbm [shape: bf16[6,256,256], index: 3, kind: input, shape index: {}]
  %s4 = inlined_call_operand.vmem [shape: f32[1,256], index: 4, kind: input, shape index: {}]
  %s5 = inlined_call_operand.hbm [shape: bf16[2048,256], index: 5, kind: input, shape index: {}]
  %s6 = inlined_call_operand.vmem [shape: f32[1,256], index: 6, kind: input, shape index: {}]
  %s7 = inlined_call_operand.vmem [shape: bf16[256,10], index: 7, kind: input, shape index: {}]
  %s8 = inlined_call_operand.vmem [shape: f32[1,10], index: 8, kind: input, shape index: {}]
  %s9 = inlined_call_operand.hbm [shape: f32[2,10], index: 9, kind: output, shape index: {}]
  %s10 = sld [smem:[#allocation0]]
  $region54: #{lenet_supernet_forward.1} parent=0
    _
  %s12 = ssub.s32 1, %s10
  %s13 = scalar_select 0, %s12, %s10
  $region1: #{lenet_supernet_forward.1} parent=0
    #allocation5 [shape = 'u8[786432]{0}', space=vmem, size = 0xc0000, scoped, tag = 'input window, operand 3, single buffered']
    #allocation6 [shape = 's32[1]{0}', space=sflag, size = 0x4, scoped, tag = 'scoped memory for lenet_supernet_forward.1']
    #allocation7 [shape = 's32[1]{0}', space=sflag, size = 0x4, scoped, tag = 'scoped memory for lenet_supernet_forward.1']
    #allocation8 [shape = 'u8[1048576]{0}', space=vmem, size = 0x100000, scoped, tag = 'input window, operand 5, single buffered']
    #allocation9 [shape = 's32[1]{0}', space=sflag, size = 0x4, scoped, tag = 'scoped memory for lenet_supernet_forward.1']
    #allocation10 [shape = 'u8[1024]{0}', space=vmem, size = 0x400, scoped, tag = 'output window, operand 0, single buffered']
    %14 = vsyncpa [#allocation6], 0
    %15 = vsyncpa [#allocation9], 0
    %16 = vsyncpa [#allocation7], 0
    // Predicated region
    $region2: #{lenet_supernet_forward.1} parent=1 // pred_check
      _
    $region3: #{lenet_supernet_forward.1} parent=1 // pred_check_branch
      %18 = sbr.rel (0) target = $region5
    $region4: #{lenet_supernet_forward.1} parent=1 // pred_region
      _
    $region5: #{lenet_supernet_forward.1} parent=1 // pred_fallthru
      _
    // Predicated region
    $region6: #{lenet_supernet_forward.1} parent=1 // pred_check
      _
    $region7: #{lenet_supernet_forward.1} parent=1 // pred_check_branch
      %20 = sbr.rel (0) target = $region9
    $region8: #{lenet_supernet_forward.1} parent=1 // pred_region
      _
    $region9: #{lenet_supernet_forward.1} parent=1 // pred_fallthru
      _
    // Predicated region
    $region10: #{lenet_supernet_forward.1} parent=1 // pred_check
      _
    $region11: #{lenet_supernet_forward.1} parent=1 // pred_check_branch
      %22 = sbr.rel (0) target = $region13
    $region12: #{lenet_supernet_forward.1} parent=1 // pred_region
      _
    $region13: #{lenet_supernet_forward.1} parent=1 // pred_fallthru
      _
    // Predicated region
    $region14: #{lenet_supernet_forward.1} parent=1 // pred_check
      _
    $region15: #{lenet_supernet_forward.1} parent=1 // pred_check_branch
      %24 = sbr.rel (0) target = $region17
    $region16: #{lenet_supernet_forward.1} parent=1 // pred_region
      %26 = vsyncadd [#allocation6], 0
      %s27 = sshll.u32 %s3, 4
      %s28 = int_to_ptr.hbm [resolvable:$true] %s27
      %s29 = sshll.u32 [#allocation5], 4
      %s30 = int_to_ptr.vmem [resolvable:$true] %s29
      %35 = dma.hbm_to_vmem [thread:$0]  %s28, 24576, %s30, [#allocation6], 128, 128, 8
    $region17: #{lenet_supernet_forward.1} parent=1 // pred_fallthru
      _
    // Predicated region
    $region18: #{lenet_supernet_forward.1} parent=1 // pred_check
      _
    $region19: #{lenet_supernet_forward.1} parent=1 // pred_check_branch
      %37 = sbr.rel (0) target = $region21
    $region20: #{lenet_supernet_forward.1} parent=1 // pred_region
      _
    $region21: #{lenet_supernet_forward.1} parent=1 // pred_fallthru
      _
    // Predicated region
    $region22: #{lenet_supernet_forward.1} parent=1 // pred_check
      _
    $region23: #{lenet_supernet_forward.1} parent=1 // pred_check_branch
      %39 = sbr.rel (0) target = $region25
    $region24: #{lenet_supernet_forward.1} parent=1 // pred_region
      %41 = vsyncadd [#allocation9], 0
      %s42 = sshll.u32 %s5, 4
      %s43 = int_to_ptr.hbm [resolvable:$true] %s42
      %s44 = sshll.u32 [#allocation8], 4
      %s45 = int_to_ptr.vmem [resolvable:$true] %s44
      %50 = dma.hbm_to_vmem [thread:$0]  %s43, 32768, %s45, [#allocation9], 128, 128, 8
    $region25: #{lenet_supernet_forward.1} parent=1 // pred_fallthru
      _
    // Predicated region
    $region26: #{lenet_supernet_forward.1} parent=1 // pred_check
      _
    $region27: #{lenet_supernet_forward.1} parent=1 // pred_check_branch
      %52 = sbr.rel (0) target = $region29
    $region28: #{lenet_supernet_forward.1} parent=1 // pred_region
      _
    $region29: #{lenet_supernet_forward.1} parent=1 // pred_fallthru
      _
    // Predicated region
    $region30: #{lenet_supernet_forward.1} parent=1 // pred_check
      _
    $region31: #{lenet_supernet_forward.1} parent=1 // pred_check_branch
      %54 = sbr.rel (0) target = $region33
    $region32: #{lenet_supernet_forward.1} parent=1 // pred_region
      _
    $region33: #{lenet_supernet_forward.1} parent=1 // pred_fallthru
      _
    // Predicated region
    $region34: #{lenet_supernet_forward.1} parent=1 // pred_check
      _
    $region35: #{lenet_supernet_forward.1} parent=1 // pred_check_branch
      %56 = sbr.rel (0) target = $region37
    $region36: #{lenet_supernet_forward.1} parent=1 // pred_region
      _
    $region37: #{lenet_supernet_forward.1} parent=1 // pred_fallthru
      _
    // Predicated region
    $region38: #{lenet_supernet_forward.1} parent=1 // pred_check
      _
    $region39: #{lenet_supernet_forward.1} parent=1 // pred_check_branch
      %58 = sbr.rel (0) target = $region41
    $region40: #{lenet_supernet_forward.1} parent=1 // pred_region
      %60 = dma.done [#allocation6], 24576
    $region41: #{lenet_supernet_forward.1} parent=1 // pred_fallthru
      _
    // Predicated region
    $region42: #{lenet_supernet_forward.1} parent=1 // pred_check
      _
    $region43: #{lenet_supernet_forward.1} parent=1 // pred_check_branch
      %62 = sbr.rel (0) target = $region45
    $region44: #{lenet_supernet_forward.1} parent=1 // pred_region
      %64 = dma.done [#allocation9], 32768
    $region45: #{lenet_supernet_forward.1} parent=1 // pred_fallthru
      _
    %v65 = vld [vmem:[%s0] sm:$0xf]
    %v66 = vld [vmem:[%s0 + $0x4] sm:$0xf]
    %v67 = vld [vmem:[%s1] sm:$0xff]
    %v68 = vld [vmem:[%s1 + $0x8] sm:$0xff]
    %v69 = vld [vmem:[%s1 + $0x10] sm:$0xff]
    %v70 = vld [vmem:[%s1 + $0x18] sm:$0xff]
    %v71 = vld [vmem:[%s1 + $0x20] sm:$0xff]
    %v72 = vld [vmem:[%s1 + $0x28] sm:$0xff]
    %v73 = vld [vmem:[%s1 + $0x30] sm:$0xff]
    %v74 = vld [vmem:[%s1 + $0x38] sm:$0xff]
    %v75 = vld [vmem:[%s1 + $0x40] sm:$0xff]
    %v76 = vld [vmem:[%s1 + $0x48] sm:$0xff]
    %v77 = vld [vmem:[%s1 + $0x50] sm:$0xff]
    %v78 = vld [vmem:[%s1 + $0x58] sm:$0xff]
    %v79 = vld [vmem:[%s1 + $0x60] sm:$0xff]
    %v80 = vld [vmem:[%s1 + $0x68] sm:$0xff]
    %v81 = vld [vmem:[%s1 + $0x70] sm:$0xff]
    %v82 = vld [vmem:[%s1 + $0x78] sm:$0xff]
    %v85 = vunpack.c.l.b16 %v65
    %v86 = vunpack.c.l.b16 %v66
    %v87 = vpack.c.b16 %v86, %v85
    %v105 = vunpack.c.l.b16 %v67
    %v106 = vunpack.c.h.b16 %v67
    %v107 = vunpack.c.l.b16 %v68
    %v108 = vunpack.c.h.b16 %v68
    %v109 = vunpack.c.l.b16 %v69
    %v110 = vunpack.c.h.b16 %v69
    %v111 = vunpack.c.l.b16 %v70
    %v112 = vunpack.c.h.b16 %v70
    %v113 = vunpack.c.l.b16 %v71
    %v114 = vunpack.c.h.b16 %v71
    %v115 = vunpack.c.l.b16 %v72
    %v116 = vunpack.c.h.b16 %v72
    %v117 = vunpack.c.l.b16 %v73
    %v118 = vunpack.c.h.b16 %v73
    %v119 = vunpack.c.l.b16 %v74
    %v120 = vunpack.c.h.b16 %v74
    %v121 = vunpack.c.l.b16 %v75
    %v122 = vunpack.c.h.b16 %v75
    %v123 = vunpack.c.l.b16 %v76
    %v124 = vunpack.c.h.b16 %v76
    %v125 = vunpack.c.l.b16 %v77
    %v126 = vunpack.c.h.b16 %v77
    %v127 = vunpack.c.l.b16 %v78
    %v128 = vunpack.c.h.b16 %v78
    %v129 = vunpack.c.l.b16 %v79
    %v130 = vunpack.c.h.b16 %v79
    %v131 = vunpack.c.l.b16 %v80
    %v132 = vunpack.c.h.b16 %v80
    %v133 = vunpack.c.l.b16 %v81
    %v134 = vunpack.c.h.b16 %v81
    %v135 = vunpack.c.l.b16 %v82
    %v136 = vunpack.c.h.b16 %v82
    %v137 = vpack.c.b16 %v107, %v105
    %v138 = vpack.c.b16 %v108, %v106
    %v139 = vpack.c.b16 %v111, %v109
    %v140 = vpack.c.b16 %v112, %v110
    %v141 = vpack.c.b16 %v115, %v113
    %v142 = vpack.c.b16 %v116, %v114
    %v143 = vpack.c.b16 %v119, %v117
    %v144 = vpack.c.b16 %v120, %v118
    %v145 = vpack.c.b16 %v123, %v121
    %v146 = vpack.c.b16 %v124, %v122
    %v147 = vpack.c.b16 %v127, %v125
    %v148 = vpack.c.b16 %v128, %v126
    %v149 = vpack.c.b16 %v131, %v129
    %v150 = vpack.c.b16 %v132, %v130
    %v151 = vpack.c.b16 %v135, %v133
    %v152 = vpack.c.b16 %v136, %v134
    %169 = vmatpush.bf16.msra.mxu0 %v151
    %170 = vmatpush.bf16.msra.mxu0 %v149
    %171 = vmatpush.bf16.msra.mxu0 %v147
    %172 = vmatpush.bf16.msra.mxu0 %v145
    %173 = vmatpush.bf16.msra.mxu0 %v143
    %174 = vmatpush.bf16.msra.mxu0 %v141
    %175 = vmatpush.bf16.msra.mxu0 %v139
    %176 = vmatpush.bf16.msra.mxu0 %v137
    %177 = vmatmul.bf16.gmra.mxu0 %v87
    %v178 = vpop.f32.mrf.mxu0
    %v179 = vadd.f32 0.0, %v178
    %v180 = vpop.f32.mrf.mxu0
    %v181 = vadd.f32 0.0, %v180
    %182 = vdwg.mxu0
    %183 = vmatpush.bf16.msra.mxu0 %v152
    %184 = vmatpush.bf16.msra.mxu0 %v150
    %185 = vmatpush.bf16.msra.mxu0 %v148
    %186 = vmatpush.bf16.msra.mxu0 %v146
    %187 = vmatpush.bf16.msra.mxu0 %v144
    %188 = vmatpush.bf16.msra.mxu0 %v142
    %189 = vmatpush.bf16.msra.mxu0 %v140
    %190 = vmatpush.bf16.msra.mxu0 %v138
    %191 = vmatmul.bf16.gmra.mxu0 %v87
    %v192 = vpop.f32.mrf.mxu0
    %v193 = vadd.f32 0.0, %v192
    %v194 = vpop.f32.mrf.mxu0
    %v195 = vadd.f32 0.0, %v194
    %196 = vdwg.mxu0
    %s197 = scalar_lea.vmem %s1, 128
    %v198 = vld [vmem:[%s197] sm:$0xff]
    %v199 = vld [vmem:[%s197 + $0x8] sm:$0xff]
    %v200 = vld [vmem:[%s197 + $0x10] sm:$0xff]
    %v201 = vld [vmem:[%s197 + $0x18] sm:$0xff]
    %v202 = vld [vmem:[%s197 + $0x20] sm:$0xff]
    %v203 = vld [vmem:[%s197 + $0x28] sm:$0xff]
    %v204 = vld [vmem:[%s197 + $0x30] sm:$0xff]
    %v205 = vld [vmem:[%s197 + $0x38] sm:$0xff]
    %v206 = vld [vmem:[%s197 + $0x40] sm:$0xff]
    %v207 = vld [vmem:[%s197 + $0x48] sm:$0xff]
    %v208 = vld [vmem:[%s197 + $0x50] sm:$0xff]
    %v209 = vld [vmem:[%s197 + $0x58] sm:$0xff]
    %v210 = vld [vmem:[%s197 + $0x60] sm:$0xff]
    %v211 = vld [vmem:[%s197 + $0x68] sm:$0xff]
    %v212 = vld [vmem:[%s197 + $0x70] sm:$0xff]
    %v213 = vld [vmem:[%s197 + $0x78] sm:$0xff]
    %v230 = vunpack.c.l.b16 %v198
    %v231 = vunpack.c.h.b16 %v198
    %v232 = vunpack.c.l.b16 %v199
    %v233 = vunpack.c.h.b16 %v199
    %v234 = vunpack.c.l.b16 %v200
    %v235 = vunpack.c.h.b16 %v200
    %v236 = vunpack.c.l.b16 %v201
    %v237 = vunpack.c.h.b16 %v201
    %v238 = vunpack.c.l.b16 %v202
    %v239 = vunpack.c.h.b16 %v202
    %v240 = vunpack.c.l.b16 %v203
    %v241 = vunpack.c.h.b16 %v203
    %v242 = vunpack.c.l.b16 %v204
    %v243 = vunpack.c.h.b16 %v204
    %v244 = vunpack.c.l.b16 %v205
    %v245 = vunpack.c.h.b16 %v205
    %v246 = vunpack.c.l.b16 %v206
    %v247 = vunpack.c.h.b16 %v206
    %v248 = vunpack.c.l.b16 %v207
    %v249 = vunpack.c.h.b16 %v207
    %v250 = vunpack.c.l.b16 %v208
    %v251 = vunpack.c.h.b16 %v208
    %v252 = vunpack.c.l.b16 %v209
    %v253 = vunpack.c.h.b16 %v209
    %v254 = vunpack.c.l.b16 %v210
    %v255 = vunpack.c.h.b16 %v210
    %v256 = vunpack.c.l.b16 %v211
    %v257 = vunpack.c.h.b16 %v211
    %v258 = vunpack.c.l.b16 %v212
    %v259 = vunpack.c.h.b16 %v212
    %v260 = vunpack.c.l.b16 %v213
    %v261 = vunpack.c.h.b16 %v213
    %v262 = vpack.c.b16 %v232, %v230
    %v263 = vpack.c.b16 %v233, %v231
    %v264 = vpack.c.b16 %v236, %v234
    %v265 = vpack.c.b16 %v237, %v235
    %v266 = vpack.c.b16 %v240, %v238
    %v267 = vpack.c.b16 %v241, %v239
    %v268 = vpack.c.b16 %v244, %v242
    %v269 = vpack.c.b16 %v245, %v243
    %v270 = vpack.c.b16 %v248, %v246
    %v271 = vpack.c.b16 %v249, %v247
    %v272 = vpack.c.b16 %v252, %v250
    %v273 = vpack.c.b16 %v253, %v251
    %v274 = vpack.c.b16 %v256, %v254
    %v275 = vpack.c.b16 %v257, %v255
    %v276 = vpack.c.b16 %v260, %v258
    %v277 = vpack.c.b16 %v261, %v259
    %294 = vmatpush.bf16.msra.mxu0 %v276
    %295 = vmatpush.bf16.msra.mxu0 %v274
    %296 = vmatpush.bf16.msra.mxu0 %v272
    %297 = vmatpush.bf16.msra.mxu0 %v270
    %298 = vmatpush.bf16.msra.mxu0 %v268
    %299 = vmatpush.bf16.msra.mxu0 %v266
    %300 = vmatpush.bf16.msra.mxu0 %v264
    %301 = vmatpush.bf16.msra.mxu0 %v262
    %302 = vmatmul.bf16.gmra.mxu0 %v87
    %v303 = vpop.f32.mrf.mxu0
    %v304 = vadd.f32 0.0, %v303
    %v305 = vpop.f32.mrf.mxu0
    %v306 = vadd.f32 0.0, %v305
    %307 = vdwg.mxu0
    %308 = vmatpush.bf16.msra.mxu0 %v277
    %309 = vmatpush.bf16.msra.mxu0 %v275
    %310 = vmatpush.bf16.msra.mxu0 %v273
    %311 = vmatpush.bf16.msra.mxu0 %v271
    %312 = vmatpush.bf16.msra.mxu0 %v269
    %313 = vmatpush.bf16.msra.mxu0 %v267
    %314 = vmatpush.bf16.msra.mxu0 %v265
    %315 = vmatpush.bf16.msra.mxu0 %v263
    %316 = vmatmul.bf16.gmra.mxu0 %v87
    %v317 = vpop.f32.mrf.mxu0
    %v318 = vadd.f32 0.0, %v317
    %v319 = vpop.f32.mrf.mxu0
    %v320 = vadd.f32 0.0, %v319
    %321 = vdwg.mxu0
    %v322 = vmax.f32 %v179, %v304
    %v323 = vmax.f32 %v193, %v318
    %v324 = vmax.f32 %v181, %v306
    %v325 = vmax.f32 %v195, %v320
    %s326 = scalar_lea.vmem %s0, 8
    %v327 = vld [vmem:[%s326] sm:$0xf]
    %v328 = vld [vmem:[%s326 + $0x4] sm:$0xf]
    %v331 = vunpack.c.l.b16 %v327
    %v332 = vunpack.c.l.b16 %v328
    %v333 = vpack.c.b16 %v332, %v331
    %335 = vmatpush.bf16.msra.mxu0 %v151
    %336 = vmatpush.bf16.msra.mxu0 %v149
    %337 = vmatpush.bf16.msra.mxu0 %v147
    %338 = vmatpush.bf16.msra.mxu0 %v145
    %339 = vmatpush.bf16.msra.mxu0 %v143
    %340 = vmatpush.bf16.msra.mxu0 %v141
    %341 = vmatpush.bf16.msra.mxu0 %v139
    %342 = vmatpush.bf16.msra.mxu0 %v137
    %343 = vmatmul.bf16.gmra.mxu0 %v333
    %v344 = vpop.f32.mrf.mxu0
    %v345 = vadd.f32 0.0, %v344
    %v346 = vpop.f32.mrf.mxu0
    %v347 = vadd.f32 0.0, %v346
    %348 = vdwg.mxu0
    %349 = vmatpush.bf16.msra.mxu0 %v152
    %350 = vmatpush.bf16.msra.mxu0 %v150
    %351 = vmatpush.bf16.msra.mxu0 %v148
    %352 = vmatpush.bf16.msra.mxu0 %v146
    %353 = vmatpush.bf16.msra.mxu0 %v144
    %354 = vmatpush.bf16.msra.mxu0 %v142
    %355 = vmatpush.bf16.msra.mxu0 %v140
    %356 = vmatpush.bf16.msra.mxu0 %v138
    %357 = vmatmul.bf16.gmra.mxu0 %v333
    %v358 = vpop.f32.mrf.mxu0
    %v359 = vadd.f32 0.0, %v358
    %v360 = vpop.f32.mrf.mxu0
    %v361 = vadd.f32 0.0, %v360
    %362 = vdwg.mxu0
    %v363 = vmax.f32 %v322, %v345
    %v364 = vmax.f32 %v323, %v359
    %v365 = vmax.f32 %v324, %v347
    %v366 = vmax.f32 %v325, %v361
    %367 = vmatpush.bf16.msra.mxu0 %v276
    %368 = vmatpush.bf16.msra.mxu0 %v274
    %369 = vmatpush.bf16.msra.mxu0 %v272
    %370 = vmatpush.bf16.msra.mxu0 %v270
    %371 = vmatpush.bf16.msra.mxu0 %v268
    %372 = vmatpush.bf16.msra.mxu0 %v266
    %373 = vmatpush.bf16.msra.mxu0 %v264
    %374 = vmatpush.bf16.msra.mxu0 %v262
    %375 = vmatmul.bf16.gmra.mxu0 %v333
    %v376 = vpop.f32.mrf.mxu0
    %v377 = vadd.f32 0.0, %v376
    %v378 = vpop.f32.mrf.mxu0
    %v379 = vadd.f32 0.0, %v378
    %380 = vdwg.mxu0
    %381 = vmatpush.bf16.msra.mxu0 %v277
    %382 = vmatpush.bf16.msra.mxu0 %v275
    %383 = vmatpush.bf16.msra.mxu0 %v273
    %384 = vmatpush.bf16.msra.mxu0 %v271
    %385 = vmatpush.bf16.msra.mxu0 %v269
    %386 = vmatpush.bf16.msra.mxu0 %v267
    %387 = vmatpush.bf16.msra.mxu0 %v265
    %388 = vmatpush.bf16.msra.mxu0 %v263
    %389 = vmatmul.bf16.gmra.mxu0 %v333
    %v390 = vpop.f32.mrf.mxu0
    %v391 = vadd.f32 0.0, %v390
    %v392 = vpop.f32.mrf.mxu0
    %v393 = vadd.f32 0.0, %v392
    %394 = vdwg.mxu0
    %v395 = vmax.f32 %v363, %v377
    %v396 = vmax.f32 %v364, %v391
    %v397 = vmax.f32 %v365, %v379
    %v398 = vmax.f32 %v366, %v393
    %v399 = vld [vmem:[%s2] sm:$0x3]
    %v401 = vperm.slane %v399, 0
    %v402 = vperm.slane %v399, 1
    %v405 = vadd.f32 %v395, %v401
    %v406 = vadd.f32 %v396, %v402
    %v407 = vadd.f32 %v397, %v401
    %v408 = vadd.f32 %v398, %v402
    %v409 = vmax.f32 %v405, 0.0
    %v410 = vmax.f32 %v406, 0.0
    %v411 = vmax.f32 %v407, 0.0
    %v412 = vmax.f32 %v408, 0.0
    %s413 = scalar_lea.vmem %s0, 16
    %v414 = vld [vmem:[%s413] sm:$0xf]
    %v415 = vld [vmem:[%s413 + $0x4] sm:$0xf]
    %v418 = vunpack.c.l.b16 %v414
    %v419 = vunpack.c.l.b16 %v415
    %v420 = vpack.c.b16 %v419, %v418
    %422 = vmatpush.bf16.msra.mxu0 %v151
    %423 = vmatpush.bf16.msra.mxu0 %v149
    %424 = vmatpush.bf16.msra.mxu0 %v147
    %425 = vmatpush.bf16.msra.mxu0 %v145
    %426 = vmatpush.bf16.msra.mxu0 %v143
    %427 = vmatpush.bf16.msra.mxu0 %v141
    %428 = vmatpush.bf16.msra.mxu0 %v139
    %429 = vmatpush.bf16.msra.mxu0 %v137
    %430 = vmatmul.bf16.gmra.mxu0 %v420
    %v431 = vpop.f32.mrf.mxu0
    %v432 = vadd.f32 0.0, %v431
    %v433 = vpop.f32.mrf.mxu0
    %v434 = vadd.f32 0.0, %v433
    %435 = vdwg.mxu0
    %436 = vmatpush.bf16.msra.mxu0 %v152
    %437 = vmatpush.bf16.msra.mxu0 %v150
    %438 = vmatpush.bf16.msra.mxu0 %v148
    %439 = vmatpush.bf16.msra.mxu0 %v146
    %440 = vmatpush.bf16.msra.mxu0 %v144
    %441 = vmatpush.bf16.msra.mxu0 %v142
    %442 = vmatpush.bf16.msra.mxu0 %v140
    %443 = vmatpush.bf16.msra.mxu0 %v138
    %444 = vmatmul.bf16.gmra.mxu0 %v420
    %v445 = vpop.f32.mrf.mxu0
    %v446 = vadd.f32 0.0, %v445
    %v447 = vpop.f32.mrf.mxu0
    %v448 = vadd.f32 0.0, %v447
    %449 = vdwg.mxu0
    %450 = vmatpush.bf16.msra.mxu0 %v276
    %451 = vmatpush.bf16.msra.mxu0 %v274
    %452 = vmatpush.bf16.msra.mxu0 %v272
    %453 = vmatpush.bf16.msra.mxu0 %v270
    %454 = vmatpush.bf16.msra.mxu0 %v268
    %455 = vmatpush.bf16.msra.mxu0 %v266
    %456 = vmatpush.bf16.msra.mxu0 %v264
    %457 = vmatpush.bf16.msra.mxu0 %v262
    %458 = vmatmul.bf16.gmra.mxu0 %v420
    %v459 = vpop.f32.mrf.mxu0
    %v460 = vadd.f32 0.0, %v459
    %v461 = vpop.f32.mrf.mxu0
    %v462 = vadd.f32 0.0, %v461
    %463 = vdwg.mxu0
    %464 = vmatpush.bf16.msra.mxu0 %v277
    %465 = vmatpush.bf16.msra.mxu0 %v275
    %466 = vmatpush.bf16.msra.mxu0 %v273
    %467 = vmatpush.bf16.msra.mxu0 %v271
    %468 = vmatpush.bf16.msra.mxu0 %v269
    %469 = vmatpush.bf16.msra.mxu0 %v267
    %470 = vmatpush.bf16.msra.mxu0 %v265
    %471 = vmatpush.bf16.msra.mxu0 %v263
    %472 = vmatmul.bf16.gmra.mxu0 %v420
    %v473 = vpop.f32.mrf.mxu0
    %v474 = vadd.f32 0.0, %v473
    %v475 = vpop.f32.mrf.mxu0
    %v476 = vadd.f32 0.0, %v475
    %477 = vdwg.mxu0
    %v478 = vmax.f32 %v432, %v460
    %v479 = vmax.f32 %v446, %v474
    %v480 = vmax.f32 %v434, %v462
    %v481 = vmax.f32 %v448, %v476
    %s482 = scalar_lea.vmem %s0, 24
    %v483 = vld [vmem:[%s482] sm:$0xf]
    %v484 = vld [vmem:[%s482 + $0x4] sm:$0xf]
    %v487 = vunpack.c.l.b16 %v483
    %v488 = vunpack.c.l.b16 %v484
    %v489 = vpack.c.b16 %v488, %v487
    %491 = vmatpush.bf16.msra.mxu0 %v151
    %492 = vmatpush.bf16.msra.mxu0 %v149
    %493 = vmatpush.bf16.msra.mxu0 %v147
    %494 = vmatpush.bf16.msra.mxu0 %v145
    %495 = vmatpush.bf16.msra.mxu0 %v143
    %496 = vmatpush.bf16.msra.mxu0 %v141
    %497 = vmatpush.bf16.msra.mxu0 %v139
    %498 = vmatpush.bf16.msra.mxu0 %v137
    %499 = vmatmul.bf16.gmra.mxu0 %v489
    %v500 = vpop.f32.mrf.mxu0
    %v501 = vadd.f32 0.0, %v500
    %v502 = vpop.f32.mrf.mxu0
    %v503 = vadd.f32 0.0, %v502
    %504 = vdwg.mxu0
    %505 = vmatpush.bf16.msra.mxu0 %v152
    %506 = vmatpush.bf16.msra.mxu0 %v150
    %507 = vmatpush.bf16.msra.mxu0 %v148
    %508 = vmatpush.bf16.msra.mxu0 %v146
    %509 = vmatpush.bf16.msra.mxu0 %v144
    %510 = vmatpush.bf16.msra.mxu0 %v142
    %511 = vmatpush.bf16.msra.mxu0 %v140
    %512 = vmatpush.bf16.msra.mxu0 %v138
    %513 = vmatmul.bf16.gmra.mxu0 %v489
    %v514 = vpop.f32.mrf.mxu0
    %v515 = vadd.f32 0.0, %v514
    %v516 = vpop.f32.mrf.mxu0
    %v517 = vadd.f32 0.0, %v516
    %518 = vdwg.mxu0
    %v519 = vmax.f32 %v478, %v501
    %v520 = vmax.f32 %v479, %v515
    %v521 = vmax.f32 %v480, %v503
    %v522 = vmax.f32 %v481, %v517
    %523 = vmatpush.bf16.msra.mxu0 %v276
    %524 = vmatpush.bf16.msra.mxu0 %v274
    %525 = vmatpush.bf16.msra.mxu0 %v272
    %526 = vmatpush.bf16.msra.mxu0 %v270
    %527 = vmatpush.bf16.msra.mxu0 %v268
    %528 = vmatpush.bf16.msra.mxu0 %v266
    %529 = vmatpush.bf16.msra.mxu0 %v264
    %530 = vmatpush.bf16.msra.mxu0 %v262
    %531 = vmatmul.bf16.gmra.mxu0 %v489
    %v532 = vpop.f32.mrf.mxu0
    %v533 = vadd.f32 0.0, %v532
    %v534 = vpop.f32.mrf.mxu0
    %v535 = vadd.f32 0.0, %v534
    %536 = vdwg.mxu0
    %537 = vmatpush.bf16.msra.mxu0 %v277
    %538 = vmatpush.bf16.msra.mxu0 %v275
    %539 = vmatpush.bf16.msra.mxu0 %v273
    %540 = vmatpush.bf16.msra.mxu0 %v271
    %541 = vmatpush.bf16.msra.mxu0 %v269
    %542 = vmatpush.bf16.msra.mxu0 %v267
    %543 = vmatpush.bf16.msra.mxu0 %v265
    %544 = vmatpush.bf16.msra.mxu0 %v263
    %545 = vmatmul.bf16.gmra.mxu0 %v489
    %v546 = vpop.f32.mrf.mxu0
    %v547 = vadd.f32 0.0, %v546
    %v548 = vpop.f32.mrf.mxu0
    %v549 = vadd.f32 0.0, %v548
    %550 = vdwg.mxu0
    %v551 = vmax.f32 %v519, %v533
    %v552 = vmax.f32 %v520, %v547
    %v553 = vmax.f32 %v521, %v535
    %v554 = vmax.f32 %v522, %v549
    %v555 = vadd.f32 %v551, %v401
    %v556 = vadd.f32 %v552, %v402
    %v557 = vadd.f32 %v553, %v401
    %v558 = vadd.f32 %v554, %v402
    %v559 = vmax.f32 %v555, 0.0
    %v560 = vmax.f32 %v556, 0.0
    %v561 = vmax.f32 %v557, 0.0
    %v562 = vmax.f32 %v558, 0.0
    %563 = vst [vmem:[#allocation3] sm:$0x3] 0.0
    %564 = vst [vmem:[#allocation3 + $0x8] sm:$0x3] 0.0
    %vm569 = vcmask 1041408
    %v570 = vrot.slane %v559, 6
    %v571 = vrot.slane %v560, 6
    %v572 = vrot.slane %v561, 6
    %v573 = vsel %vm569, %v570, %v572
    %v574 = vrot.slane %v562, 6
    %v575 = vsel %vm569, %v571, %v574
    %582 = vst [vmem:[#allocation3] sm:$0xfc] %v570
    %583 = vst [vmem:[#allocation3 + $0x8] sm:$0xfc] %v571
    %584 = vst [vmem:[#allocation3 + $0x10] sm:$0xff] %v573
    %585 = vst [vmem:[#allocation3 + $0x18] sm:$0xff] %v575
    %586 = vst [vmem:[#allocation3 + $0x20] sm:$0x3] %v572
    %587 = vst [vmem:[#allocation3 + $0x28] sm:$0x3] %v574
    %588 = vst [vmem:[#allocation4] sm:$0xff] %v409
    %589 = vst [vmem:[#allocation4 + $0x8] sm:$0xff] %v410
    %590 = vst [vmem:[#allocation4 + $0x10] sm:$0xff] %v411
    %591 = vst [vmem:[#allocation4 + $0x18] sm:$0xff] %v412
    %592 = vst [vmem:[#allocation4 + $0x20] sm:$0x3] 0.0
    %593 = vst [vmem:[#allocation4 + $0x28] sm:$0x3] 0.0
    %v594 = vpack.c.bf16 %v411, %v409
    %v595 = vpack.c.bf16 %v412, %v410
    %v596 = vpack.c.bf16 %v561, %v559
    %v597 = vpack.c.bf16 %v562, %v560
    %v598 = vld [vmem:[#allocation3] sm:$0xff]
    %v599 = vld [vmem:[#allocation3 + $0x8] sm:$0xff]
    %v600 = vld [vmem:[#allocation3 + $0x10] sm:$0xff]
    %v601 = vld [vmem:[#allocation3 + $0x18] sm:$0xff]
    %v602 = vpack.c.bf16 %v600, %v598
    %v603 = vpack.c.bf16 %v601, %v599
    %v604 = vld [vmem:[#allocation4] sm:$0xfc]
    %v605 = vld [vmem:[#allocation4 + $0x8] sm:$0xfc]
    %v606 = vld [vmem:[#allocation4 + $0x10] sm:$0xff]
    %v607 = vld [vmem:[#allocation4 + $0x18] sm:$0xff]
    %v608 = vld [vmem:[#allocation4 + $0x20] sm:$0x3]
    %v609 = vld [vmem:[#allocation4 + $0x28] sm:$0x3]
    %v610 = vpack.c.bf16 %v606, %v604
    %v611 = vpack.c.bf16 %v607, %v605
    %v612 = vpack.c.bf16 %v608, %v608
    %v613 = vpack.c.bf16 %v609, %v609
    %v614 = vld [vmem:[#allocation5] sm:$0xff]
    %v615 = vld [vmem:[#allocation5 + $0x8] sm:$0xff]
    %v616 = vld [vmem:[#allocation5 + $0x10] sm:$0xff]
    %v617 = vld [vmem:[#allocation5 + $0x18] sm:$0xff]
    %v618 = vld [vmem:[#allocation5 + $0x20] sm:$0xff]
    %v619 = vld [vmem:[#allocation5 + $0x28] sm:$0xff]
    %v620 = vld [vmem:[#allocation5 + $0x30] sm:$0xff]
    %v621 = vld [vmem:[#allocation5 + $0x38] sm:$0xff]
    %v622 = vld [vmem:[#allocation5 + $0x40] sm:$0xff]
    %v623 = vld [vmem:[#allocation5 + $0x48] sm:$0xff]
    %v624 = vld [vmem:[#allocation5 + $0x50] sm:$0xff]
    %v625 = vld [vmem:[#allocation5 + $0x58] sm:$0xff]
    %v626 = vld [vmem:[#allocation5 + $0x60] sm:$0xff]
    %v627 = vld [vmem:[#allocation5 + $0x68] sm:$0xff]
    %v628 = vld [vmem:[#allocation5 + $0x70] sm:$0xff]
    %v629 = vld [vmem:[#allocation5 + $0x78] sm:$0xff]
    %v630 = vld [vmem:[#allocation5 + $0x80] sm:$0xff]
    %v631 = vld [vmem:[#allocation5 + $0x88] sm:$0xff]
    %v632 = vld [vmem:[#allocation5 + $0x90] sm:$0xff]
    %v633 = vld [vmem:[#allocation5 + $0x98] sm:$0xff]
    %v634 = vld [vmem:[#allocation5 + $0xa0] sm:$0xff]
    %v635 = vld [vmem:[#allocation5 + $0xa8] sm:$0xff]
    %v636 = vld [vmem:[#allocation5 + $0xb0] sm:$0xff]
    %v637 = vld [vmem:[#allocation5 + $0xb8] sm:$0xff]
    %v638 = vld [vmem:[#allocation5 + $0xc0] sm:$0xff]
    %v639 = vld [vmem:[#allocation5 + $0xc8] sm:$0xff]
    %v640 = vld [vmem:[#allocation5 + $0xd0] sm:$0xff]
    %v641 = vld [vmem:[#allocation5 + $0xd8] sm:$0xff]
    %v642 = vld [vmem:[#allocation5 + $0xe0] sm:$0xff]
    %v643 = vld [vmem:[#allocation5 + $0xe8] sm:$0xff]
    %v644 = vld [vmem:[#allocation5 + $0xf0] sm:$0xff]
    %v645 = vld [vmem:[#allocation5 + $0xf8] sm:$0xff]
    %s646 = scalar_lea.vmem [#allocation5], 256
    %v647 = vld [vmem:[%s646] sm:$0xff]
    %v648 = vld [vmem:[%s646 + $0x8] sm:$0xff]
    %v649 = vld [vmem:[%s646 + $0x10] sm:$0xff]
    %v650 = vld [vmem:[%s646 + $0x18] sm:$0xff]
    %v651 = vld [vmem:[%s646 + $0x20] sm:$0xff]
    %v652 = vld [vmem:[%s646 + $0x28] sm:$0xff]
    %v653 = vld [vmem:[%s646 + $0x30] sm:$0xff]
    %v654 = vld [vmem:[%s646 + $0x38] sm:$0xff]
    %v655 = vld [vmem:[%s646 + $0x40] sm:$0xff]
    %v656 = vld [vmem:[%s646 + $0x48] sm:$0xff]
    %v657 = vld [vmem:[%s646 + $0x50] sm:$0xff]
    %v658 = vld [vmem:[%s646 + $0x58] sm:$0xff]
    %v659 = vld [vmem:[%s646 + $0x60] sm:$0xff]
    %v660 = vld [vmem:[%s646 + $0x68] sm:$0xff]
    %v661 = vld [vmem:[%s646 + $0x70] sm:$0xff]
    %v662 = vld [vmem:[%s646 + $0x78] sm:$0xff]
    %v663 = vld [vmem:[%s646 + $0x80] sm:$0xff]
    %v664 = vld [vmem:[%s646 + $0x88] sm:$0xff]
    %v665 = vld [vmem:[%s646 + $0x90] sm:$0xff]
    %v666 = vld [vmem:[%s646 + $0x98] sm:$0xff]
    %v667 = vld [vmem:[%s646 + $0xa0] sm:$0xff]
    %v668 = vld [vmem:[%s646 + $0xa8] sm:$0xff]
    %v669 = vld [vmem:[%s646 + $0xb0] sm:$0xff]
    %v670 = vld [vmem:[%s646 + $0xb8] sm:$0xff]
    %v671 = vld [vmem:[%s646 + $0xc0] sm:$0xff]
    %v672 = vld [vmem:[%s646 + $0xc8] sm:$0xff]
    %v673 = vld [vmem:[%s646 + $0xd0] sm:$0xff]
    %v674 = vld [vmem:[%s646 + $0xd8] sm:$0xff]
    %v675 = vld [vmem:[%s646 + $0xe0] sm:$0xff]
    %v676 = vld [vmem:[%s646 + $0xe8] sm:$0xff]
    %v677 = vld [vmem:[%s646 + $0xf0] sm:$0xff]
    %v678 = vld [vmem:[%s646 + $0xf8] sm:$0xff]
    %s679 = scalar_lea.vmem [#allocation5], 512
    %v680 = vld [vmem:[%s679] sm:$0xff]
    %v681 = vld [vmem:[%s679 + $0x8] sm:$0xff]
    %v682 = vld [vmem:[%s679 + $0x10] sm:$0xff]
    %v683 = vld [vmem:[%s679 + $0x18] sm:$0xff]
    %v684 = vld [vmem:[%s679 + $0x20] sm:$0xff]
    %v685 = vld [vmem:[%s679 + $0x28] sm:$0xff]
    %v686 = vld [vmem:[%s679 + $0x30] sm:$0xff]
    %v687 = vld [vmem:[%s679 + $0x38] sm:$0xff]
    %v688 = vld [vmem:[%s679 + $0x40] sm:$0xff]
    %v689 = vld [vmem:[%s679 + $0x48] sm:$0xff]
    %v690 = vld [vmem:[%s679 + $0x50] sm:$0xff]
    %v691 = vld [vmem:[%s679 + $0x58] sm:$0xff]
    %v692 = vld [vmem:[%s679 + $0x60] sm:$0xff]
    %v693 = vld [vmem:[%s679 + $0x68] sm:$0xff]
    %v694 = vld [vmem:[%s679 + $0x70] sm:$0xff]
    %v695 = vld [vmem:[%s679 + $0x78] sm:$0xff]
    %v696 = vld [vmem:[%s679 + $0x80] sm:$0xff]
    %v697 = vld [vmem:[%s679 + $0x88] sm:$0xff]
    %v698 = vld [vmem:[%s679 + $0x90] sm:$0xff]
    %v699 = vld [vmem:[%s679 + $0x98] sm:$0xff]
    %v700 = vld [vmem:[%s679 + $0xa0] sm:$0xff]
    %v701 = vld [vmem:[%s679 + $0xa8] sm:$0xff]
    %v702 = vld [vmem:[%s679 + $0xb0] sm:$0xff]
    %v703 = vld [vmem:[%s679 + $0xb8] sm:$0xff]
    %v704 = vld [vmem:[%s679 + $0xc0] sm:$0xff]
    %v705 = vld [vmem:[%s679 + $0xc8] sm:$0xff]
    %v706 = vld [vmem:[%s679 + $0xd0] sm:$0xff]
    %v707 = vld [vmem:[%s679 + $0xd8] sm:$0xff]
    %v708 = vld [vmem:[%s679 + $0xe0] sm:$0xff]
    %v709 = vld [vmem:[%s679 + $0xe8] sm:$0xff]
    %v710 = vld [vmem:[%s679 + $0xf0] sm:$0xff]
    %v711 = vld [vmem:[%s679 + $0xf8] sm:$0xff]
    %v744 = vunpack.c.l.b16 %v680
    %v745 = vunpack.c.h.b16 %v680
    %v746 = vunpack.c.l.b16 %v681
    %v747 = vunpack.c.h.b16 %v681
    %v748 = vunpack.c.l.b16 %v682
    %v749 = vunpack.c.h.b16 %v682
    %v750 = vunpack.c.l.b16 %v683
    %v751 = vunpack.c.h.b16 %v683
    %v752 = vunpack.c.l.b16 %v684
    %v753 = vunpack.c.h.b16 %v684
    %v754 = vunpack.c.l.b16 %v685
    %v755 = vunpack.c.h.b16 %v685
    %v756 = vunpack.c.l.b16 %v686
    %v757 = vunpack.c.h.b16 %v686
    %v758 = vunpack.c.l.b16 %v687
    %v759 = vunpack.c.h.b16 %v687
    %v760 = vunpack.c.l.b16 %v688
    %v761 = vunpack.c.h.b16 %v688
    %v762 = vunpack.c.l.b16 %v689
    %v763 = vunpack.c.h.b16 %v689
    %v764 = vunpack.c.l.b16 %v690
    %v765 = vunpack.c.h.b16 %v690
    %v766 = vunpack.c.l.b16 %v691
    %v767 = vunpack.c.h.b16 %v691
    %v768 = vunpack.c.l.b16 %v692
    %v769 = vunpack.c.h.b16 %v692
    %v770 = vunpack.c.l.b16 %v693
    %v771 = vunpack.c.h.b16 %v693
    %v772 = vunpack.c.l.b16 %v694
    %v773 = vunpack.c.h.b16 %v694
    %v774 = vunpack.c.l.b16 %v695
    %v775 = vunpack.c.h.b16 %v695
    %v776 = vunpack.c.l.b16 %v696
    %v777 = vunpack.c.h.b16 %v696
    %v778 = vunpack.c.l.b16 %v697
    %v779 = vunpack.c.h.b16 %v697
    %v780 = vunpack.c.l.b16 %v698
    %v781 = vunpack.c.h.b16 %v698
    %v782 = vunpack.c.l.b16 %v699
    %v783 = vunpack.c.h.b16 %v699
    %v784 = vunpack.c.l.b16 %v700
    %v785 = vunpack.c.h.b16 %v700
    %v786 = vunpack.c.l.b16 %v701
    %v787 = vunpack.c.h.b16 %v701
    %v788 = vunpack.c.l.b16 %v702
    %v789 = vunpack.c.h.b16 %v702
    %v790 = vunpack.c.l.b16 %v703
    %v791 = vunpack.c.h.b16 %v703
    %v792 = vunpack.c.l.b16 %v704
    %v793 = vunpack.c.h.b16 %v704
    %v794 = vunpack.c.l.b16 %v705
    %v795 = vunpack.c.h.b16 %v705
    %v796 = vunpack.c.l.b16 %v706
    %v797 = vunpack.c.h.b16 %v706
    %v798 = vunpack.c.l.b16 %v707
    %v799 = vunpack.c.h.b16 %v707
    %v800 = vunpack.c.l.b16 %v708
    %v801 = vunpack.c.h.b16 %v708
    %v802 = vunpack.c.l.b16 %v709
    %v803 = vunpack.c.h.b16 %v709
    %v804 = vunpack.c.l.b16 %v710
    %v805 = vunpack.c.h.b16 %v710
    %v806 = vunpack.c.l.b16 %v711
    %v807 = vunpack.c.h.b16 %v711
    %v808 = vpack.c.b16 %v746, %v744
    %v809 = vpack.c.b16 %v747, %v745
    %v810 = vpack.c.b16 %v750, %v748
    %v811 = vpack.c.b16 %v751, %v749
    %v812 = vpack.c.b16 %v754, %v752
    %v813 = vpack.c.b16 %v755, %v753
    %v814 = vpack.c.b16 %v758, %v756
    %v815 = vpack.c.b16 %v759, %v757
    %v816 = vpack.c.b16 %v762, %v760
    %v817 = vpack.c.b16 %v763, %v761
    %v818 = vpack.c.b16 %v766, %v764
    %v819 = vpack.c.b16 %v767, %v765
    %v820 = vpack.c.b16 %v770, %v768
    %v821 = vpack.c.b16 %v771, %v769
    %v822 = vpack.c.b16 %v774, %v772
    %v823 = vpack.c.b16 %v775, %v773
    %v824 = vpack.c.b16 %v778, %v776
    %v825 = vpack.c.b16 %v779, %v777
    %v826 = vpack.c.b16 %v782, %v780
    %v827 = vpack.c.b16 %v783, %v781
    %v828 = vpack.c.b16 %v786, %v784
    %v829 = vpack.c.b16 %v787, %v785
    %v830 = vpack.c.b16 %v790, %v788
    %v831 = vpack.c.b16 %v791, %v789
    %v832 = vpack.c.b16 %v794, %v792
    %v833 = vpack.c.b16 %v795, %v793
    %v834 = vpack.c.b16 %v798, %v796
    %v835 = vpack.c.b16 %v799, %v797
    %v836 = vpack.c.b16 %v802, %v800
    %v837 = vpack.c.b16 %v803, %v801
    %v838 = vpack.c.b16 %v806, %v804
    %v839 = vpack.c.b16 %v807, %v805
    %872 = vmatpush.bf16.msra.mxu0 %v822
    %873 = vmatpush.bf16.msra.mxu0 %v820
    %874 = vmatpush.bf16.msra.mxu0 %v818
    %875 = vmatpush.bf16.msra.mxu0 %v816
    %876 = vmatpush.bf16.msra.mxu0 %v814
    %877 = vmatpush.bf16.msra.mxu0 %v812
    %878 = vmatpush.bf16.msra.mxu0 %v810
    %879 = vmatpush.bf16.msra.mxu0 %v808
    %880 = vmatmul.bf16.gmra.mxu0 %v594
    %v881 = vpop.f32.mrf.mxu0
    %v882 = vadd.f32 0.0, %v881
    %v883 = vpop.f32.mrf.mxu0
    %v884 = vadd.f32 0.0, %v883
    %885 = vdwg.mxu0
    %886 = vmatpush.bf16.msra.mxu0 %v838
    %887 = vmatpush.bf16.msra.mxu0 %v836
    %888 = vmatpush.bf16.msra.mxu0 %v834
    %889 = vmatpush.bf16.msra.mxu0 %v832
    %890 = vmatpush.bf16.msra.mxu0 %v830
    %891 = vmatpush.bf16.msra.mxu0 %v828
    %892 = vmatpush.bf16.msra.mxu0 %v826
    %893 = vmatpush.bf16.msra.mxu0 %v824
    %894 = vmatmul.bf16.gmra.mxu0 %v595
    %v895 = vpop.f32.mrf.mxu0
    %v896 = vadd.f32 %v882, %v895
    %v897 = vpop.f32.mrf.mxu0
    %v898 = vadd.f32 %v884, %v897
    %899 = vdwg.mxu0
    %900 = vmatpush.bf16.msra.mxu0 %v823
    %901 = vmatpush.bf16.msra.mxu0 %v821
    %902 = vmatpush.bf16.msra.mxu0 %v819
    %903 = vmatpush.bf16.msra.mxu0 %v817
    %904 = vmatpush.bf16.msra.mxu0 %v815
    %905 = vmatpush.bf16.msra.mxu0 %v813
    %906 = vmatpush.bf16.msra.mxu0 %v811
    %907 = vmatpush.bf16.msra.mxu0 %v809
    %908 = vmatmul.bf16.gmra.mxu0 %v594
    %v909 = vpop.f32.mrf.mxu0
    %v910 = vadd.f32 0.0, %v909
    %v911 = vpop.f32.mrf.mxu0
    %v912 = vadd.f32 0.0, %v911
    %913 = vdwg.mxu0
    %914 = vmatpush.bf16.msra.mxu0 %v839
    %915 = vmatpush.bf16.msra.mxu0 %v837
    %916 = vmatpush.bf16.msra.mxu0 %v835
    %917 = vmatpush.bf16.msra.mxu0 %v833
    %918 = vmatpush.bf16.msra.mxu0 %v831
    %919 = vmatpush.bf16.msra.mxu0 %v829
    %920 = vmatpush.bf16.msra.mxu0 %v827
    %921 = vmatpush.bf16.msra.mxu0 %v825
    %922 = vmatmul.bf16.gmra.mxu0 %v595
    %v923 = vpop.f32.mrf.mxu0
    %v924 = vadd.f32 %v910, %v923
    %v925 = vpop.f32.mrf.mxu0
    %v926 = vadd.f32 %v912, %v925
    %927 = vdwg.mxu0
    %v960 = vunpack.c.l.b16 %v614
    %v961 = vunpack.c.h.b16 %v614
    %v962 = vunpack.c.l.b16 %v615
    %v963 = vunpack.c.h.b16 %v615
    %v964 = vunpack.c.l.b16 %v616
    %v965 = vunpack.c.h.b16 %v616
    %v966 = vunpack.c.l.b16 %v617
    %v967 = vunpack.c.h.b16 %v617
    %v968 = vunpack.c.l.b16 %v618
    %v969 = vunpack.c.h.b16 %v618
    %v970 = vunpack.c.l.b16 %v619
    %v971 = vunpack.c.h.b16 %v619
    %v972 = vunpack.c.l.b16 %v620
    %v973 = vunpack.c.h.b16 %v620
    %v974 = vunpack.c.l.b16 %v621
    %v975 = vunpack.c.h.b16 %v621
    %v976 = vunpack.c.l.b16 %v622
    %v977 = vunpack.c.h.b16 %v622
    %v978 = vunpack.c.l.b16 %v623
    %v979 = vunpack.c.h.b16 %v623
    %v980 = vunpack.c.l.b16 %v624
    %v981 = vunpack.c.h.b16 %v624
    %v982 = vunpack.c.l.b16 %v625
    %v983 = vunpack.c.h.b16 %v625
    %v984 = vunpack.c.l.b16 %v626
    %v985 = vunpack.c.h.b16 %v626
    %v986 = vunpack.c.l.b16 %v627
    %v987 = vunpack.c.h.b16 %v627
    %v988 = vunpack.c.l.b16 %v628
    %v989 = vunpack.c.h.b16 %v628
    %v990 = vunpack.c.l.b16 %v629
    %v991 = vunpack.c.h.b16 %v629
    %v992 = vunpack.c.l.b16 %v630
    %v993 = vunpack.c.h.b16 %v630
    %v994 = vunpack.c.l.b16 %v631
    %v995 = vunpack.c.h.b16 %v631
    %v996 = vunpack.c.l.b16 %v632
    %v997 = vunpack.c.h.b16 %v632
    %v998 = vunpack.c.l.b16 %v633
    %v999 = vunpack.c.h.b16 %v633
    %v1000 = vunpack.c.l.b16 %v634
    %v1001 = vunpack.c.h.b16 %v634
    %v1002 = vunpack.c.l.b16 %v635
    %v1003 = vunpack.c.h.b16 %v635
    %v1004 = vunpack.c.l.b16 %v636
    %v1005 = vunpack.c.h.b16 %v636
    %v1006 = vunpack.c.l.b16 %v637
    %v1007 = vunpack.c.h.b16 %v637
    %v1008 = vunpack.c.l.b16 %v638
    %v1009 = vunpack.c.h.b16 %v638
    %v1010 = vunpack.c.l.b16 %v639
    %v1011 = vunpack.c.h.b16 %v639
    %v1012 = vunpack.c.l.b16 %v640
    %v1013 = vunpack.c.h.b16 %v640
    %v1014 = vunpack.c.l.b16 %v641
    %v1015 = vunpack.c.h.b16 %v641
    %v1016 = vunpack.c.l.b16 %v642
    %v1017 = vunpack.c.h.b16 %v642
    %v1018 = vunpack.c.l.b16 %v643
    %v1019 = vunpack.c.h.b16 %v643
    %v1020 = vunpack.c.l.b16 %v644
    %v1021 = vunpack.c.h.b16 %v644
    %v1022 = vunpack.c.l.b16 %v645
    %v1023 = vunpack.c.h.b16 %v645
    %v1024 = vpack.c.b16 %v962, %v960
    %v1025 = vpack.c.b16 %v963, %v961
    %v1026 = vpack.c.b16 %v966, %v964
    %v1027 = vpack.c.b16 %v967, %v965
    %v1028 = vpack.c.b16 %v970, %v968
    %v1029 = vpack.c.b16 %v971, %v969
    %v1030 = vpack.c.b16 %v974, %v972
    %v1031 = vpack.c.b16 %v975, %v973
    %v1032 = vpack.c.b16 %v978, %v976
    %v1033 = vpack.c.b16 %v979, %v977
    %v1034 = vpack.c.b16 %v982, %v980
    %v1035 = vpack.c.b16 %v983, %v981
    %v1036 = vpack.c.b16 %v986, %v984
    %v1037 = vpack.c.b16 %v987, %v985
    %v1038 = vpack.c.b16 %v990, %v988
    %v1039 = vpack.c.b16 %v991, %v989
    %v1040 = vpack.c.b16 %v994, %v992
    %v1041 = vpack.c.b16 %v995, %v993
    %v1042 = vpack.c.b16 %v998, %v996
    %v1043 = vpack.c.b16 %v999, %v997
    %v1044 = vpack.c.b16 %v1002, %v1000
    %v1045 = vpack.c.b16 %v1003, %v1001
    %v1046 = vpack.c.b16 %v1006, %v1004
    %v1047 = vpack.c.b16 %v1007, %v1005
    %v1048 = vpack.c.b16 %v1010, %v1008
    %v1049 = vpack.c.b16 %v1011, %v1009
    %v1050 = vpack.c.b16 %v1014, %v1012
    %v1051 = vpack.c.b16 %v1015, %v1013
    %v1052 = vpack.c.b16 %v1018, %v1016
    %v1053 = vpack.c.b16 %v1019, %v1017
    %v1054 = vpack.c.b16 %v1022, %v1020
    %v1055 = vpack.c.b16 %v1023, %v1021
    %1088 = vmatpush.bf16.msra.mxu0 %v1038
    %1089 = vmatpush.bf16.msra.mxu0 %v1036
    %1090 = vmatpush.bf16.msra.mxu0 %v1034
    %1091 = vmatpush.bf16.msra.mxu0 %v1032
    %1092 = vmatpush.bf16.msra.mxu0 %v1030
    %1093 = vmatpush.bf16.msra.mxu0 %v1028
    %1094 = vmatpush.bf16.msra.mxu0 %v1026
    %1095 = vmatpush.bf16.msra.mxu0 %v1024
    %1096 = vmatmul.bf16.gmra.mxu0 %v602
    %v1097 = vpop.f32.mrf.mxu0
    %v1098 = vadd.f32 %v896, %v1097
    %v1099 = vpop.f32.mrf.mxu0
    %v1100 = vadd.f32 %v898, %v1099
    %1101 = vdwg.mxu0
    %1102 = vmatpush.bf16.msra.mxu0 %v1054
    %1103 = vmatpush.bf16.msra.mxu0 %v1052
    %1104 = vmatpush.bf16.msra.mxu0 %v1050
    %1105 = vmatpush.bf16.msra.mxu0 %v1048
    %1106 = vmatpush.bf16.msra.mxu0 %v1046
    %1107 = vmatpush.bf16.msra.mxu0 %v1044
    %1108 = vmatpush.bf16.msra.mxu0 %v1042
    %1109 = vmatpush.bf16.msra.mxu0 %v1040
    %1110 = vmatmul.bf16.gmra.mxu0 %v603
    %v1111 = vpop.f32.mrf.mxu0
    %v1112 = vadd.f32 %v1098, %v1111
    %v1113 = vpop.f32.mrf.mxu0
    %v1114 = vadd.f32 %v1100, %v1113
    %1115 = vdwg.mxu0
    %1116 = vmatpush.bf16.msra.mxu0 %v1039
    %1117 = vmatpush.bf16.msra.mxu0 %v1037
    %1118 = vmatpush.bf16.msra.mxu0 %v1035
    %1119 = vmatpush.bf16.msra.mxu0 %v1033
    %1120 = vmatpush.bf16.msra.mxu0 %v1031
    %1121 = vmatpush.bf16.msra.mxu0 %v1029
    %1122 = vmatpush.bf16.msra.mxu0 %v1027
    %1123 = vmatpush.bf16.msra.mxu0 %v1025
    %1124 = vmatmul.bf16.gmra.mxu0 %v602
    %v1125 = vpop.f32.mrf.mxu0
    %v1126 = vadd.f32 %v924, %v1125
    %v1127 = vpop.f32.mrf.mxu0
    %v1128 = vadd.f32 %v926, %v1127
    %1129 = vdwg.mxu0
    %1130 = vmatpush.bf16.msra.mxu0 %v1055
    %1131 = vmatpush.bf16.msra.mxu0 %v1053
    %1132 = vmatpush.bf16.msra.mxu0 %v1051
    %1133 = vmatpush.bf16.msra.mxu0 %v1049
    %1134 = vmatpush.bf16.msra.mxu0 %v1047
    %1135 = vmatpush.bf16.msra.mxu0 %v1045
    %1136 = vmatpush.bf16.msra.mxu0 %v1043
    %1137 = vmatpush.bf16.msra.mxu0 %v1041
    %1138 = vmatmul.bf16.gmra.mxu0 %v603
    %v1139 = vpop.f32.mrf.mxu0
    %v1140 = vadd.f32 %v1126, %v1139
    %v1141 = vpop.f32.mrf.mxu0
    %v1142 = vadd.f32 %v1128, %v1141
    %1143 = vdwg.mxu0
    %s1144 = scalar_lea.vmem [#allocation5], 768
    %v1145 = vld [vmem:[%s1144] sm:$0xff]
    %v1146 = vld [vmem:[%s1144 + $0x8] sm:$0xff]
    %v1147 = vld [vmem:[%s1144 + $0x10] sm:$0xff]
    %v1148 = vld [vmem:[%s1144 + $0x18] sm:$0xff]
    %v1149 = vld [vmem:[%s1144 + $0x20] sm:$0xff]
    %v1150 = vld [vmem:[%s1144 + $0x28] sm:$0xff]
    %v1151 = vld [vmem:[%s1144 + $0x30] sm:$0xff]
    %v1152 = vld [vmem:[%s1144 + $0x38] sm:$0xff]
    %v1153 = vld [vmem:[%s1144 + $0x40] sm:$0xff]
    %v1154 = vld [vmem:[%s1144 + $0x48] sm:$0xff]
    %v1155 = vld [vmem:[%s1144 + $0x50] sm:$0xff]
    %v1156 = vld [vmem:[%s1144 + $0x58] sm:$0xff]
    %v1157 = vld [vmem:[%s1144 + $0x60] sm:$0xff]
    %v1158 = vld [vmem:[%s1144 + $0x68] sm:$0xff]
    %v1159 = vld [vmem:[%s1144 + $0x70] sm:$0xff]
    %v1160 = vld [vmem:[%s1144 + $0x78] sm:$0xff]
    %v1161 = vld [vmem:[%s1144 + $0x80] sm:$0xff]
    %v1162 = vld [vmem:[%s1144 + $0x88] sm:$0xff]
    %v1163 = vld [vmem:[%s1144 + $0x90] sm:$0xff]
    %v1164 = vld [vmem:[%s1144 + $0x98] sm:$0xff]
    %v1165 = vld [vmem:[%s1144 + $0xa0] sm:$0xff]
    %v1166 = vld [vmem:[%s1144 + $0xa8] sm:$0xff]
    %v1167 = vld [vmem:[%s1144 + $0xb0] sm:$0xff]
    %v1168 = vld [vmem:[%s1144 + $0xb8] sm:$0xff]
    %v1169 = vld [vmem:[%s1144 + $0xc0] sm:$0xff]
    %v1170 = vld [vmem:[%s1144 + $0xc8] sm:$0xff]
    %v1171 = vld [vmem:[%s1144 + $0xd0] sm:$0xff]
    %v1172 = vld [vmem:[%s1144 + $0xd8] sm:$0xff]
    %v1173 = vld [vmem:[%s1144 + $0xe0] sm:$0xff]
    %v1174 = vld [vmem:[%s1144 + $0xe8] sm:$0xff]
    %v1175 = vld [vmem:[%s1144 + $0xf0] sm:$0xff]
    %v1176 = vld [vmem:[%s1144 + $0xf8] sm:$0xff]
    %v1209 = vunpack.c.l.b16 %v1145
    %v1210 = vunpack.c.h.b16 %v1145
    %v1211 = vunpack.c.l.b16 %v1146
    %v1212 = vunpack.c.h.b16 %v1146
    %v1213 = vunpack.c.l.b16 %v1147
    %v1214 = vunpack.c.h.b16 %v1147
    %v1215 = vunpack.c.l.b16 %v1148
    %v1216 = vunpack.c.h.b16 %v1148
    %v1217 = vunpack.c.l.b16 %v1149
    %v1218 = vunpack.c.h.b16 %v1149
    %v1219 = vunpack.c.l.b16 %v1150
    %v1220 = vunpack.c.h.b16 %v1150
    %v1221 = vunpack.c.l.b16 %v1151
    %v1222 = vunpack.c.h.b16 %v1151
    %v1223 = vunpack.c.l.b16 %v1152
    %v1224 = vunpack.c.h.b16 %v1152
    %v1225 = vunpack.c.l.b16 %v1153
    %v1226 = vunpack.c.h.b16 %v1153
    %v1227 = vunpack.c.l.b16 %v1154
    %v1228 = vunpack.c.h.b16 %v1154
    %v1229 = vunpack.c.l.b16 %v1155
    %v1230 = vunpack.c.h.b16 %v1155
    %v1231 = vunpack.c.l.b16 %v1156
    %v1232 = vunpack.c.h.b16 %v1156
    %v1233 = vunpack.c.l.b16 %v1157
    %v1234 = vunpack.c.h.b16 %v1157
    %v1235 = vunpack.c.l.b16 %v1158
    %v1236 = vunpack.c.h.b16 %v1158
    %v1237 = vunpack.c.l.b16 %v1159
    %v1238 = vunpack.c.h.b16 %v1159
    %v1239 = vunpack.c.l.b16 %v1160
    %v1240 = vunpack.c.h.b16 %v1160
    %v1241 = vunpack.c.l.b16 %v1161
    %v1242 = vunpack.c.h.b16 %v1161
    %v1243 = vunpack.c.l.b16 %v1162
    %v1244 = vunpack.c.h.b16 %v1162
    %v1245 = vunpack.c.l.b16 %v1163
    %v1246 = vunpack.c.h.b16 %v1163
    %v1247 = vunpack.c.l.b16 %v1164
    %v1248 = vunpack.c.h.b16 %v1164
    %v1249 = vunpack.c.l.b16 %v1165
    %v1250 = vunpack.c.h.b16 %v1165
    %v1251 = vunpack.c.l.b16 %v1166
    %v1252 = vunpack.c.h.b16 %v1166
    %v1253 = vunpack.c.l.b16 %v1167
    %v1254 = vunpack.c.h.b16 %v1167
    %v1255 = vunpack.c.l.b16 %v1168
    %v1256 = vunpack.c.h.b16 %v1168
    %v1257 = vunpack.c.l.b16 %v1169
    %v1258 = vunpack.c.h.b16 %v1169
    %v1259 = vunpack.c.l.b16 %v1170
    %v1260 = vunpack.c.h.b16 %v1170
    %v1261 = vunpack.c.l.b16 %v1171
    %v1262 = vunpack.c.h.b16 %v1171
    %v1263 = vunpack.c.l.b16 %v1172
    %v1264 = vunpack.c.h.b16 %v1172
    %v1265 = vunpack.c.l.b16 %v1173
    %v1266 = vunpack.c.h.b16 %v1173
    %v1267 = vunpack.c.l.b16 %v1174
    %v1268 = vunpack.c.h.b16 %v1174
    %v1269 = vunpack.c.l.b16 %v1175
    %v1270 = vunpack.c.h.b16 %v1175
    %v1271 = vunpack.c.l.b16 %v1176
    %v1272 = vunpack.c.h.b16 %v1176
    %v1273 = vpack.c.b16 %v1211, %v1209
    %v1274 = vpack.c.b16 %v1212, %v1210
    %v1275 = vpack.c.b16 %v1215, %v1213
    %v1276 = vpack.c.b16 %v1216, %v1214
    %v1277 = vpack.c.b16 %v1219, %v1217
    %v1278 = vpack.c.b16 %v1220, %v1218
    %v1279 = vpack.c.b16 %v1223, %v1221
    %v1280 = vpack.c.b16 %v1224, %v1222
    %v1281 = vpack.c.b16 %v1227, %v1225
    %v1282 = vpack.c.b16 %v1228, %v1226
    %v1283 = vpack.c.b16 %v1231, %v1229
    %v1284 = vpack.c.b16 %v1232, %v1230
    %v1285 = vpack.c.b16 %v1235, %v1233
    %v1286 = vpack.c.b16 %v1236, %v1234
    %v1287 = vpack.c.b16 %v1239, %v1237
    %v1288 = vpack.c.b16 %v1240, %v1238
    %v1289 = vpack.c.b16 %v1243, %v1241
    %v1290 = vpack.c.b16 %v1244, %v1242
    %v1291 = vpack.c.b16 %v1247, %v1245
    %v1292 = vpack.c.b16 %v1248, %v1246
    %v1293 = vpack.c.b16 %v1251, %v1249
    %v1294 = vpack.c.b16 %v1252, %v1250
    %v1295 = vpack.c.b16 %v1255, %v1253
    %v1296 = vpack.c.b16 %v1256, %v1254
    %v1297 = vpack.c.b16 %v1259, %v1257
    %v1298 = vpack.c.b16 %v1260, %v1258
    %v1299 = vpack.c.b16 %v1263, %v1261
    %v1300 = vpack.c.b16 %v1264, %v1262
    %v1301 = vpack.c.b16 %v1267, %v1265
    %v1302 = vpack.c.b16 %v1268, %v1266
    %v1303 = vpack.c.b16 %v1271, %v1269
    %v1304 = vpack.c.b16 %v1272, %v1270
    %1337 = vmatpush.bf16.msra.mxu0 %v1287
    %1338 = vmatpush.bf16.msra.mxu0 %v1285
    %1339 = vmatpush.bf16.msra.mxu0 %v1283
    %1340 = vmatpush.bf16.msra.mxu0 %v1281
    %1341 = vmatpush.bf16.msra.mxu0 %v1279
    %1342 = vmatpush.bf16.msra.mxu0 %v1277
    %1343 = vmatpush.bf16.msra.mxu0 %v1275
    %1344 = vmatpush.bf16.msra.mxu0 %v1273
    %1345 = vmatmul.bf16.gmra.mxu0 %v594
    %v1346 = vpop.f32.mrf.mxu0
    %v1347 = vadd.f32 0.0, %v1346
    %v1348 = vpop.f32.mrf.mxu0
    %v1349 = vadd.f32 0.0, %v1348
    %1350 = vdwg.mxu0
    %1351 = vmatpush.bf16.msra.mxu0 %v1303
    %1352 = vmatpush.bf16.msra.mxu0 %v1301
    %1353 = vmatpush.bf16.msra.mxu0 %v1299
    %1354 = vmatpush.bf16.msra.mxu0 %v1297
    %1355 = vmatpush.bf16.msra.mxu0 %v1295
    %1356 = vmatpush.bf16.msra.mxu0 %v1293
    %1357 = vmatpush.bf16.msra.mxu0 %v1291
    %1358 = vmatpush.bf16.msra.mxu0 %v1289
    %1359 = vmatmul.bf16.gmra.mxu0 %v595
    %v1360 = vpop.f32.mrf.mxu0
    %v1361 = vadd.f32 %v1347, %v1360
    %v1362 = vpop.f32.mrf.mxu0
    %v1363 = vadd.f32 %v1349, %v1362
    %1364 = vdwg.mxu0
    %1365 = vmatpush.bf16.msra.mxu0 %v1288
    %1366 = vmatpush.bf16.msra.mxu0 %v1286
    %1367 = vmatpush.bf16.msra.mxu0 %v1284
    %1368 = vmatpush.bf16.msra.mxu0 %v1282
    %1369 = vmatpush.bf16.msra.mxu0 %v1280
    %1370 = vmatpush.bf16.msra.mxu0 %v1278
    %1371 = vmatpush.bf16.msra.mxu0 %v1276
    %1372 = vmatpush.bf16.msra.mxu0 %v1274
    %1373 = vmatmul.bf16.gmra.mxu0 %v594
    %v1374 = vpop.f32.mrf.mxu0
    %v1375 = vadd.f32 0.0, %v1374
    %v1376 = vpop.f32.mrf.mxu0
    %v1377 = vadd.f32 0.0, %v1376
    %1378 = vdwg.mxu0
    %1379 = vmatpush.bf16.msra.mxu0 %v1304
    %1380 = vmatpush.bf16.msra.mxu0 %v1302
    %1381 = vmatpush.bf16.msra.mxu0 %v1300
    %1382 = vmatpush.bf16.msra.mxu0 %v1298
    %1383 = vmatpush.bf16.msra.mxu0 %v1296
    %1384 = vmatpush.bf16.msra.mxu0 %v1294
    %1385 = vmatpush.bf16.msra.mxu0 %v1292
    %1386 = vmatpush.bf16.msra.mxu0 %v1290
    %1387 = vmatmul.bf16.gmra.mxu0 %v595
    %v1388 = vpop.f32.mrf.mxu0
    %v1389 = vadd.f32 %v1375, %v1388
    %v1390 = vpop.f32.mrf.mxu0
    %v1391 = vadd.f32 %v1377, %v1390
    %1392 = vdwg.mxu0
    %v1425 = vunpack.c.l.b16 %v647
    %v1426 = vunpack.c.h.b16 %v647
    %v1427 = vunpack.c.l.b16 %v648
    %v1428 = vunpack.c.h.b16 %v648
    %v1429 = vunpack.c.l.b16 %v649
    %v1430 = vunpack.c.h.b16 %v649
    %v1431 = vunpack.c.l.b16 %v650
    %v1432 = vunpack.c.h.b16 %v650
    %v1433 = vunpack.c.l.b16 %v651
    %v1434 = vunpack.c.h.b16 %v651
    %v1435 = vunpack.c.l.b16 %v652
    %v1436 = vunpack.c.h.b16 %v652
    %v1437 = vunpack.c.l.b16 %v653
    %v1438 = vunpack.c.h.b16 %v653
    %v1439 = vunpack.c.l.b16 %v654
    %v1440 = vunpack.c.h.b16 %v654
    %v1441 = vunpack.c.l.b16 %v655
    %v1442 = vunpack.c.h.b16 %v655
    %v1443 = vunpack.c.l.b16 %v656
    %v1444 = vunpack.c.h.b16 %v656
    %v1445 = vunpack.c.l.b16 %v657
    %v1446 = vunpack.c.h.b16 %v657
    %v1447 = vunpack.c.l.b16 %v658
    %v1448 = vunpack.c.h.b16 %v658
    %v1449 = vunpack.c.l.b16 %v659
    %v1450 = vunpack.c.h.b16 %v659
    %v1451 = vunpack.c.l.b16 %v660
    %v1452 = vunpack.c.h.b16 %v660
    %v1453 = vunpack.c.l.b16 %v661
    %v1454 = vunpack.c.h.b16 %v661
    %v1455 = vunpack.c.l.b16 %v662
    %v1456 = vunpack.c.h.b16 %v662
    %v1457 = vunpack.c.l.b16 %v663
    %v1458 = vunpack.c.h.b16 %v663
    %v1459 = vunpack.c.l.b16 %v664
    %v1460 = vunpack.c.h.b16 %v664
    %v1461 = vunpack.c.l.b16 %v665
    %v1462 = vunpack.c.h.b16 %v665
    %v1463 = vunpack.c.l.b16 %v666
    %v1464 = vunpack.c.h.b16 %v666
    %v1465 = vunpack.c.l.b16 %v667
    %v1466 = vunpack.c.h.b16 %v667
    %v1467 = vunpack.c.l.b16 %v668
    %v1468 = vunpack.c.h.b16 %v668
    %v1469 = vunpack.c.l.b16 %v669
    %v1470 = vunpack.c.h.b16 %v669
    %v1471 = vunpack.c.l.b16 %v670
    %v1472 = vunpack.c.h.b16 %v670
    %v1473 = vunpack.c.l.b16 %v671
    %v1474 = vunpack.c.h.b16 %v671
    %v1475 = vunpack.c.l.b16 %v672
    %v1476 = vunpack.c.h.b16 %v672
    %v1477 = vunpack.c.l.b16 %v673
    %v1478 = vunpack.c.h.b16 %v673
    %v1479 = vunpack.c.l.b16 %v674
    %v1480 = vunpack.c.h.b16 %v674
    %v1481 = vunpack.c.l.b16 %v675
    %v1482 = vunpack.c.h.b16 %v675
    %v1483 = vunpack.c.l.b16 %v676
    %v1484 = vunpack.c.h.b16 %v676
    %v1485 = vunpack.c.l.b16 %v677
    %v1486 = vunpack.c.h.b16 %v677
    %v1487 = vunpack.c.l.b16 %v678
    %v1488 = vunpack.c.h.b16 %v678
    %v1489 = vpack.c.b16 %v1427, %v1425
    %v1490 = vpack.c.b16 %v1428, %v1426
    %v1491 = vpack.c.b16 %v1431, %v1429
    %v1492 = vpack.c.b16 %v1432, %v1430
    %v1493 = vpack.c.b16 %v1435, %v1433
    %v1494 = vpack.c.b16 %v1436, %v1434
    %v1495 = vpack.c.b16 %v1439, %v1437
    %v1496 = vpack.c.b16 %v1440, %v1438
    %v1497 = vpack.c.b16 %v1443, %v1441
    %v1498 = vpack.c.b16 %v1444, %v1442
    %v1499 = vpack.c.b16 %v1447, %v1445
    %v1500 = vpack.c.b16 %v1448, %v1446
    %v1501 = vpack.c.b16 %v1451, %v1449
    %v1502 = vpack.c.b16 %v1452, %v1450
    %v1503 = vpack.c.b16 %v1455, %v1453
    %v1504 = vpack.c.b16 %v1456, %v1454
    %v1505 = vpack.c.b16 %v1459, %v1457
    %v1506 = vpack.c.b16 %v1460, %v1458
    %v1507 = vpack.c.b16 %v1463, %v1461
    %v1508 = vpack.c.b16 %v1464, %v1462
    %v1509 = vpack.c.b16 %v1467, %v1465
    %v1510 = vpack.c.b16 %v1468, %v1466
    %v1511 = vpack.c.b16 %v1471, %v1469
    %v1512 = vpack.c.b16 %v1472, %v1470
    %v1513 = vpack.c.b16 %v1475, %v1473
    %v1514 = vpack.c.b16 %v1476, %v1474
    %v1515 = vpack.c.b16 %v1479, %v1477
    %v1516 = vpack.c.b16 %v1480, %v1478
    %v1517 = vpack.c.b16 %v1483, %v1481
    %v1518 = vpack.c.b16 %v1484, %v1482
    %v1519 = vpack.c.b16 %v1487, %v1485
    %v1520 = vpack.c.b16 %v1488, %v1486
    %1553 = vmatpush.bf16.msra.mxu0 %v1503
    %1554 = vmatpush.bf16.msra.mxu0 %v1501
    %1555 = vmatpush.bf16.msra.mxu0 %v1499
    %1556 = vmatpush.bf16.msra.mxu0 %v1497
    %1557 = vmatpush.bf16.msra.mxu0 %v1495
    %1558 = vmatpush.bf16.msra.mxu0 %v1493
    %1559 = vmatpush.bf16.msra.mxu0 %v1491
    %1560 = vmatpush.bf16.msra.mxu0 %v1489
    %1561 = vmatmul.bf16.gmra.mxu0 %v602
    %v1562 = vpop.f32.mrf.mxu0
    %v1563 = vadd.f32 %v1361, %v1562
    %v1564 = vpop.f32.mrf.mxu0
    %v1565 = vadd.f32 %v1363, %v1564
    %1566 = vdwg.mxu0
    %1567 = vmatpush.bf16.msra.mxu0 %v1519
    %1568 = vmatpush.bf16.msra.mxu0 %v1517
    %1569 = vmatpush.bf16.msra.mxu0 %v1515
    %1570 = vmatpush.bf16.msra.mxu0 %v1513
    %1571 = vmatpush.bf16.msra.mxu0 %v1511
    %1572 = vmatpush.bf16.msra.mxu0 %v1509
    %1573 = vmatpush.bf16.msra.mxu0 %v1507
    %1574 = vmatpush.bf16.msra.mxu0 %v1505
    %1575 = vmatmul.bf16.gmra.mxu0 %v603
    %v1576 = vpop.f32.mrf.mxu0
    %v1577 = vadd.f32 %v1563, %v1576
    %v1578 = vpop.f32.mrf.mxu0
    %v1579 = vadd.f32 %v1565, %v1578
    %1580 = vdwg.mxu0
    %1581 = vmatpush.bf16.msra.mxu0 %v1504
    %1582 = vmatpush.bf16.msra.mxu0 %v1502
    %1583 = vmatpush.bf16.msra.mxu0 %v1500
    %1584 = vmatpush.bf16.msra.mxu0 %v1498
    %1585 = vmatpush.bf16.msra.mxu0 %v1496
    %1586 = vmatpush.bf16.msra.mxu0 %v1494
    %1587 = vmatpush.bf16.msra.mxu0 %v1492
    %1588 = vmatpush.bf16.msra.mxu0 %v1490
    %1589 = vmatmul.bf16.gmra.mxu0 %v602
    %v1590 = vpop.f32.mrf.mxu0
    %v1591 = vadd.f32 %v1389, %v1590
    %v1592 = vpop.f32.mrf.mxu0
    %v1593 = vadd.f32 %v1391, %v1592
    %1594 = vdwg.mxu0
    %1595 = vmatpush.bf16.msra.mxu0 %v1520
    %1596 = vmatpush.bf16.msra.mxu0 %v1518
    %1597 = vmatpush.bf16.msra.mxu0 %v1516
    %1598 = vmatpush.bf16.msra.mxu0 %v1514
    %1599 = vmatpush.bf16.msra.mxu0 %v1512
    %1600 = vmatpush.bf16.msra.mxu0 %v1510
    %1601 = vmatpush.bf16.msra.mxu0 %v1508
    %1602 = vmatpush.bf16.msra.mxu0 %v1506
    %1603 = vmatmul.bf16.gmra.mxu0 %v603
    %v1604 = vpop.f32.mrf.mxu0
    %v1605 = vadd.f32 %v1591, %v1604
    %v1606 = vpop.f32.mrf.mxu0
    %v1607 = vadd.f32 %v1593, %v1606
    %1608 = vdwg.mxu0
    %s1609 = scalar_lea.vmem [#allocation5], 1024
    %v1610 = vld [vmem:[%s1609] sm:$0xff]
    %v1611 = vld [vmem:[%s1609 + $0x8] sm:$0xff]
    %v1612 = vld [vmem:[%s1609 + $0x10] sm:$0xff]
    %v1613 = vld [vmem:[%s1609 + $0x18] sm:$0xff]
    %v1614 = vld [vmem:[%s1609 + $0x20] sm:$0xff]
    %v1615 = vld [vmem:[%s1609 + $0x28] sm:$0xff]
    %v1616 = vld [vmem:[%s1609 + $0x30] sm:$0xff]
    %v1617 = vld [vmem:[%s1609 + $0x38] sm:$0xff]
    %v1618 = vld [vmem:[%s1609 + $0x40] sm:$0xff]
    %v1619 = vld [vmem:[%s1609 + $0x48] sm:$0xff]
    %v1620 = vld [vmem:[%s1609 + $0x50] sm:$0xff]
    %v1621 = vld [vmem:[%s1609 + $0x58] sm:$0xff]
    %v1622 = vld [vmem:[%s1609 + $0x60] sm:$0xff]
    %v1623 = vld [vmem:[%s1609 + $0x68] sm:$0xff]
    %v1624 = vld [vmem:[%s1609 + $0x70] sm:$0xff]
    %v1625 = vld [vmem:[%s1609 + $0x78] sm:$0xff]
    %v1626 = vld [vmem:[%s1609 + $0x80] sm:$0xff]
    %v1627 = vld [vmem:[%s1609 + $0x88] sm:$0xff]
    %v1628 = vld [vmem:[%s1609 + $0x90] sm:$0xff]
    %v1629 = vld [vmem:[%s1609 + $0x98] sm:$0xff]
    %v1630 = vld [vmem:[%s1609 + $0xa0] sm:$0xff]
    %v1631 = vld [vmem:[%s1609 + $0xa8] sm:$0xff]
    %v1632 = vld [vmem:[%s1609 + $0xb0] sm:$0xff]
    %v1633 = vld [vmem:[%s1609 + $0xb8] sm:$0xff]
    %v1634 = vld [vmem:[%s1609 + $0xc0] sm:$0xff]
    %v1635 = vld [vmem:[%s1609 + $0xc8] sm:$0xff]
    %v1636 = vld [vmem:[%s1609 + $0xd0] sm:$0xff]
    %v1637 = vld [vmem:[%s1609 + $0xd8] sm:$0xff]
    %v1638 = vld [vmem:[%s1609 + $0xe0] sm:$0xff]
    %v1639 = vld [vmem:[%s1609 + $0xe8] sm:$0xff]
    %v1640 = vld [vmem:[%s1609 + $0xf0] sm:$0xff]
    %v1641 = vld [vmem:[%s1609 + $0xf8] sm:$0xff]
    %v1674 = vunpack.c.l.b16 %v1610
    %v1675 = vunpack.c.h.b16 %v1610
    %v1676 = vunpack.c.l.b16 %v1611
    %v1677 = vunpack.c.h.b16 %v1611
    %v1678 = vunpack.c.l.b16 %v1612
    %v1679 = vunpack.c.h.b16 %v1612
    %v1680 = vunpack.c.l.b16 %v1613
    %v1681 = vunpack.c.h.b16 %v1613
    %v1682 = vunpack.c.l.b16 %v1614
    %v1683 = vunpack.c.h.b16 %v1614
    %v1684 = vunpack.c.l.b16 %v1615
    %v1685 = vunpack.c.h.b16 %v1615
    %v1686 = vunpack.c.l.b16 %v1616
    %v1687 = vunpack.c.h.b16 %v1616
    %v1688 = vunpack.c.l.b16 %v1617
    %v1689 = vunpack.c.h.b16 %v1617
    %v1690 = vunpack.c.l.b16 %v1618
    %v1691 = vunpack.c.h.b16 %v1618
    %v1692 = vunpack.c.l.b16 %v1619
    %v1693 = vunpack.c.h.b16 %v1619
    %v1694 = vunpack.c.l.b16 %v1620
    %v1695 = vunpack.c.h.b16 %v1620
    %v1696 = vunpack.c.l.b16 %v1621
    %v1697 = vunpack.c.h.b16 %v1621
    %v1698 = vunpack.c.l.b16 %v1622
    %v1699 = vunpack.c.h.b16 %v1622
    %v1700 = vunpack.c.l.b16 %v1623
    %v1701 = vunpack.c.h.b16 %v1623
    %v1702 = vunpack.c.l.b16 %v1624
    %v1703 = vunpack.c.h.b16 %v1624
    %v1704 = vunpack.c.l.b16 %v1625
    %v1705 = vunpack.c.h.b16 %v1625
    %v1706 = vunpack.c.l.b16 %v1626
    %v1707 = vunpack.c.h.b16 %v1626
    %v1708 = vunpack.c.l.b16 %v1627
    %v1709 = vunpack.c.h.b16 %v1627
    %v1710 = vunpack.c.l.b16 %v1628
    %v1711 = vunpack.c.h.b16 %v1628
    %v1712 = vunpack.c.l.b16 %v1629
    %v1713 = vunpack.c.h.b16 %v1629
    %v1714 = vunpack.c.l.b16 %v1630
    %v1715 = vunpack.c.h.b16 %v1630
    %v1716 = vunpack.c.l.b16 %v1631
    %v1717 = vunpack.c.h.b16 %v1631
    %v1718 = vunpack.c.l.b16 %v1632
    %v1719 = vunpack.c.h.b16 %v1632
    %v1720 = vunpack.c.l.b16 %v1633
    %v1721 = vunpack.c.h.b16 %v1633
    %v1722 = vunpack.c.l.b16 %v1634
    %v1723 = vunpack.c.h.b16 %v1634
    %v1724 = vunpack.c.l.b16 %v1635
    %v1725 = vunpack.c.h.b16 %v1635
    %v1726 = vunpack.c.l.b16 %v1636
    %v1727 = vunpack.c.h.b16 %v1636
    %v1728 = vunpack.c.l.b16 %v1637
    %v1729 = vunpack.c.h.b16 %v1637
    %v1730 = vunpack.c.l.b16 %v1638
    %v1731 = vunpack.c.h.b16 %v1638
    %v1732 = vunpack.c.l.b16 %v1639
    %v1733 = vunpack.c.h.b16 %v1639
    %v1734 = vunpack.c.l.b16 %v1640
    %v1735 = vunpack.c.h.b16 %v1640
    %v1736 = vunpack.c.l.b16 %v1641
    %v1737 = vunpack.c.h.b16 %v1641
    %v1738 = vpack.c.b16 %v1676, %v1674
    %v1739 = vpack.c.b16 %v1677, %v1675
    %v1740 = vpack.c.b16 %v1680, %v1678
    %v1741 = vpack.c.b16 %v1681, %v1679
    %v1742 = vpack.c.b16 %v1684, %v1682
    %v1743 = vpack.c.b16 %v1685, %v1683
    %v1744 = vpack.c.b16 %v1688, %v1686
    %v1745 = vpack.c.b16 %v1689, %v1687
    %v1746 = vpack.c.b16 %v1692, %v1690
    %v1747 = vpack.c.b16 %v1693, %v1691
    %v1748 = vpack.c.b16 %v1696, %v1694
    %v1749 = vpack.c.b16 %v1697, %v1695
    %v1750 = vpack.c.b16 %v1700, %v1698
    %v1751 = vpack.c.b16 %v1701, %v1699
    %v1752 = vpack.c.b16 %v1704, %v1702
    %v1753 = vpack.c.b16 %v1705, %v1703
    %v1754 = vpack.c.b16 %v1708, %v1706
    %v1755 = vpack.c.b16 %v1709, %v1707
    %v1756 = vpack.c.b16 %v1712, %v1710
    %v1757 = vpack.c.b16 %v1713, %v1711
    %v1758 = vpack.c.b16 %v1716, %v1714
    %v1759 = vpack.c.b16 %v1717, %v1715
    %v1760 = vpack.c.b16 %v1720, %v1718
    %v1761 = vpack.c.b16 %v1721, %v1719
    %v1762 = vpack.c.b16 %v1724, %v1722
    %v1763 = vpack.c.b16 %v1725, %v1723
    %v1764 = vpack.c.b16 %v1728, %v1726
    %v1765 = vpack.c.b16 %v1729, %v1727
    %v1766 = vpack.c.b16 %v1732, %v1730
    %v1767 = vpack.c.b16 %v1733, %v1731
    %v1768 = vpack.c.b16 %v1736, %v1734
    %v1769 = vpack.c.b16 %v1737, %v1735
    %1802 = vmatpush.bf16.msra.mxu0 %v1752
    %1803 = vmatpush.bf16.msra.mxu0 %v1750
    %1804 = vmatpush.bf16.msra.mxu0 %v1748
    %1805 = vmatpush.bf16.msra.mxu0 %v1746
    %1806 = vmatpush.bf16.msra.mxu0 %v1744
    %1807 = vmatpush.bf16.msra.mxu0 %v1742
    %1808 = vmatpush.bf16.msra.mxu0 %v1740
    %1809 = vmatpush.bf16.msra.mxu0 %v1738
    %1810 = vmatmul.bf16.gmra.mxu0 %v596
    %v1811 = vpop.f32.mrf.mxu0
    %v1812 = vadd.f32 0.0, %v1811
    %v1813 = vpop.f32.mrf.mxu0
    %v1814 = vadd.f32 0.0, %v1813
    %1815 = vdwg.mxu0
    %1816 = vmatpush.bf16.msra.mxu0 %v1768
    %1817 = vmatpush.bf16.msra.mxu0 %v1766
    %1818 = vmatpush.bf16.msra.mxu0 %v1764
    %1819 = vmatpush.bf16.msra.mxu0 %v1762
    %1820 = vmatpush.bf16.msra.mxu0 %v1760
    %1821 = vmatpush.bf16.msra.mxu0 %v1758
    %1822 = vmatpush.bf16.msra.mxu0 %v1756
    %1823 = vmatpush.bf16.msra.mxu0 %v1754
    %1824 = vmatmul.bf16.gmra.mxu0 %v597
    %v1825 = vpop.f32.mrf.mxu0
    %v1826 = vadd.f32 %v1812, %v1825
    %v1827 = vpop.f32.mrf.mxu0
    %v1828 = vadd.f32 %v1814, %v1827
    %1829 = vdwg.mxu0
    %1830 = vmatpush.bf16.msra.mxu0 %v1753
    %1831 = vmatpush.bf16.msra.mxu0 %v1751
    %1832 = vmatpush.bf16.msra.mxu0 %v1749
    %1833 = vmatpush.bf16.msra.mxu0 %v1747
    %1834 = vmatpush.bf16.msra.mxu0 %v1745
    %1835 = vmatpush.bf16.msra.mxu0 %v1743
    %1836 = vmatpush.bf16.msra.mxu0 %v1741
    %1837 = vmatpush.bf16.msra.mxu0 %v1739
    %1838 = vmatmul.bf16.gmra.mxu0 %v596
    %v1839 = vpop.f32.mrf.mxu0
    %v1840 = vadd.f32 0.0, %v1839
    %v1841 = vpop.f32.mrf.mxu0
    %v1842 = vadd.f32 0.0, %v1841
    %1843 = vdwg.mxu0
    %1844 = vmatpush.bf16.msra.mxu0 %v1769
    %1845 = vmatpush.bf16.msra.mxu0 %v1767
    %1846 = vmatpush.bf16.msra.mxu0 %v1765
    %1847 = vmatpush.bf16.msra.mxu0 %v1763
    %1848 = vmatpush.bf16.msra.mxu0 %v1761
    %1849 = vmatpush.bf16.msra.mxu0 %v1759
    %1850 = vmatpush.bf16.msra.mxu0 %v1757
    %1851 = vmatpush.bf16.msra.mxu0 %v1755
    %1852 = vmatmul.bf16.gmra.mxu0 %v597
    %v1853 = vpop.f32.mrf.mxu0
    %v1854 = vadd.f32 %v1840, %v1853
    %v1855 = vpop.f32.mrf.mxu0
    %v1856 = vadd.f32 %v1842, %v1855
    %1857 = vdwg.mxu0
    %v1858 = vadd.f32 %v1112, %v1826
    %v1859 = vadd.f32 %v1140, %v1854
    %v1860 = vadd.f32 %v1114, %v1828
    %v1861 = vadd.f32 %v1142, %v1856
    %s1862 = scalar_lea.vmem [#allocation5], 1280
    %v1863 = vld [vmem:[%s1862] sm:$0xff]
    %v1864 = vld [vmem:[%s1862 + $0x8] sm:$0xff]
    %v1865 = vld [vmem:[%s1862 + $0x10] sm:$0xff]
    %v1866 = vld [vmem:[%s1862 + $0x18] sm:$0xff]
    %v1867 = vld [vmem:[%s1862 + $0x20] sm:$0xff]
    %v1868 = vld [vmem:[%s1862 + $0x28] sm:$0xff]
    %v1869 = vld [vmem:[%s1862 + $0x30] sm:$0xff]
    %v1870 = vld [vmem:[%s1862 + $0x38] sm:$0xff]
    %v1871 = vld [vmem:[%s1862 + $0x40] sm:$0xff]
    %v1872 = vld [vmem:[%s1862 + $0x48] sm:$0xff]
    %v1873 = vld [vmem:[%s1862 + $0x50] sm:$0xff]
    %v1874 = vld [vmem:[%s1862 + $0x58] sm:$0xff]
    %v1875 = vld [vmem:[%s1862 + $0x60] sm:$0xff]
    %v1876 = vld [vmem:[%s1862 + $0x68] sm:$0xff]
    %v1877 = vld [vmem:[%s1862 + $0x70] sm:$0xff]
    %v1878 = vld [vmem:[%s1862 + $0x78] sm:$0xff]
    %v1879 = vld [vmem:[%s1862 + $0x80] sm:$0xff]
    %v1880 = vld [vmem:[%s1862 + $0x88] sm:$0xff]
    %v1881 = vld [vmem:[%s1862 + $0x90] sm:$0xff]
    %v1882 = vld [vmem:[%s1862 + $0x98] sm:$0xff]
    %v1883 = vld [vmem:[%s1862 + $0xa0] sm:$0xff]
    %v1884 = vld [vmem:[%s1862 + $0xa8] sm:$0xff]
    %v1885 = vld [vmem:[%s1862 + $0xb0] sm:$0xff]
    %v1886 = vld [vmem:[%s1862 + $0xb8] sm:$0xff]
    %v1887 = vld [vmem:[%s1862 + $0xc0] sm:$0xff]
    %v1888 = vld [vmem:[%s1862 + $0xc8] sm:$0xff]
    %v1889 = vld [vmem:[%s1862 + $0xd0] sm:$0xff]
    %v1890 = vld [vmem:[%s1862 + $0xd8] sm:$0xff]
    %v1891 = vld [vmem:[%s1862 + $0xe0] sm:$0xff]
    %v1892 = vld [vmem:[%s1862 + $0xe8] sm:$0xff]
    %v1893 = vld [vmem:[%s1862 + $0xf0] sm:$0xff]
    %v1894 = vld [vmem:[%s1862 + $0xf8] sm:$0xff]
    %v1927 = vunpack.c.l.b16 %v1863
    %v1928 = vunpack.c.h.b16 %v1863
    %v1929 = vunpack.c.l.b16 %v1864
    %v1930 = vunpack.c.h.b16 %v1864
    %v1931 = vunpack.c.l.b16 %v1865
    %v1932 = vunpack.c.h.b16 %v1865
    %v1933 = vunpack.c.l.b16 %v1866
    %v1934 = vunpack.c.h.b16 %v1866
    %v1935 = vunpack.c.l.b16 %v1867
    %v1936 = vunpack.c.h.b16 %v1867
    %v1937 = vunpack.c.l.b16 %v1868
    %v1938 = vunpack.c.h.b16 %v1868
    %v1939 = vunpack.c.l.b16 %v1869
    %v1940 = vunpack.c.h.b16 %v1869
    %v1941 = vunpack.c.l.b16 %v1870
    %v1942 = vunpack.c.h.b16 %v1870
    %v1943 = vunpack.c.l.b16 %v1871
    %v1944 = vunpack.c.h.b16 %v1871
    %v1945 = vunpack.c.l.b16 %v1872
    %v1946 = vunpack.c.h.b16 %v1872
    %v1947 = vunpack.c.l.b16 %v1873
    %v1948 = vunpack.c.h.b16 %v1873
    %v1949 = vunpack.c.l.b16 %v1874
    %v1950 = vunpack.c.h.b16 %v1874
    %v1951 = vunpack.c.l.b16 %v1875
    %v1952 = vunpack.c.h.b16 %v1875
    %v1953 = vunpack.c.l.b16 %v1876
    %v1954 = vunpack.c.h.b16 %v1876
    %v1955 = vunpack.c.l.b16 %v1877
    %v1956 = vunpack.c.h.b16 %v1877
    %v1957 = vunpack.c.l.b16 %v1878
    %v1958 = vunpack.c.h.b16 %v1878
    %v1959 = vunpack.c.l.b16 %v1879
    %v1960 = vunpack.c.h.b16 %v1879
    %v1961 = vunpack.c.l.b16 %v1880
    %v1962 = vunpack.c.h.b16 %v1880
    %v1963 = vunpack.c.l.b16 %v1881
    %v1964 = vunpack.c.h.b16 %v1881
    %v1965 = vunpack.c.l.b16 %v1882
    %v1966 = vunpack.c.h.b16 %v1882
    %v1967 = vunpack.c.l.b16 %v1883
    %v1968 = vunpack.c.h.b16 %v1883
    %v1969 = vunpack.c.l.b16 %v1884
    %v1970 = vunpack.c.h.b16 %v1884
    %v1971 = vunpack.c.l.b16 %v1885
    %v1972 = vunpack.c.h.b16 %v1885
    %v1973 = vunpack.c.l.b16 %v1886
    %v1974 = vunpack.c.h.b16 %v1886
    %v1975 = vunpack.c.l.b16 %v1887
    %v1976 = vunpack.c.h.b16 %v1887
    %v1977 = vunpack.c.l.b16 %v1888
    %v1978 = vunpack.c.h.b16 %v1888
    %v1979 = vunpack.c.l.b16 %v1889
    %v1980 = vunpack.c.h.b16 %v1889
    %v1981 = vunpack.c.l.b16 %v1890
    %v1982 = vunpack.c.h.b16 %v1890
    %v1983 = vunpack.c.l.b16 %v1891
    %v1984 = vunpack.c.h.b16 %v1891
    %v1985 = vunpack.c.l.b16 %v1892
    %v1986 = vunpack.c.h.b16 %v1892
    %v1987 = vunpack.c.l.b16 %v1893
    %v1988 = vunpack.c.h.b16 %v1893
    %v1989 = vunpack.c.l.b16 %v1894
    %v1990 = vunpack.c.h.b16 %v1894
    %v1991 = vpack.c.b16 %v1929, %v1927
    %v1992 = vpack.c.b16 %v1930, %v1928
    %v1993 = vpack.c.b16 %v1933, %v1931
    %v1994 = vpack.c.b16 %v1934, %v1932
    %v1995 = vpack.c.b16 %v1937, %v1935
    %v1996 = vpack.c.b16 %v1938, %v1936
    %v1997 = vpack.c.b16 %v1941, %v1939
    %v1998 = vpack.c.b16 %v1942, %v1940
    %v1999 = vpack.c.b16 %v1945, %v1943
    %v2000 = vpack.c.b16 %v1946, %v1944
    %v2001 = vpack.c.b16 %v1949, %v1947
    %v2002 = vpack.c.b16 %v1950, %v1948
    %v2003 = vpack.c.b16 %v1953, %v1951
    %v2004 = vpack.c.b16 %v1954, %v1952
    %v2005 = vpack.c.b16 %v1957, %v1955
    %v2006 = vpack.c.b16 %v1958, %v1956
    %v2007 = vpack.c.b16 %v1961, %v1959
    %v2008 = vpack.c.b16 %v1962, %v1960
    %v2009 = vpack.c.b16 %v1965, %v1963
    %v2010 = vpack.c.b16 %v1966, %v1964
    %v2011 = vpack.c.b16 %v1969, %v1967
    %v2012 = vpack.c.b16 %v1970, %v1968
    %v2013 = vpack.c.b16 %v1973, %v1971
    %v2014 = vpack.c.b16 %v1974, %v1972
    %v2015 = vpack.c.b16 %v1977, %v1975
    %v2016 = vpack.c.b16 %v1978, %v1976
    %v2017 = vpack.c.b16 %v1981, %v1979
    %v2018 = vpack.c.b16 %v1982, %v1980
    %v2019 = vpack.c.b16 %v1985, %v1983
    %v2020 = vpack.c.b16 %v1986, %v1984
    %v2021 = vpack.c.b16 %v1989, %v1987
    %v2022 = vpack.c.b16 %v1990, %v1988
    %2055 = vmatpush.bf16.msra.mxu0 %v2005
    %2056 = vmatpush.bf16.msra.mxu0 %v2003
    %2057 = vmatpush.bf16.msra.mxu0 %v2001
    %2058 = vmatpush.bf16.msra.mxu0 %v1999
    %2059 = vmatpush.bf16.msra.mxu0 %v1997
    %2060 = vmatpush.bf16.msra.mxu0 %v1995
    %2061 = vmatpush.bf16.msra.mxu0 %v1993
    %2062 = vmatpush.bf16.msra.mxu0 %v1991
    %2063 = vmatmul.bf16.gmra.mxu0 %v596
    %v2064 = vpop.f32.mrf.mxu0
    %v2065 = vadd.f32 0.0, %v2064
    %v2066 = vpop.f32.mrf.mxu0
    %v2067 = vadd.f32 0.0, %v2066
    %2068 = vdwg.mxu0
    %2069 = vmatpush.bf16.msra.mxu0 %v2021
    %2070 = vmatpush.bf16.msra.mxu0 %v2019
    %2071 = vmatpush.bf16.msra.mxu0 %v2017
    %2072 = vmatpush.bf16.msra.mxu0 %v2015
    %2073 = vmatpush.bf16.msra.mxu0 %v2013
    %2074 = vmatpush.bf16.msra.mxu0 %v2011
    %2075 = vmatpush.bf16.msra.mxu0 %v2009
    %2076 = vmatpush.bf16.msra.mxu0 %v2007
    %2077 = vmatmul.bf16.gmra.mxu0 %v597
    %v2078 = vpop.f32.mrf.mxu0
    %v2079 = vadd.f32 %v2065, %v2078
    %v2080 = vpop.f32.mrf.mxu0
    %v2081 = vadd.f32 %v2067, %v2080
    %2082 = vdwg.mxu0
    %2083 = vmatpush.bf16.msra.mxu0 %v2006
    %2084 = vmatpush.bf16.msra.mxu0 %v2004
    %2085 = vmatpush.bf16.msra.mxu0 %v2002
    %2086 = vmatpush.bf16.msra.mxu0 %v2000
    %2087 = vmatpush.bf16.msra.mxu0 %v1998
    %2088 = vmatpush.bf16.msra.mxu0 %v1996
    %2089 = vmatpush.bf16.msra.mxu0 %v1994
    %2090 = vmatpush.bf16.msra.mxu0 %v1992
    %2091 = vmatmul.bf16.gmra.mxu0 %v596
    %v2092 = vpop.f32.mrf.mxu0
    %v2093 = vadd.f32 0.0, %v2092
    %v2094 = vpop.f32.mrf.mxu0
    %v2095 = vadd.f32 0.0, %v2094
    %2096 = vdwg.mxu0
    %2097 = vmatpush.bf16.msra.mxu0 %v2022
    %2098 = vmatpush.bf16.msra.mxu0 %v2020
    %2099 = vmatpush.bf16.msra.mxu0 %v2018
    %2100 = vmatpush.bf16.msra.mxu0 %v2016
    %2101 = vmatpush.bf16.msra.mxu0 %v2014
    %2102 = vmatpush.bf16.msra.mxu0 %v2012
    %2103 = vmatpush.bf16.msra.mxu0 %v2010
    %2104 = vmatpush.bf16.msra.mxu0 %v2008
    %2105 = vmatmul.bf16.gmra.mxu0 %v597
    %v2106 = vpop.f32.mrf.mxu0
    %v2107 = vadd.f32 %v2093, %v2106
    %v2108 = vpop.f32.mrf.mxu0
    %v2109 = vadd.f32 %v2095, %v2108
    %2110 = vdwg.mxu0
    %v2111 = vadd.f32 %v1577, %v2079
    %v2112 = vadd.f32 %v1605, %v2107
    %v2113 = vadd.f32 %v1579, %v2081
    %v2114 = vadd.f32 %v1607, %v2109
    %v2115 = vld [vmem:[%s4] sm:$0x3]
    %v2117 = vperm.slane %v2115, 0
    %v2118 = vperm.slane %v2115, 1
    %v2121 = vadd.f32 %v1858, %v2117
    %v2122 = vadd.f32 %v1859, %v2118
    %v2123 = vadd.f32 %v1860, %v2117
    %v2124 = vadd.f32 %v1861, %v2118
    %v2125 = vmax.f32 %v2121, 0.0
    %v2126 = vmax.f32 %v2122, 0.0
    %v2127 = vmax.f32 %v2123, 0.0
    %v2128 = vmax.f32 %v2124, 0.0
    %v2129 = vadd.f32 %v2111, %v2117
    %v2130 = vadd.f32 %v2112, %v2118
    %v2131 = vadd.f32 %v2113, %v2117
    %v2132 = vadd.f32 %v2114, %v2118
    %v2133 = vmax.f32 %v2129, 0.0
    %v2134 = vmax.f32 %v2130, 0.0
    %v2135 = vmax.f32 %v2131, 0.0
    %v2136 = vmax.f32 %v2132, 0.0
    %v2137 = vmax.f32 %v2125, %v2133
    %v2138 = vmax.f32 %v2126, %v2134
    %v2139 = vmax.f32 %v2127, %v2135
    %v2140 = vmax.f32 %v2128, %v2136
    %2141 = vmatpush.bf16.msra.mxu0 %v822
    %2142 = vmatpush.bf16.msra.mxu0 %v820
    %2143 = vmatpush.bf16.msra.mxu0 %v818
    %2144 = vmatpush.bf16.msra.mxu0 %v816
    %2145 = vmatpush.bf16.msra.mxu0 %v814
    %2146 = vmatpush.bf16.msra.mxu0 %v812
    %2147 = vmatpush.bf16.msra.mxu0 %v810
    %2148 = vmatpush.bf16.msra.mxu0 %v808
    %2149 = vmatmul.bf16.gmra.mxu0 %v596
    %v2150 = vpop.f32.mrf.mxu0
    %v2151 = vadd.f32 0.0, %v2150
    %v2152 = vpop.f32.mrf.mxu0
    %v2153 = vadd.f32 0.0, %v2152
    %2154 = vdwg.mxu0
    %2155 = vmatpush.bf16.msra.mxu0 %v838
    %2156 = vmatpush.bf16.msra.mxu0 %v836
    %2157 = vmatpush.bf16.msra.mxu0 %v834
    %2158 = vmatpush.bf16.msra.mxu0 %v832
    %2159 = vmatpush.bf16.msra.mxu0 %v830
    %2160 = vmatpush.bf16.msra.mxu0 %v828
    %2161 = vmatpush.bf16.msra.mxu0 %v826
    %2162 = vmatpush.bf16.msra.mxu0 %v824
    %2163 = vmatmul.bf16.gmra.mxu0 %v597
    %v2164 = vpop.f32.mrf.mxu0
    %v2165 = vadd.f32 %v2151, %v2164
    %v2166 = vpop.f32.mrf.mxu0
    %v2167 = vadd.f32 %v2153, %v2166
    %2168 = vdwg.mxu0
    %2169 = vmatpush.bf16.msra.mxu0 %v823
    %2170 = vmatpush.bf16.msra.mxu0 %v821
    %2171 = vmatpush.bf16.msra.mxu0 %v819
    %2172 = vmatpush.bf16.msra.mxu0 %v817
    %2173 = vmatpush.bf16.msra.mxu0 %v815
    %2174 = vmatpush.bf16.msra.mxu0 %v813
    %2175 = vmatpush.bf16.msra.mxu0 %v811
    %2176 = vmatpush.bf16.msra.mxu0 %v809
    %2177 = vmatmul.bf16.gmra.mxu0 %v596
    %v2178 = vpop.f32.mrf.mxu0
    %v2179 = vadd.f32 0.0, %v2178
    %v2180 = vpop.f32.mrf.mxu0
    %v2181 = vadd.f32 0.0, %v2180
    %2182 = vdwg.mxu0
    %2183 = vmatpush.bf16.msra.mxu0 %v839
    %2184 = vmatpush.bf16.msra.mxu0 %v837
    %2185 = vmatpush.bf16.msra.mxu0 %v835
    %2186 = vmatpush.bf16.msra.mxu0 %v833
    %2187 = vmatpush.bf16.msra.mxu0 %v831
    %2188 = vmatpush.bf16.msra.mxu0 %v829
    %2189 = vmatpush.bf16.msra.mxu0 %v827
    %2190 = vmatpush.bf16.msra.mxu0 %v825
    %2191 = vmatmul.bf16.gmra.mxu0 %v597
    %v2192 = vpop.f32.mrf.mxu0
    %v2193 = vadd.f32 %v2179, %v2192
    %v2194 = vpop.f32.mrf.mxu0
    %v2195 = vadd.f32 %v2181, %v2194
    %2196 = vdwg.mxu0
    %2197 = vmatpush.bf16.msra.mxu0 %v1038
    %2198 = vmatpush.bf16.msra.mxu0 %v1036
    %2199 = vmatpush.bf16.msra.mxu0 %v1034
    %2200 = vmatpush.bf16.msra.mxu0 %v1032
    %2201 = vmatpush.bf16.msra.mxu0 %v1030
    %2202 = vmatpush.bf16.msra.mxu0 %v1028
    %2203 = vmatpush.bf16.msra.mxu0 %v1026
    %2204 = vmatpush.bf16.msra.mxu0 %v1024
    %2205 = vmatmul.bf16.gmra.mxu0 %v594
    %v2206 = vpop.f32.mrf.mxu0
    %v2207 = vadd.f32 %v2165, %v2206
    %v2208 = vpop.f32.mrf.mxu0
    %v2209 = vadd.f32 %v2167, %v2208
    %2210 = vdwg.mxu0
    %2211 = vmatpush.bf16.msra.mxu0 %v1054
    %2212 = vmatpush.bf16.msra.mxu0 %v1052
    %2213 = vmatpush.bf16.msra.mxu0 %v1050
    %2214 = vmatpush.bf16.msra.mxu0 %v1048
    %2215 = vmatpush.bf16.msra.mxu0 %v1046
    %2216 = vmatpush.bf16.msra.mxu0 %v1044
    %2217 = vmatpush.bf16.msra.mxu0 %v1042
    %2218 = vmatpush.bf16.msra.mxu0 %v1040
    %2219 = vmatmul.bf16.gmra.mxu0 %v595
    %v2220 = vpop.f32.mrf.mxu0
    %v2221 = vadd.f32 %v2207, %v2220
    %v2222 = vpop.f32.mrf.mxu0
    %v2223 = vadd.f32 %v2209, %v2222
    %2224 = vdwg.mxu0
    %2225 = vmatpush.bf16.msra.mxu0 %v1039
    %2226 = vmatpush.bf16.msra.mxu0 %v1037
    %2227 = vmatpush.bf16.msra.mxu0 %v1035
    %2228 = vmatpush.bf16.msra.mxu0 %v1033
    %2229 = vmatpush.bf16.msra.mxu0 %v1031
    %2230 = vmatpush.bf16.msra.mxu0 %v1029
    %2231 = vmatpush.bf16.msra.mxu0 %v1027
    %2232 = vmatpush.bf16.msra.mxu0 %v1025
    %2233 = vmatmul.bf16.gmra.mxu0 %v594
    %v2234 = vpop.f32.mrf.mxu0
    %v2235 = vadd.f32 %v2193, %v2234
    %v2236 = vpop.f32.mrf.mxu0
    %v2237 = vadd.f32 %v2195, %v2236
    %2238 = vdwg.mxu0
    %2239 = vmatpush.bf16.msra.mxu0 %v1055
    %2240 = vmatpush.bf16.msra.mxu0 %v1053
    %2241 = vmatpush.bf16.msra.mxu0 %v1051
    %2242 = vmatpush.bf16.msra.mxu0 %v1049
    %2243 = vmatpush.bf16.msra.mxu0 %v1047
    %2244 = vmatpush.bf16.msra.mxu0 %v1045
    %2245 = vmatpush.bf16.msra.mxu0 %v1043
    %2246 = vmatpush.bf16.msra.mxu0 %v1041
    %2247 = vmatmul.bf16.gmra.mxu0 %v595
    %v2248 = vpop.f32.mrf.mxu0
    %v2249 = vadd.f32 %v2235, %v2248
    %v2250 = vpop.f32.mrf.mxu0
    %v2251 = vadd.f32 %v2237, %v2250
    %2252 = vdwg.mxu0
    %2253 = vmatpush.bf16.msra.mxu0 %v1287
    %2254 = vmatpush.bf16.msra.mxu0 %v1285
    %2255 = vmatpush.bf16.msra.mxu0 %v1283
    %2256 = vmatpush.bf16.msra.mxu0 %v1281
    %2257 = vmatpush.bf16.msra.mxu0 %v1279
    %2258 = vmatpush.bf16.msra.mxu0 %v1277
    %2259 = vmatpush.bf16.msra.mxu0 %v1275
    %2260 = vmatpush.bf16.msra.mxu0 %v1273
    %2261 = vmatmul.bf16.gmra.mxu0 %v596
    %v2262 = vpop.f32.mrf.mxu0
    %v2263 = vadd.f32 0.0, %v2262
    %v2264 = vpop.f32.mrf.mxu0
    %v2265 = vadd.f32 0.0, %v2264
    %2266 = vdwg.mxu0
    %2267 = vmatpush.bf16.msra.mxu0 %v1303
    %2268 = vmatpush.bf16.msra.mxu0 %v1301
    %2269 = vmatpush.bf16.msra.mxu0 %v1299
    %2270 = vmatpush.bf16.msra.mxu0 %v1297
    %2271 = vmatpush.bf16.msra.mxu0 %v1295
    %2272 = vmatpush.bf16.msra.mxu0 %v1293
    %2273 = vmatpush.bf16.msra.mxu0 %v1291
    %2274 = vmatpush.bf16.msra.mxu0 %v1289
    %2275 = vmatmul.bf16.gmra.mxu0 %v597
    %v2276 = vpop.f32.mrf.mxu0
    %v2277 = vadd.f32 %v2263, %v2276
    %v2278 = vpop.f32.mrf.mxu0
    %v2279 = vadd.f32 %v2265, %v2278
    %2280 = vdwg.mxu0
    %2281 = vmatpush.bf16.msra.mxu0 %v1288
    %2282 = vmatpush.bf16.msra.mxu0 %v1286
    %2283 = vmatpush.bf16.msra.mxu0 %v1284
    %2284 = vmatpush.bf16.msra.mxu0 %v1282
    %2285 = vmatpush.bf16.msra.mxu0 %v1280
    %2286 = vmatpush.bf16.msra.mxu0 %v1278
    %2287 = vmatpush.bf16.msra.mxu0 %v1276
    %2288 = vmatpush.bf16.msra.mxu0 %v1274
    %2289 = vmatmul.bf16.gmra.mxu0 %v596
    %v2290 = vpop.f32.mrf.mxu0
    %v2291 = vadd.f32 0.0, %v2290
    %v2292 = vpop.f32.mrf.mxu0
    %v2293 = vadd.f32 0.0, %v2292
    %2294 = vdwg.mxu0
    %2295 = vmatpush.bf16.msra.mxu0 %v1304
    %2296 = vmatpush.bf16.msra.mxu0 %v1302
    %2297 = vmatpush.bf16.msra.mxu0 %v1300
    %2298 = vmatpush.bf16.msra.mxu0 %v1298
    %2299 = vmatpush.bf16.msra.mxu0 %v1296
    %2300 = vmatpush.bf16.msra.mxu0 %v1294
    %2301 = vmatpush.bf16.msra.mxu0 %v1292
    %2302 = vmatpush.bf16.msra.mxu0 %v1290
    %2303 = vmatmul.bf16.gmra.mxu0 %v597
    %v2304 = vpop.f32.mrf.mxu0
    %v2305 = vadd.f32 %v2291, %v2304
    %v2306 = vpop.f32.mrf.mxu0
    %v2307 = vadd.f32 %v2293, %v2306
    %2308 = vdwg.mxu0
    %2309 = vmatpush.bf16.msra.mxu0 %v1503
    %2310 = vmatpush.bf16.msra.mxu0 %v1501
    %2311 = vmatpush.bf16.msra.mxu0 %v1499
    %2312 = vmatpush.bf16.msra.mxu0 %v1497
    %2313 = vmatpush.bf16.msra.mxu0 %v1495
    %2314 = vmatpush.bf16.msra.mxu0 %v1493
    %2315 = vmatpush.bf16.msra.mxu0 %v1491
    %2316 = vmatpush.bf16.msra.mxu0 %v1489
    %2317 = vmatmul.bf16.gmra.mxu0 %v594
    %v2318 = vpop.f32.mrf.mxu0
    %v2319 = vadd.f32 %v2277, %v2318
    %v2320 = vpop.f32.mrf.mxu0
    %v2321 = vadd.f32 %v2279, %v2320
    %2322 = vdwg.mxu0
    %2323 = vmatpush.bf16.msra.mxu0 %v1519
    %2324 = vmatpush.bf16.msra.mxu0 %v1517
    %2325 = vmatpush.bf16.msra.mxu0 %v1515
    %2326 = vmatpush.bf16.msra.mxu0 %v1513
    %2327 = vmatpush.bf16.msra.mxu0 %v1511
    %2328 = vmatpush.bf16.msra.mxu0 %v1509
    %2329 = vmatpush.bf16.msra.mxu0 %v1507
    %2330 = vmatpush.bf16.msra.mxu0 %v1505
    %2331 = vmatmul.bf16.gmra.mxu0 %v595
    %v2332 = vpop.f32.mrf.mxu0
    %v2333 = vadd.f32 %v2319, %v2332
    %v2334 = vpop.f32.mrf.mxu0
    %v2335 = vadd.f32 %v2321, %v2334
    %2336 = vdwg.mxu0
    %2337 = vmatpush.bf16.msra.mxu0 %v1504
    %2338 = vmatpush.bf16.msra.mxu0 %v1502
    %2339 = vmatpush.bf16.msra.mxu0 %v1500
    %2340 = vmatpush.bf16.msra.mxu0 %v1498
    %2341 = vmatpush.bf16.msra.mxu0 %v1496
    %2342 = vmatpush.bf16.msra.mxu0 %v1494
    %2343 = vmatpush.bf16.msra.mxu0 %v1492
    %2344 = vmatpush.bf16.msra.mxu0 %v1490
    %2345 = vmatmul.bf16.gmra.mxu0 %v594
    %v2346 = vpop.f32.mrf.mxu0
    %v2347 = vadd.f32 %v2305, %v2346
    %v2348 = vpop.f32.mrf.mxu0
    %v2349 = vadd.f32 %v2307, %v2348
    %2350 = vdwg.mxu0
    %2351 = vmatpush.bf16.msra.mxu0 %v1520
    %2352 = vmatpush.bf16.msra.mxu0 %v1518
    %2353 = vmatpush.bf16.msra.mxu0 %v1516
    %2354 = vmatpush.bf16.msra.mxu0 %v1514
    %2355 = vmatpush.bf16.msra.mxu0 %v1512
    %2356 = vmatpush.bf16.msra.mxu0 %v1510
    %2357 = vmatpush.bf16.msra.mxu0 %v1508
    %2358 = vmatpush.bf16.msra.mxu0 %v1506
    %2359 = vmatmul.bf16.gmra.mxu0 %v595
    %v2360 = vpop.f32.mrf.mxu0
    %v2361 = vadd.f32 %v2347, %v2360
    %v2362 = vpop.f32.mrf.mxu0
    %v2363 = vadd.f32 %v2349, %v2362
    %2364 = vdwg.mxu0
    %vm2369 = vcmask 1046528
    %v2370 = vrot.slane %v610, 1
    %v2371 = vrot.slane %v612, 1
    %v2372 = vsel %vm2369, %v2370, %v2371
    %v2373 = vrot.slane %v611, 1
    %v2374 = vrot.slane %v613, 1
    %v2375 = vsel %vm2369, %v2373, %v2374
    %2378 = vmatpush.bf16.msra.mxu0 %v1752
    %2379 = vmatpush.bf16.msra.mxu0 %v1750
    %2380 = vmatpush.bf16.msra.mxu0 %v1748
    %2381 = vmatpush.bf16.msra.mxu0 %v1746
    %2382 = vmatpush.bf16.msra.mxu0 %v1744
    %2383 = vmatpush.bf16.msra.mxu0 %v1742
    %2384 = vmatpush.bf16.msra.mxu0 %v1740
    %2385 = vmatpush.bf16.msra.mxu0 %v1738
    %2386 = vmatmul.bf16.gmra.mxu0 %v2372
    %v2387 = vpop.f32.mrf.mxu0
    %v2388 = vadd.f32 0.0, %v2387
    %v2389 = vpop.f32.mrf.mxu0
    %v2390 = vadd.f32 0.0, %v2389
    %2391 = vdwg.mxu0
    %2392 = vmatpush.bf16.msra.mxu0 %v1768
    %2393 = vmatpush.bf16.msra.mxu0 %v1766
    %2394 = vmatpush.bf16.msra.mxu0 %v1764
    %2395 = vmatpush.bf16.msra.mxu0 %v1762
    %2396 = vmatpush.bf16.msra.mxu0 %v1760
    %2397 = vmatpush.bf16.msra.mxu0 %v1758
    %2398 = vmatpush.bf16.msra.mxu0 %v1756
    %2399 = vmatpush.bf16.msra.mxu0 %v1754
    %2400 = vmatmul.bf16.gmra.mxu0 %v2375
    %v2401 = vpop.f32.mrf.mxu0
    %v2402 = vadd.f32 %v2388, %v2401
    %v2403 = vpop.f32.mrf.mxu0
    %v2404 = vadd.f32 %v2390, %v2403
    %2405 = vdwg.mxu0
    %2406 = vmatpush.bf16.msra.mxu0 %v1753
    %2407 = vmatpush.bf16.msra.mxu0 %v1751
    %2408 = vmatpush.bf16.msra.mxu0 %v1749
    %2409 = vmatpush.bf16.msra.mxu0 %v1747
    %2410 = vmatpush.bf16.msra.mxu0 %v1745
    %2411 = vmatpush.bf16.msra.mxu0 %v1743
    %2412 = vmatpush.bf16.msra.mxu0 %v1741
    %2413 = vmatpush.bf16.msra.mxu0 %v1739
    %2414 = vmatmul.bf16.gmra.mxu0 %v2372
    %v2415 = vpop.f32.mrf.mxu0
    %v2416 = vadd.f32 0.0, %v2415
    %v2417 = vpop.f32.mrf.mxu0
    %v2418 = vadd.f32 0.0, %v2417
    %2419 = vdwg.mxu0
    %2420 = vmatpush.bf16.msra.mxu0 %v1769
    %2421 = vmatpush.bf16.msra.mxu0 %v1767
    %2422 = vmatpush.bf16.msra.mxu0 %v1765
    %2423 = vmatpush.bf16.msra.mxu0 %v1763
    %2424 = vmatpush.bf16.msra.mxu0 %v1761
    %2425 = vmatpush.bf16.msra.mxu0 %v1759
    %2426 = vmatpush.bf16.msra.mxu0 %v1757
    %2427 = vmatpush.bf16.msra.mxu0 %v1755
    %2428 = vmatmul.bf16.gmra.mxu0 %v2375
    %v2429 = vpop.f32.mrf.mxu0
    %v2430 = vadd.f32 %v2416, %v2429
    %v2431 = vpop.f32.mrf.mxu0
    %v2432 = vadd.f32 %v2418, %v2431
    %2433 = vdwg.mxu0
    %v2434 = vadd.f32 %v2221, %v2402
    %v2435 = vadd.f32 %v2249, %v2430
    %v2436 = vadd.f32 %v2223, %v2404
    %v2437 = vadd.f32 %v2251, %v2432
    %2438 = vmatpush.bf16.msra.mxu0 %v2005
    %2439 = vmatpush.bf16.msra.mxu0 %v2003
    %2440 = vmatpush.bf16.msra.mxu0 %v2001
    %2441 = vmatpush.bf16.msra.mxu0 %v1999
    %2442 = vmatpush.bf16.msra.mxu0 %v1997
    %2443 = vmatpush.bf16.msra.mxu0 %v1995
    %2444 = vmatpush.bf16.msra.mxu0 %v1993
    %2445 = vmatpush.bf16.msra.mxu0 %v1991
    %2446 = vmatmul.bf16.gmra.mxu0 %v2372
    %v2447 = vpop.f32.mrf.mxu0
    %v2448 = vadd.f32 0.0, %v2447
    %v2449 = vpop.f32.mrf.mxu0
    %v2450 = vadd.f32 0.0, %v2449
    %2451 = vdwg.mxu0
    %2452 = vmatpush.bf16.msra.mxu0 %v2021
    %2453 = vmatpush.bf16.msra.mxu0 %v2019
    %2454 = vmatpush.bf16.msra.mxu0 %v2017
    %2455 = vmatpush.bf16.msra.mxu0 %v2015
    %2456 = vmatpush.bf16.msra.mxu0 %v2013
    %2457 = vmatpush.bf16.msra.mxu0 %v2011
    %2458 = vmatpush.bf16.msra.mxu0 %v2009
    %2459 = vmatpush.bf16.msra.mxu0 %v2007
    %2460 = vmatmul.bf16.gmra.mxu0 %v2375
    %v2461 = vpop.f32.mrf.mxu0
    %v2462 = vadd.f32 %v2448, %v2461
    %v2463 = vpop.f32.mrf.mxu0
    %v2464 = vadd.f32 %v2450, %v2463
    %2465 = vdwg.mxu0
    %2466 = vmatpush.bf16.msra.mxu0 %v2006
    %2467 = vmatpush.bf16.msra.mxu0 %v2004
    %2468 = vmatpush.bf16.msra.mxu0 %v2002
    %2469 = vmatpush.bf16.msra.mxu0 %v2000
    %2470 = vmatpush.bf16.msra.mxu0 %v1998
    %2471 = vmatpush.bf16.msra.mxu0 %v1996
    %2472 = vmatpush.bf16.msra.mxu0 %v1994
    %2473 = vmatpush.bf16.msra.mxu0 %v1992
    %2474 = vmatmul.bf16.gmra.mxu0 %v2372
    %v2475 = vpop.f32.mrf.mxu0
    %v2476 = vadd.f32 0.0, %v2475
    %v2477 = vpop.f32.mrf.mxu0
    %v2478 = vadd.f32 0.0, %v2477
    %2479 = vdwg.mxu0
    %2480 = vmatpush.bf16.msra.mxu0 %v2022
    %2481 = vmatpush.bf16.msra.mxu0 %v2020
    %2482 = vmatpush.bf16.msra.mxu0 %v2018
    %2483 = vmatpush.bf16.msra.mxu0 %v2016
    %2484 = vmatpush.bf16.msra.mxu0 %v2014
    %2485 = vmatpush.bf16.msra.mxu0 %v2012
    %2486 = vmatpush.bf16.msra.mxu0 %v2010
    %2487 = vmatpush.bf16.msra.mxu0 %v2008
    %2488 = vmatmul.bf16.gmra.mxu0 %v2375
    %v2489 = vpop.f32.mrf.mxu0
    %v2490 = vadd.f32 %v2476, %v2489
    %v2491 = vpop.f32.mrf.mxu0
    %v2492 = vadd.f32 %v2478, %v2491
    %2493 = vdwg.mxu0
    %v2494 = vadd.f32 %v2333, %v2462
    %v2495 = vadd.f32 %v2361, %v2490
    %v2496 = vadd.f32 %v2335, %v2464
    %v2497 = vadd.f32 %v2363, %v2492
    %v2498 = vadd.f32 %v2434, %v2117
    %v2499 = vadd.f32 %v2435, %v2118
    %v2500 = vadd.f32 %v2436, %v2117
    %v2501 = vadd.f32 %v2437, %v2118
    %v2502 = vmax.f32 %v2498, 0.0
    %v2503 = vmax.f32 %v2499, 0.0
    %v2504 = vmax.f32 %v2500, 0.0
    %v2505 = vmax.f32 %v2501, 0.0
    %v2506 = vadd.f32 %v2494, %v2117
    %v2507 = vadd.f32 %v2495, %v2118
    %v2508 = vadd.f32 %v2496, %v2117
    %v2509 = vadd.f32 %v2497, %v2118
    %v2510 = vmax.f32 %v2506, 0.0
    %v2511 = vmax.f32 %v2507, 0.0
    %v2512 = vmax.f32 %v2508, 0.0
    %v2513 = vmax.f32 %v2509, 0.0
    %v2514 = vmax.f32 %v2502, %v2510
    %v2515 = vmax.f32 %v2503, %v2511
    %v2516 = vmax.f32 %v2504, %v2512
    %v2517 = vmax.f32 %v2505, %v2513
    %v2518 = vmax.f32 %v2137, %v2514
    %v2519 = vmax.f32 %v2138, %v2515
    %v2520 = vmax.f32 %v2139, %v2516
    %v2521 = vmax.f32 %v2140, %v2517
    %2522 = vst [vmem:[#allocation2] sm:$0xff] %v2518
    %2523 = vst [vmem:[#allocation2 + $0x8] sm:$0xff] %v2519
    %2524 = vst [vmem:[#allocation2 + $0x10] sm:$0xff] %v2520
    %2525 = vst [vmem:[#allocation2 + $0x18] sm:$0xff] %v2521
    %v2526 = vld [vmem:[#allocation2] sm:$0x3]
    %v2527 = vld [vmem:[#allocation2 + $0x8] sm:$0x3]
    %v2528 = vld [vmem:[#allocation2] sm:$0xc]
    %v2529 = vld [vmem:[#allocation2 + $0x8] sm:$0xc]
    %v2530 = vld [vmem:[#allocation2] sm:$0x30]
    %v2531 = vld [vmem:[#allocation2 + $0x8] sm:$0x30]
    %v2532 = vld [vmem:[#allocation2] sm:$0xc0]
    %v2533 = vld [vmem:[#allocation2 + $0x8] sm:$0xc0]
    %v2534 = vld [vmem:[#allocation2 + $0x10] sm:$0x3]
    %v2535 = vld [vmem:[#allocation2 + $0x18] sm:$0x3]
    %v2536 = vld [vmem:[#allocation2 + $0x10] sm:$0xc]
    %v2537 = vld [vmem:[#allocation2 + $0x18] sm:$0xc]
    %v2538 = vld [vmem:[#allocation2 + $0x10] sm:$0x30]
    %v2539 = vld [vmem:[#allocation2 + $0x18] sm:$0x30]
    %v2540 = vld [vmem:[#allocation2 + $0x10] sm:$0xc0]
    %v2541 = vld [vmem:[#allocation2 + $0x18] sm:$0xc0]
    %v2544 = vrot.slane %v2528, 2
    %v2545 = vrot.slane %v2529, 2
    %v2550 = vrot.slane %v2530, 4
    %v2551 = vrot.slane %v2531, 4
    %v2556 = vrot.slane %v2532, 6
    %v2557 = vrot.slane %v2533, 6
    %v2562 = vrot.slane %v2536, 2
    %v2563 = vrot.slane %v2537, 2
    %v2568 = vrot.slane %v2538, 4
    %v2569 = vrot.slane %v2539, 4
    %v2574 = vrot.slane %v2540, 6
    %v2575 = vrot.slane %v2541, 6
    %v2578 = vpack.c.bf16 %v2526, %v2526
    %v2579 = vpack.c.bf16 %v2527, %v2527
    %v2580 = vpack.c.bf16 %v2544, %v2544
    %v2581 = vpack.c.bf16 %v2545, %v2545
    %v2582 = vpack.c.bf16 %v2550, %v2550
    %v2583 = vpack.c.bf16 %v2551, %v2551
    %v2584 = vpack.c.bf16 %v2556, %v2556
    %v2585 = vpack.c.bf16 %v2557, %v2557
    %v2586 = vpack.c.bf16 %v2534, %v2534
    %v2587 = vpack.c.bf16 %v2535, %v2535
    %v2588 = vpack.c.bf16 %v2562, %v2562
    %v2589 = vpack.c.bf16 %v2563, %v2563
    %v2590 = vpack.c.bf16 %v2568, %v2568
    %v2591 = vpack.c.bf16 %v2569, %v2569
    %v2592 = vpack.c.bf16 %v2574, %v2574
    %v2593 = vpack.c.bf16 %v2575, %v2575
    %v2594 = vld [vmem:[#allocation8] sm:$0xff]
    %v2595 = vld [vmem:[#allocation8 + $0x8] sm:$0xff]
    %v2596 = vld [vmem:[#allocation8 + $0x10] sm:$0xff]
    %v2597 = vld [vmem:[#allocation8 + $0x18] sm:$0xff]
    %v2598 = vld [vmem:[#allocation8 + $0x20] sm:$0xff]
    %v2599 = vld [vmem:[#allocation8 + $0x28] sm:$0xff]
    %v2600 = vld [vmem:[#allocation8 + $0x30] sm:$0xff]
    %v2601 = vld [vmem:[#allocation8 + $0x38] sm:$0xff]
    %v2602 = vld [vmem:[#allocation8 + $0x40] sm:$0xff]
    %v2603 = vld [vmem:[#allocation8 + $0x48] sm:$0xff]
    %v2604 = vld [vmem:[#allocation8 + $0x50] sm:$0xff]
    %v2605 = vld [vmem:[#allocation8 + $0x58] sm:$0xff]
    %v2606 = vld [vmem:[#allocation8 + $0x60] sm:$0xff]
    %v2607 = vld [vmem:[#allocation8 + $0x68] sm:$0xff]
    %v2608 = vld [vmem:[#allocation8 + $0x70] sm:$0xff]
    %v2609 = vld [vmem:[#allocation8 + $0x78] sm:$0xff]
    %v2610 = vld [vmem:[#allocation8 + $0x80] sm:$0xff]
    %v2611 = vld [vmem:[#allocation8 + $0x88] sm:$0xff]
    %v2612 = vld [vmem:[#allocation8 + $0x90] sm:$0xff]
    %v2613 = vld [vmem:[#allocation8 + $0x98] sm:$0xff]
    %v2614 = vld [vmem:[#allocation8 + $0xa0] sm:$0xff]
    %v2615 = vld [vmem:[#allocation8 + $0xa8] sm:$0xff]
    %v2616 = vld [vmem:[#allocation8 + $0xb0] sm:$0xff]
    %v2617 = vld [vmem:[#allocation8 + $0xb8] sm:$0xff]
    %v2618 = vld [vmem:[#allocation8 + $0xc0] sm:$0xff]
    %v2619 = vld [vmem:[#allocation8 + $0xc8] sm:$0xff]
    %v2620 = vld [vmem:[#allocation8 + $0xd0] sm:$0xff]
    %v2621 = vld [vmem:[#allocation8 + $0xd8] sm:$0xff]
    %v2622 = vld [vmem:[#allocation8 + $0xe0] sm:$0xff]
    %v2623 = vld [vmem:[#allocation8 + $0xe8] sm:$0xff]
    %v2624 = vld [vmem:[#allocation8 + $0xf0] sm:$0xff]
    %v2625 = vld [vmem:[#allocation8 + $0xf8] sm:$0xff]
    %v2626 = vld [vmem:[#allocation8 + $0x100] sm:$0xff]
    %v2627 = vld [vmem:[#allocation8 + $0x108] sm:$0xff]
    %v2628 = vld [vmem:[#allocation8 + $0x110] sm:$0xff]
    %v2629 = vld [vmem:[#allocation8 + $0x118] sm:$0xff]
    %v2630 = vld [vmem:[#allocation8 + $0x120] sm:$0xff]
    %v2631 = vld [vmem:[#allocation8 + $0x128] sm:$0xff]
    %v2632 = vld [vmem:[#allocation8 + $0x130] sm:$0xff]
    %v2633 = vld [vmem:[#allocation8 + $0x138] sm:$0xff]
    %v2634 = vld [vmem:[#allocation8 + $0x140] sm:$0xff]
    %v2635 = vld [vmem:[#allocation8 + $0x148] sm:$0xff]
    %v2636 = vld [vmem:[#allocation8 + $0x150] sm:$0xff]
    %v2637 = vld [vmem:[#allocation8 + $0x158] sm:$0xff]
    %v2638 = vld [vmem:[#allocation8 + $0x160] sm:$0xff]
    %v2639 = vld [vmem:[#allocation8 + $0x168] sm:$0xff]
    %v2640 = vld [vmem:[#allocation8 + $0x170] sm:$0xff]
    %v2641 = vld [vmem:[#allocation8 + $0x178] sm:$0xff]
    %v2642 = vld [vmem:[#allocation8 + $0x180] sm:$0xff]
    %v2643 = vld [vmem:[#allocation8 + $0x188] sm:$0xff]
    %v2644 = vld [vmem:[#allocation8 + $0x190] sm:$0xff]
    %v2645 = vld [vmem:[#allocation8 + $0x198] sm:$0xff]
    %v2646 = vld [vmem:[#allocation8 + $0x1a0] sm:$0xff]
    %v2647 = vld [vmem:[#allocation8 + $0x1a8] sm:$0xff]
    %v2648 = vld [vmem:[#allocation8 + $0x1b0] sm:$0xff]
    %v2649 = vld [vmem:[#allocation8 + $0x1b8] sm:$0xff]
    %v2650 = vld [vmem:[#allocation8 + $0x1c0] sm:$0xff]
    %v2651 = vld [vmem:[#allocation8 + $0x1c8] sm:$0xff]
    %v2652 = vld [vmem:[#allocation8 + $0x1d0] sm:$0xff]
    %v2653 = vld [vmem:[#allocation8 + $0x1d8] sm:$0xff]
    %v2654 = vld [vmem:[#allocation8 + $0x1e0] sm:$0xff]
    %v2655 = vld [vmem:[#allocation8 + $0x1e8] sm:$0xff]
    %v2656 = vld [vmem:[#allocation8 + $0x1f0] sm:$0xff]
    %v2657 = vld [vmem:[#allocation8 + $0x1f8] sm:$0xff]
    %v2658 = vld [vmem:[#allocation8 + $0x200] sm:$0xff]
    %v2659 = vld [vmem:[#allocation8 + $0x208] sm:$0xff]
    %v2660 = vld [vmem:[#allocation8 + $0x210] sm:$0xff]
    %v2661 = vld [vmem:[#allocation8 + $0x218] sm:$0xff]
    %v2662 = vld [vmem:[#allocation8 + $0x220] sm:$0xff]
    %v2663 = vld [vmem:[#allocation8 + $0x228] sm:$0xff]
    %v2664 = vld [vmem:[#allocation8 + $0x230] sm:$0xff]
    %v2665 = vld [vmem:[#allocation8 + $0x238] sm:$0xff]
    %v2666 = vld [vmem:[#allocation8 + $0x240] sm:$0xff]
    %v2667 = vld [vmem:[#allocation8 + $0x248] sm:$0xff]
    %v2668 = vld [vmem:[#allocation8 + $0x250] sm:$0xff]
    %v2669 = vld [vmem:[#allocation8 + $0x258] sm:$0xff]
    %v2670 = vld [vmem:[#allocation8 + $0x260] sm:$0xff]
    %v2671 = vld [vmem:[#allocation8 + $0x268] sm:$0xff]
    %v2672 = vld [vmem:[#allocation8 + $0x270] sm:$0xff]
    %v2673 = vld [vmem:[#allocation8 + $0x278] sm:$0xff]
    %v2674 = vld [vmem:[#allocation8 + $0x280] sm:$0xff]
    %v2675 = vld [vmem:[#allocation8 + $0x288] sm:$0xff]
    %v2676 = vld [vmem:[#allocation8 + $0x290] sm:$0xff]
    %v2677 = vld [vmem:[#allocation8 + $0x298] sm:$0xff]
    %v2678 = vld [vmem:[#allocation8 + $0x2a0] sm:$0xff]
    %v2679 = vld [vmem:[#allocation8 + $0x2a8] sm:$0xff]
    %v2680 = vld [vmem:[#allocation8 + $0x2b0] sm:$0xff]
    %v2681 = vld [vmem:[#allocation8 + $0x2b8] sm:$0xff]
    %v2682 = vld [vmem:[#allocation8 + $0x2c0] sm:$0xff]
    %v2683 = vld [vmem:[#allocation8 + $0x2c8] sm:$0xff]
    %v2684 = vld [vmem:[#allocation8 + $0x2d0] sm:$0xff]
    %v2685 = vld [vmem:[#allocation8 + $0x2d8] sm:$0xff]
    %v2686 = vld [vmem:[#allocation8 + $0x2e0] sm:$0xff]
    %v2687 = vld [vmem:[#allocation8 + $0x2e8] sm:$0xff]
    %v2688 = vld [vmem:[#allocation8 + $0x2f0] sm:$0xff]
    %v2689 = vld [vmem:[#allocation8 + $0x2f8] sm:$0xff]
    %v2690 = vld [vmem:[#allocation8 + $0x300] sm:$0xff]
    %v2691 = vld [vmem:[#allocation8 + $0x308] sm:$0xff]
    %v2692 = vld [vmem:[#allocation8 + $0x310] sm:$0xff]
    %v2693 = vld [vmem:[#allocation8 + $0x318] sm:$0xff]
    %v2694 = vld [vmem:[#allocation8 + $0x320] sm:$0xff]
    %v2695 = vld [vmem:[#allocation8 + $0x328] sm:$0xff]
    %v2696 = vld [vmem:[#allocation8 + $0x330] sm:$0xff]
    %v2697 = vld [vmem:[#allocation8 + $0x338] sm:$0xff]
    %v2698 = vld [vmem:[#allocation8 + $0x340] sm:$0xff]
    %v2699 = vld [vmem:[#allocation8 + $0x348] sm:$0xff]
    %v2700 = vld [vmem:[#allocation8 + $0x350] sm:$0xff]
    %v2701 = vld [vmem:[#allocation8 + $0x358] sm:$0xff]
    %v2702 = vld [vmem:[#allocation8 + $0x360] sm:$0xff]
    %v2703 = vld [vmem:[#allocation8 + $0x368] sm:$0xff]
    %v2704 = vld [vmem:[#allocation8 + $0x370] sm:$0xff]
    %v2705 = vld [vmem:[#allocation8 + $0x378] sm:$0xff]
    %v2706 = vld [vmem:[#allocation8 + $0x380] sm:$0xff]
    %v2707 = vld [vmem:[#allocation8 + $0x388] sm:$0xff]
    %v2708 = vld [vmem:[#allocation8 + $0x390] sm:$0xff]
    %v2709 = vld [vmem:[#allocation8 + $0x398] sm:$0xff]
    %v2710 = vld [vmem:[#allocation8 + $0x3a0] sm:$0xff]
    %v2711 = vld [vmem:[#allocation8 + $0x3a8] sm:$0xff]
    %v2712 = vld [vmem:[#allocation8 + $0x3b0] sm:$0xff]
    %v2713 = vld [vmem:[#allocation8 + $0x3b8] sm:$0xff]
    %v2714 = vld [vmem:[#allocation8 + $0x3c0] sm:$0xff]
    %v2715 = vld [vmem:[#allocation8 + $0x3c8] sm:$0xff]
    %v2716 = vld [vmem:[#allocation8 + $0x3d0] sm:$0xff]
    %v2717 = vld [vmem:[#allocation8 + $0x3d8] sm:$0xff]
    %v2718 = vld [vmem:[#allocation8 + $0x3e0] sm:$0xff]
    %v2719 = vld [vmem:[#allocation8 + $0x3e8] sm:$0xff]
    %v2720 = vld [vmem:[#allocation8 + $0x3f0] sm:$0xff]
    %v2721 = vld [vmem:[#allocation8 + $0x3f8] sm:$0xff]
    %v2722 = vld [vmem:[#allocation8 + $0x400] sm:$0xff]
    %v2723 = vld [vmem:[#allocation8 + $0x408] sm:$0xff]
    %v2724 = vld [vmem:[#allocation8 + $0x410] sm:$0xff]
    %v2725 = vld [vmem:[#allocation8 + $0x418] sm:$0xff]
    %v2726 = vld [vmem:[#allocation8 + $0x420] sm:$0xff]
    %v2727 = vld [vmem:[#allocation8 + $0x428] sm:$0xff]
    %v2728 = vld [vmem:[#allocation8 + $0x430] sm:$0xff]
    %v2729 = vld [vmem:[#allocation8 + $0x438] sm:$0xff]
    %v2730 = vld [vmem:[#allocation8 + $0x440] sm:$0xff]
    %v2731 = vld [vmem:[#allocation8 + $0x448] sm:$0xff]
    %v2732 = vld [vmem:[#allocation8 + $0x450] sm:$0xff]
    %v2733 = vld [vmem:[#allocation8 + $0x458] sm:$0xff]
    %v2734 = vld [vmem:[#allocation8 + $0x460] sm:$0xff]
    %v2735 = vld [vmem:[#allocation8 + $0x468] sm:$0xff]
    %v2736 = vld [vmem:[#allocation8 + $0x470] sm:$0xff]
    %v2737 = vld [vmem:[#allocation8 + $0x478] sm:$0xff]
    %v2738 = vld [vmem:[#allocation8 + $0x480] sm:$0xff]
    %v2739 = vld [vmem:[#allocation8 + $0x488] sm:$0xff]
    %v2740 = vld [vmem:[#allocation8 + $0x490] sm:$0xff]
    %v2741 = vld [vmem:[#allocation8 + $0x498] sm:$0xff]
    %v2742 = vld [vmem:[#allocation8 + $0x4a0] sm:$0xff]
    %v2743 = vld [vmem:[#allocation8 + $0x4a8] sm:$0xff]
    %v2744 = vld [vmem:[#allocation8 + $0x4b0] sm:$0xff]
    %v2745 = vld [vmem:[#allocation8 + $0x4b8] sm:$0xff]
    %v2746 = vld [vmem:[#allocation8 + $0x4c0] sm:$0xff]
    %v2747 = vld [vmem:[#allocation8 + $0x4c8] sm:$0xff]
    %v2748 = vld [vmem:[#allocation8 + $0x4d0] sm:$0xff]
    %v2749 = vld [vmem:[#allocation8 + $0x4d8] sm:$0xff]
    %v2750 = vld [vmem:[#allocation8 + $0x4e0] sm:$0xff]
    %v2751 = vld [vmem:[#allocation8 + $0x4e8] sm:$0xff]
    %v2752 = vld [vmem:[#allocation8 + $0x4f0] sm:$0xff]
    %v2753 = vld [vmem:[#allocation8 + $0x4f8] sm:$0xff]
    %v2754 = vld [vmem:[#allocation8 + $0x500] sm:$0xff]
    %v2755 = vld [vmem:[#allocation8 + $0x508] sm:$0xff]
    %v2756 = vld [vmem:[#allocation8 + $0x510] sm:$0xff]
    %v2757 = vld [vmem:[#allocation8 + $0x518] sm:$0xff]
    %v2758 = vld [vmem:[#allocation8 + $0x520] sm:$0xff]
    %v2759 = vld [vmem:[#allocation8 + $0x528] sm:$0xff]
    %v2760 = vld [vmem:[#allocation8 + $0x530] sm:$0xff]
    %v2761 = vld [vmem:[#allocation8 + $0x538] sm:$0xff]
    %v2762 = vld [vmem:[#allocation8 + $0x540] sm:$0xff]
    %v2763 = vld [vmem:[#allocation8 + $0x548] sm:$0xff]
    %v2764 = vld [vmem:[#allocation8 + $0x550] sm:$0xff]
    %v2765 = vld [vmem:[#allocation8 + $0x558] sm:$0xff]
    %v2766 = vld [vmem:[#allocation8 + $0x560] sm:$0xff]
    %v2767 = vld [vmem:[#allocation8 + $0x568] sm:$0xff]
    %v2768 = vld [vmem:[#allocation8 + $0x570] sm:$0xff]
    %v2769 = vld [vmem:[#allocation8 + $0x578] sm:$0xff]
    %v2770 = vld [vmem:[#allocation8 + $0x580] sm:$0xff]
    %v2771 = vld [vmem:[#allocation8 + $0x588] sm:$0xff]
    %v2772 = vld [vmem:[#allocation8 + $0x590] sm:$0xff]
    %v2773 = vld [vmem:[#allocation8 + $0x598] sm:$0xff]
    %v2774 = vld [vmem:[#allocation8 + $0x5a0] sm:$0xff]
    %v2775 = vld [vmem:[#allocation8 + $0x5a8] sm:$0xff]
    %v2776 = vld [vmem:[#allocation8 + $0x5b0] sm:$0xff]
    %v2777 = vld [vmem:[#allocation8 + $0x5b8] sm:$0xff]
    %v2778 = vld [vmem:[#allocation8 + $0x5c0] sm:$0xff]
    %v2779 = vld [vmem:[#allocation8 + $0x5c8] sm:$0xff]
    %v2780 = vld [vmem:[#allocation8 + $0x5d0] sm:$0xff]
    %v2781 = vld [vmem:[#allocation8 + $0x5d8] sm:$0xff]
    %v2782 = vld [vmem:[#allocation8 + $0x5e0] sm:$0xff]
    %v2783 = vld [vmem:[#allocation8 + $0x5e8] sm:$0xff]
    %v2784 = vld [vmem:[#allocation8 + $0x5f0] sm:$0xff]
    %v2785 = vld [vmem:[#allocation8 + $0x5f8] sm:$0xff]
    %v2786 = vld [vmem:[#allocation8 + $0x600] sm:$0xff]
    %v2787 = vld [vmem:[#allocation8 + $0x608] sm:$0xff]
    %v2788 = vld [vmem:[#allocation8 + $0x610] sm:$0xff]
    %v2789 = vld [vmem:[#allocation8 + $0x618] sm:$0xff]
    %v2790 = vld [vmem:[#allocation8 + $0x620] sm:$0xff]
    %v2791 = vld [vmem:[#allocation8 + $0x628] sm:$0xff]
    %v2792 = vld [vmem:[#allocation8 + $0x630] sm:$0xff]
    %v2793 = vld [vmem:[#allocation8 + $0x638] sm:$0xff]
    %v2794 = vld [vmem:[#allocation8 + $0x640] sm:$0xff]
    %v2795 = vld [vmem:[#allocation8 + $0x648] sm:$0xff]
    %v2796 = vld [vmem:[#allocation8 + $0x650] sm:$0xff]
    %v2797 = vld [vmem:[#allocation8 + $0x658] sm:$0xff]
    %v2798 = vld [vmem:[#allocation8 + $0x660] sm:$0xff]
    %v2799 = vld [vmem:[#allocation8 + $0x668] sm:$0xff]
    %v2800 = vld [vmem:[#allocation8 + $0x670] sm:$0xff]
    %v2801 = vld [vmem:[#allocation8 + $0x678] sm:$0xff]
    %v2802 = vld [vmem:[#allocation8 + $0x680] sm:$0xff]
    %v2803 = vld [vmem:[#allocation8 + $0x688] sm:$0xff]
    %v2804 = vld [vmem:[#allocation8 + $0x690] sm:$0xff]
    %v2805 = vld [vmem:[#allocation8 + $0x698] sm:$0xff]
    %v2806 = vld [vmem:[#allocation8 + $0x6a0] sm:$0xff]
    %v2807 = vld [vmem:[#allocation8 + $0x6a8] sm:$0xff]
    %v2808 = vld [vmem:[#allocation8 + $0x6b0] sm:$0xff]
    %v2809 = vld [vmem:[#allocation8 + $0x6b8] sm:$0xff]
    %v2810 = vld [vmem:[#allocation8 + $0x6c0] sm:$0xff]
    %v2811 = vld [vmem:[#allocation8 + $0x6c8] sm:$0xff]
    %v2812 = vld [vmem:[#allocation8 + $0x6d0] sm:$0xff]
    %v2813 = vld [vmem:[#allocation8 + $0x6d8] sm:$0xff]
    %v2814 = vld [vmem:[#allocation8 + $0x6e0] sm:$0xff]
    %v2815 = vld [vmem:[#allocation8 + $0x6e8] sm:$0xff]
    %v2816 = vld [vmem:[#allocation8 + $0x6f0] sm:$0xff]
    %v2817 = vld [vmem:[#allocation8 + $0x6f8] sm:$0xff]
    %v2818 = vld [vmem:[#allocation8 + $0x700] sm:$0xff]
    %v2819 = vld [vmem:[#allocation8 + $0x708] sm:$0xff]
    %v2820 = vld [vmem:[#allocation8 + $0x710] sm:$0xff]
    %v2821 = vld [vmem:[#allocation8 + $0x718] sm:$0xff]
    %v2822 = vld [vmem:[#allocation8 + $0x720] sm:$0xff]
    %v2823 = vld [vmem:[#allocation8 + $0x728] sm:$0xff]
    %v2824 = vld [vmem:[#allocation8 + $0x730] sm:$0xff]
    %v2825 = vld [vmem:[#allocation8 + $0x738] sm:$0xff]
    %v2826 = vld [vmem:[#allocation8 + $0x740] sm:$0xff]
    %v2827 = vld [vmem:[#allocation8 + $0x748] sm:$0xff]
    %v2828 = vld [vmem:[#allocation8 + $0x750] sm:$0xff]
    %v2829 = vld [vmem:[#allocation8 + $0x758] sm:$0xff]
    %v2830 = vld [vmem:[#allocation8 + $0x760] sm:$0xff]
    %v2831 = vld [vmem:[#allocation8 + $0x768] sm:$0xff]
    %v2832 = vld [vmem:[#allocation8 + $0x770] sm:$0xff]
    %v2833 = vld [vmem:[#allocation8 + $0x778] sm:$0xff]
    %v2834 = vld [vmem:[#allocation8 + $0x780] sm:$0xff]
    %v2835 = vld [vmem:[#allocation8 + $0x788] sm:$0xff]
    %v2836 = vld [vmem:[#allocation8 + $0x790] sm:$0xff]
    %v2837 = vld [vmem:[#allocation8 + $0x798] sm:$0xff]
    %v2838 = vld [vmem:[#allocation8 + $0x7a0] sm:$0xff]
    %v2839 = vld [vmem:[#allocation8 + $0x7a8] sm:$0xff]
    %v2840 = vld [vmem:[#allocation8 + $0x7b0] sm:$0xff]
    %v2841 = vld [vmem:[#allocation8 + $0x7b8] sm:$0xff]
    %v2842 = vld [vmem:[#allocation8 + $0x7c0] sm:$0xff]
    %v2843 = vld [vmem:[#allocation8 + $0x7c8] sm:$0xff]
    %v2844 = vld [vmem:[#allocation8 + $0x7d0] sm:$0xff]
    %v2845 = vld [vmem:[#allocation8 + $0x7d8] sm:$0xff]
    %v2846 = vld [vmem:[#allocation8 + $0x7e0] sm:$0xff]
    %v2847 = vld [vmem:[#allocation8 + $0x7e8] sm:$0xff]
    %v2848 = vld [vmem:[#allocation8 + $0x7f0] sm:$0xff]
    %v2849 = vld [vmem:[#allocation8 + $0x7f8] sm:$0xff]
    %v2850 = vld [vmem:[%s6] sm:$0x3]
    %v2852 = vperm.slane %v2850, 0
    %v2853 = vperm.slane %v2850, 1
    %v3112 = vunpack.c.l.b16 %v2594
    %v3113 = vunpack.c.h.b16 %v2594
    %v3114 = vunpack.c.l.b16 %v2595
    %v3115 = vunpack.c.h.b16 %v2595
    %v3116 = vunpack.c.l.b16 %v2596
    %v3117 = vunpack.c.h.b16 %v2596
    %v3118 = vunpack.c.l.b16 %v2597
    %v3119 = vunpack.c.h.b16 %v2597
    %v3120 = vunpack.c.l.b16 %v2598
    %v3121 = vunpack.c.h.b16 %v2598
    %v3122 = vunpack.c.l.b16 %v2599
    %v3123 = vunpack.c.h.b16 %v2599
    %v3124 = vunpack.c.l.b16 %v2600
    %v3125 = vunpack.c.h.b16 %v2600
    %v3126 = vunpack.c.l.b16 %v2601
    %v3127 = vunpack.c.h.b16 %v2601
    %v3128 = vunpack.c.l.b16 %v2602
    %v3129 = vunpack.c.h.b16 %v2602
    %v3130 = vunpack.c.l.b16 %v2603
    %v3131 = vunpack.c.h.b16 %v2603
    %v3132 = vunpack.c.l.b16 %v2604
    %v3133 = vunpack.c.h.b16 %v2604
    %v3134 = vunpack.c.l.b16 %v2605
    %v3135 = vunpack.c.h.b16 %v2605
    %v3136 = vunpack.c.l.b16 %v2606
    %v3137 = vunpack.c.h.b16 %v2606
    %v3138 = vunpack.c.l.b16 %v2607
    %v3139 = vunpack.c.h.b16 %v2607
    %v3140 = vunpack.c.l.b16 %v2608
    %v3141 = vunpack.c.h.b16 %v2608
    %v3142 = vunpack.c.l.b16 %v2609
    %v3143 = vunpack.c.h.b16 %v2609
    %v3144 = vunpack.c.l.b16 %v2610
    %v3145 = vunpack.c.h.b16 %v2610
    %v3146 = vunpack.c.l.b16 %v2611
    %v3147 = vunpack.c.h.b16 %v2611
    %v3148 = vunpack.c.l.b16 %v2612
    %v3149 = vunpack.c.h.b16 %v2612
    %v3150 = vunpack.c.l.b16 %v2613
    %v3151 = vunpack.c.h.b16 %v2613
    %v3152 = vunpack.c.l.b16 %v2614
    %v3153 = vunpack.c.h.b16 %v2614
    %v3154 = vunpack.c.l.b16 %v2615
    %v3155 = vunpack.c.h.b16 %v2615
    %v3156 = vunpack.c.l.b16 %v2616
    %v3157 = vunpack.c.h.b16 %v2616
    %v3158 = vunpack.c.l.b16 %v2617
    %v3159 = vunpack.c.h.b16 %v2617
    %v3160 = vunpack.c.l.b16 %v2618
    %v3161 = vunpack.c.h.b16 %v2618
    %v3162 = vunpack.c.l.b16 %v2619
    %v3163 = vunpack.c.h.b16 %v2619
    %v3164 = vunpack.c.l.b16 %v2620
    %v3165 = vunpack.c.h.b16 %v2620
    %v3166 = vunpack.c.l.b16 %v2621
    %v3167 = vunpack.c.h.b16 %v2621
    %v3168 = vunpack.c.l.b16 %v2622
    %v3169 = vunpack.c.h.b16 %v2622
    %v3170 = vunpack.c.l.b16 %v2623
    %v3171 = vunpack.c.h.b16 %v2623
    %v3172 = vunpack.c.l.b16 %v2624
    %v3173 = vunpack.c.h.b16 %v2624
    %v3174 = vunpack.c.l.b16 %v2625
    %v3175 = vunpack.c.h.b16 %v2625
    %v3176 = vunpack.c.l.b16 %v2626
    %v3177 = vunpack.c.h.b16 %v2626
    %v3178 = vunpack.c.l.b16 %v2627
    %v3179 = vunpack.c.h.b16 %v2627
    %v3180 = vunpack.c.l.b16 %v2628
    %v3181 = vunpack.c.h.b16 %v2628
    %v3182 = vunpack.c.l.b16 %v2629
    %v3183 = vunpack.c.h.b16 %v2629
    %v3184 = vunpack.c.l.b16 %v2630
    %v3185 = vunpack.c.h.b16 %v2630
    %v3186 = vunpack.c.l.b16 %v2631
    %v3187 = vunpack.c.h.b16 %v2631
    %v3188 = vunpack.c.l.b16 %v2632
    %v3189 = vunpack.c.h.b16 %v2632
    %v3190 = vunpack.c.l.b16 %v2633
    %v3191 = vunpack.c.h.b16 %v2633
    %v3192 = vunpack.c.l.b16 %v2634
    %v3193 = vunpack.c.h.b16 %v2634
    %v3194 = vunpack.c.l.b16 %v2635
    %v3195 = vunpack.c.h.b16 %v2635
    %v3196 = vunpack.c.l.b16 %v2636
    %v3197 = vunpack.c.h.b16 %v2636
    %v3198 = vunpack.c.l.b16 %v2637
    %v3199 = vunpack.c.h.b16 %v2637
    %v3200 = vunpack.c.l.b16 %v2638
    %v3201 = vunpack.c.h.b16 %v2638
    %v3202 = vunpack.c.l.b16 %v2639
    %v3203 = vunpack.c.h.b16 %v2639
    %v3204 = vunpack.c.l.b16 %v2640
    %v3205 = vunpack.c.h.b16 %v2640
    %v3206 = vunpack.c.l.b16 %v2641
    %v3207 = vunpack.c.h.b16 %v2641
    %v3208 = vunpack.c.l.b16 %v2642
    %v3209 = vunpack.c.h.b16 %v2642
    %v3210 = vunpack.c.l.b16 %v2643
    %v3211 = vunpack.c.h.b16 %v2643
    %v3212 = vunpack.c.l.b16 %v2644
    %v3213 = vunpack.c.h.b16 %v2644
    %v3214 = vunpack.c.l.b16 %v2645
    %v3215 = vunpack.c.h.b16 %v2645
    %v3216 = vunpack.c.l.b16 %v2646
    %v3217 = vunpack.c.h.b16 %v2646
    %v3218 = vunpack.c.l.b16 %v2647
    %v3219 = vunpack.c.h.b16 %v2647
    %v3220 = vunpack.c.l.b16 %v2648
    %v3221 = vunpack.c.h.b16 %v2648
    %v3222 = vunpack.c.l.b16 %v2649
    %v3223 = vunpack.c.h.b16 %v2649
    %v3224 = vunpack.c.l.b16 %v2650
    %v3225 = vunpack.c.h.b16 %v2650
    %v3226 = vunpack.c.l.b16 %v2651
    %v3227 = vunpack.c.h.b16 %v2651
    %v3228 = vunpack.c.l.b16 %v2652
    %v3229 = vunpack.c.h.b16 %v2652
    %v3230 = vunpack.c.l.b16 %v2653
    %v3231 = vunpack.c.h.b16 %v2653
    %v3232 = vunpack.c.l.b16 %v2654
    %v3233 = vunpack.c.h.b16 %v2654
    %v3234 = vunpack.c.l.b16 %v2655
    %v3235 = vunpack.c.h.b16 %v2655
    %v3236 = vunpack.c.l.b16 %v2656
    %v3237 = vunpack.c.h.b16 %v2656
    %v3238 = vunpack.c.l.b16 %v2657
    %v3239 = vunpack.c.h.b16 %v2657
    %v3240 = vunpack.c.l.b16 %v2658
    %v3241 = vunpack.c.h.b16 %v2658
    %v3242 = vunpack.c.l.b16 %v2659
    %v3243 = vunpack.c.h.b16 %v2659
    %v3244 = vunpack.c.l.b16 %v2660
    %v3245 = vunpack.c.h.b16 %v2660
    %v3246 = vunpack.c.l.b16 %v2661
    %v3247 = vunpack.c.h.b16 %v2661
    %v3248 = vunpack.c.l.b16 %v2662
    %v3249 = vunpack.c.h.b16 %v2662
    %v3250 = vunpack.c.l.b16 %v2663
    %v3251 = vunpack.c.h.b16 %v2663
    %v3252 = vunpack.c.l.b16 %v2664
    %v3253 = vunpack.c.h.b16 %v2664
    %v3254 = vunpack.c.l.b16 %v2665
    %v3255 = vunpack.c.h.b16 %v2665
    %v3256 = vunpack.c.l.b16 %v2666
    %v3257 = vunpack.c.h.b16 %v2666
    %v3258 = vunpack.c.l.b16 %v2667
    %v3259 = vunpack.c.h.b16 %v2667
    %v3260 = vunpack.c.l.b16 %v2668
    %v3261 = vunpack.c.h.b16 %v2668
    %v3262 = vunpack.c.l.b16 %v2669
    %v3263 = vunpack.c.h.b16 %v2669
    %v3264 = vunpack.c.l.b16 %v2670
    %v3265 = vunpack.c.h.b16 %v2670
    %v3266 = vunpack.c.l.b16 %v2671
    %v3267 = vunpack.c.h.b16 %v2671
    %v3268 = vunpack.c.l.b16 %v2672
    %v3269 = vunpack.c.h.b16 %v2672
    %v3270 = vunpack.c.l.b16 %v2673
    %v3271 = vunpack.c.h.b16 %v2673
    %v3272 = vunpack.c.l.b16 %v2674
    %v3273 = vunpack.c.h.b16 %v2674
    %v3274 = vunpack.c.l.b16 %v2675
    %v3275 = vunpack.c.h.b16 %v2675
    %v3276 = vunpack.c.l.b16 %v2676
    %v3277 = vunpack.c.h.b16 %v2676
    %v3278 = vunpack.c.l.b16 %v2677
    %v3279 = vunpack.c.h.b16 %v2677
    %v3280 = vunpack.c.l.b16 %v2678
    %v3281 = vunpack.c.h.b16 %v2678
    %v3282 = vunpack.c.l.b16 %v2679
    %v3283 = vunpack.c.h.b16 %v2679
    %v3284 = vunpack.c.l.b16 %v2680
    %v3285 = vunpack.c.h.b16 %v2680
    %v3286 = vunpack.c.l.b16 %v2681
    %v3287 = vunpack.c.h.b16 %v2681
    %v3288 = vunpack.c.l.b16 %v2682
    %v3289 = vunpack.c.h.b16 %v2682
    %v3290 = vunpack.c.l.b16 %v2683
    %v3291 = vunpack.c.h.b16 %v2683
    %v3292 = vunpack.c.l.b16 %v2684
    %v3293 = vunpack.c.h.b16 %v2684
    %v3294 = vunpack.c.l.b16 %v2685
    %v3295 = vunpack.c.h.b16 %v2685
    %v3296 = vunpack.c.l.b16 %v2686
    %v3297 = vunpack.c.h.b16 %v2686
    %v3298 = vunpack.c.l.b16 %v2687
    %v3299 = vunpack.c.h.b16 %v2687
    %v3300 = vunpack.c.l.b16 %v2688
    %v3301 = vunpack.c.h.b16 %v2688
    %v3302 = vunpack.c.l.b16 %v2689
    %v3303 = vunpack.c.h.b16 %v2689
    %v3304 = vunpack.c.l.b16 %v2690
    %v3305 = vunpack.c.h.b16 %v2690
    %v3306 = vunpack.c.l.b16 %v2691
    %v3307 = vunpack.c.h.b16 %v2691
    %v3308 = vunpack.c.l.b16 %v2692
    %v3309 = vunpack.c.h.b16 %v2692
    %v3310 = vunpack.c.l.b16 %v2693
    %v3311 = vunpack.c.h.b16 %v2693
    %v3312 = vunpack.c.l.b16 %v2694
    %v3313 = vunpack.c.h.b16 %v2694
    %v3314 = vunpack.c.l.b16 %v2695
    %v3315 = vunpack.c.h.b16 %v2695
    %v3316 = vunpack.c.l.b16 %v2696
    %v3317 = vunpack.c.h.b16 %v2696
    %v3318 = vunpack.c.l.b16 %v2697
    %v3319 = vunpack.c.h.b16 %v2697
    %v3320 = vunpack.c.l.b16 %v2698
    %v3321 = vunpack.c.h.b16 %v2698
    %v3322 = vunpack.c.l.b16 %v2699
    %v3323 = vunpack.c.h.b16 %v2699
    %v3324 = vunpack.c.l.b16 %v2700
    %v3325 = vunpack.c.h.b16 %v2700
    %v3326 = vunpack.c.l.b16 %v2701
    %v3327 = vunpack.c.h.b16 %v2701
    %v3328 = vunpack.c.l.b16 %v2702
    %v3329 = vunpack.c.h.b16 %v2702
    %v3330 = vunpack.c.l.b16 %v2703
    %v3331 = vunpack.c.h.b16 %v2703
    %v3332 = vunpack.c.l.b16 %v2704
    %v3333 = vunpack.c.h.b16 %v2704
    %v3334 = vunpack.c.l.b16 %v2705
    %v3335 = vunpack.c.h.b16 %v2705
    %v3336 = vunpack.c.l.b16 %v2706
    %v3337 = vunpack.c.h.b16 %v2706
    %v3338 = vunpack.c.l.b16 %v2707
    %v3339 = vunpack.c.h.b16 %v2707
    %v3340 = vunpack.c.l.b16 %v2708
    %v3341 = vunpack.c.h.b16 %v2708
    %v3342 = vunpack.c.l.b16 %v2709
    %v3343 = vunpack.c.h.b16 %v2709
    %v3344 = vunpack.c.l.b16 %v2710
    %v3345 = vunpack.c.h.b16 %v2710
    %v3346 = vunpack.c.l.b16 %v2711
    %v3347 = vunpack.c.h.b16 %v2711
    %v3348 = vunpack.c.l.b16 %v2712
    %v3349 = vunpack.c.h.b16 %v2712
    %v3350 = vunpack.c.l.b16 %v2713
    %v3351 = vunpack.c.h.b16 %v2713
    %v3352 = vunpack.c.l.b16 %v2714
    %v3353 = vunpack.c.h.b16 %v2714
    %v3354 = vunpack.c.l.b16 %v2715
    %v3355 = vunpack.c.h.b16 %v2715
    %v3356 = vunpack.c.l.b16 %v2716
    %v3357 = vunpack.c.h.b16 %v2716
    %v3358 = vunpack.c.l.b16 %v2717
    %v3359 = vunpack.c.h.b16 %v2717
    %v3360 = vunpack.c.l.b16 %v2718
    %v3361 = vunpack.c.h.b16 %v2718
    %v3362 = vunpack.c.l.b16 %v2719
    %v3363 = vunpack.c.h.b16 %v2719
    %v3364 = vunpack.c.l.b16 %v2720
    %v3365 = vunpack.c.h.b16 %v2720
    %v3366 = vunpack.c.l.b16 %v2721
    %v3367 = vunpack.c.h.b16 %v2721
    %v3368 = vunpack.c.l.b16 %v2722
    %v3369 = vunpack.c.h.b16 %v2722
    %v3370 = vunpack.c.l.b16 %v2723
    %v3371 = vunpack.c.h.b16 %v2723
    %v3372 = vunpack.c.l.b16 %v2724
    %v3373 = vunpack.c.h.b16 %v2724
    %v3374 = vunpack.c.l.b16 %v2725
    %v3375 = vunpack.c.h.b16 %v2725
    %v3376 = vunpack.c.l.b16 %v2726
    %v3377 = vunpack.c.h.b16 %v2726
    %v3378 = vunpack.c.l.b16 %v2727
    %v3379 = vunpack.c.h.b16 %v2727
    %v3380 = vunpack.c.l.b16 %v2728
    %v3381 = vunpack.c.h.b16 %v2728
    %v3382 = vunpack.c.l.b16 %v2729
    %v3383 = vunpack.c.h.b16 %v2729
    %v3384 = vunpack.c.l.b16 %v2730
    %v3385 = vunpack.c.h.b16 %v2730
    %v3386 = vunpack.c.l.b16 %v2731
    %v3387 = vunpack.c.h.b16 %v2731
    %v3388 = vunpack.c.l.b16 %v2732
    %v3389 = vunpack.c.h.b16 %v2732
    %v3390 = vunpack.c.l.b16 %v2733
    %v3391 = vunpack.c.h.b16 %v2733
    %v3392 = vunpack.c.l.b16 %v2734
    %v3393 = vunpack.c.h.b16 %v2734
    %v3394 = vunpack.c.l.b16 %v2735
    %v3395 = vunpack.c.h.b16 %v2735
    %v3396 = vunpack.c.l.b16 %v2736
    %v3397 = vunpack.c.h.b16 %v2736
    %v3398 = vunpack.c.l.b16 %v2737
    %v3399 = vunpack.c.h.b16 %v2737
    %v3400 = vunpack.c.l.b16 %v2738
    %v3401 = vunpack.c.h.b16 %v2738
    %v3402 = vunpack.c.l.b16 %v2739
    %v3403 = vunpack.c.h.b16 %v2739
    %v3404 = vunpack.c.l.b16 %v2740
    %v3405 = vunpack.c.h.b16 %v2740
    %v3406 = vunpack.c.l.b16 %v2741
    %v3407 = vunpack.c.h.b16 %v2741
    %v3408 = vunpack.c.l.b16 %v2742
    %v3409 = vunpack.c.h.b16 %v2742
    %v3410 = vunpack.c.l.b16 %v2743
    %v3411 = vunpack.c.h.b16 %v2743
    %v3412 = vunpack.c.l.b16 %v2744
    %v3413 = vunpack.c.h.b16 %v2744
    %v3414 = vunpack.c.l.b16 %v2745
    %v3415 = vunpack.c.h.b16 %v2745
    %v3416 = vunpack.c.l.b16 %v2746
    %v3417 = vunpack.c.h.b16 %v2746
    %v3418 = vunpack.c.l.b16 %v2747
    %v3419 = vunpack.c.h.b16 %v2747
    %v3420 = vunpack.c.l.b16 %v2748
    %v3421 = vunpack.c.h.b16 %v2748
    %v3422 = vunpack.c.l.b16 %v2749
    %v3423 = vunpack.c.h.b16 %v2749
    %v3424 = vunpack.c.l.b16 %v2750
    %v3425 = vunpack.c.h.b16 %v2750
    %v3426 = vunpack.c.l.b16 %v2751
    %v3427 = vunpack.c.h.b16 %v2751
    %v3428 = vunpack.c.l.b16 %v2752
    %v3429 = vunpack.c.h.b16 %v2752
    %v3430 = vunpack.c.l.b16 %v2753
    %v3431 = vunpack.c.h.b16 %v2753
    %v3432 = vunpack.c.l.b16 %v2754
    %v3433 = vunpack.c.h.b16 %v2754
    %v3434 = vunpack.c.l.b16 %v2755
    %v3435 = vunpack.c.h.b16 %v2755
    %v3436 = vunpack.c.l.b16 %v2756
    %v3437 = vunpack.c.h.b16 %v2756
    %v3438 = vunpack.c.l.b16 %v2757
    %v3439 = vunpack.c.h.b16 %v2757
    %v3440 = vunpack.c.l.b16 %v2758
    %v3441 = vunpack.c.h.b16 %v2758
    %v3442 = vunpack.c.l.b16 %v2759
    %v3443 = vunpack.c.h.b16 %v2759
    %v3444 = vunpack.c.l.b16 %v2760
    %v3445 = vunpack.c.h.b16 %v2760
    %v3446 = vunpack.c.l.b16 %v2761
    %v3447 = vunpack.c.h.b16 %v2761
    %v3448 = vunpack.c.l.b16 %v2762
    %v3449 = vunpack.c.h.b16 %v2762
    %v3450 = vunpack.c.l.b16 %v2763
    %v3451 = vunpack.c.h.b16 %v2763
    %v3452 = vunpack.c.l.b16 %v2764
    %v3453 = vunpack.c.h.b16 %v2764
    %v3454 = vunpack.c.l.b16 %v2765
    %v3455 = vunpack.c.h.b16 %v2765
    %v3456 = vunpack.c.l.b16 %v2766
    %v3457 = vunpack.c.h.b16 %v2766
    %v3458 = vunpack.c.l.b16 %v2767
    %v3459 = vunpack.c.h.b16 %v2767
    %v3460 = vunpack.c.l.b16 %v2768
    %v3461 = vunpack.c.h.b16 %v2768
    %v3462 = vunpack.c.l.b16 %v2769
    %v3463 = vunpack.c.h.b16 %v2769
    %v3464 = vunpack.c.l.b16 %v2770
    %v3465 = vunpack.c.h.b16 %v2770
    %v3466 = vunpack.c.l.b16 %v2771
    %v3467 = vunpack.c.h.b16 %v2771
    %v3468 = vunpack.c.l.b16 %v2772
    %v3469 = vunpack.c.h.b16 %v2772
    %v3470 = vunpack.c.l.b16 %v2773
    %v3471 = vunpack.c.h.b16 %v2773
    %v3472 = vunpack.c.l.b16 %v2774
    %v3473 = vunpack.c.h.b16 %v2774
    %v3474 = vunpack.c.l.b16 %v2775
    %v3475 = vunpack.c.h.b16 %v2775
    %v3476 = vunpack.c.l.b16 %v2776
    %v3477 = vunpack.c.h.b16 %v2776
    %v3478 = vunpack.c.l.b16 %v2777
    %v3479 = vunpack.c.h.b16 %v2777
    %v3480 = vunpack.c.l.b16 %v2778
    %v3481 = vunpack.c.h.b16 %v2778
    %v3482 = vunpack.c.l.b16 %v2779
    %v3483 = vunpack.c.h.b16 %v2779
    %v3484 = vunpack.c.l.b16 %v2780
    %v3485 = vunpack.c.h.b16 %v2780
    %v3486 = vunpack.c.l.b16 %v2781
    %v3487 = vunpack.c.h.b16 %v2781
    %v3488 = vunpack.c.l.b16 %v2782
    %v3489 = vunpack.c.h.b16 %v2782
    %v3490 = vunpack.c.l.b16 %v2783
    %v3491 = vunpack.c.h.b16 %v2783
    %v3492 = vunpack.c.l.b16 %v2784
    %v3493 = vunpack.c.h.b16 %v2784
    %v3494 = vunpack.c.l.b16 %v2785
    %v3495 = vunpack.c.h.b16 %v2785
    %v3496 = vunpack.c.l.b16 %v2786
    %v3497 = vunpack.c.h.b16 %v2786
    %v3498 = vunpack.c.l.b16 %v2787
    %v3499 = vunpack.c.h.b16 %v2787
    %v3500 = vunpack.c.l.b16 %v2788
    %v3501 = vunpack.c.h.b16 %v2788
    %v3502 = vunpack.c.l.b16 %v2789
    %v3503 = vunpack.c.h.b16 %v2789
    %v3504 = vunpack.c.l.b16 %v2790
    %v3505 = vunpack.c.h.b16 %v2790
    %v3506 = vunpack.c.l.b16 %v2791
    %v3507 = vunpack.c.h.b16 %v2791
    %v3508 = vunpack.c.l.b16 %v2792
    %v3509 = vunpack.c.h.b16 %v2792
    %v3510 = vunpack.c.l.b16 %v2793
    %v3511 = vunpack.c.h.b16 %v2793
    %v3512 = vunpack.c.l.b16 %v2794
    %v3513 = vunpack.c.h.b16 %v2794
    %v3514 = vunpack.c.l.b16 %v2795
    %v3515 = vunpack.c.h.b16 %v2795
    %v3516 = vunpack.c.l.b16 %v2796
    %v3517 = vunpack.c.h.b16 %v2796
    %v3518 = vunpack.c.l.b16 %v2797
    %v3519 = vunpack.c.h.b16 %v2797
    %v3520 = vunpack.c.l.b16 %v2798
    %v3521 = vunpack.c.h.b16 %v2798
    %v3522 = vunpack.c.l.b16 %v2799
    %v3523 = vunpack.c.h.b16 %v2799
    %v3524 = vunpack.c.l.b16 %v2800
    %v3525 = vunpack.c.h.b16 %v2800
    %v3526 = vunpack.c.l.b16 %v2801
    %v3527 = vunpack.c.h.b16 %v2801
    %v3528 = vunpack.c.l.b16 %v2802
    %v3529 = vunpack.c.h.b16 %v2802
    %v3530 = vunpack.c.l.b16 %v2803
    %v3531 = vunpack.c.h.b16 %v2803
    %v3532 = vunpack.c.l.b16 %v2804
    %v3533 = vunpack.c.h.b16 %v2804
    %v3534 = vunpack.c.l.b16 %v2805
    %v3535 = vunpack.c.h.b16 %v2805
    %v3536 = vunpack.c.l.b16 %v2806
    %v3537 = vunpack.c.h.b16 %v2806
    %v3538 = vunpack.c.l.b16 %v2807
    %v3539 = vunpack.c.h.b16 %v2807
    %v3540 = vunpack.c.l.b16 %v2808
    %v3541 = vunpack.c.h.b16 %v2808
    %v3542 = vunpack.c.l.b16 %v2809
    %v3543 = vunpack.c.h.b16 %v2809
    %v3544 = vunpack.c.l.b16 %v2810
    %v3545 = vunpack.c.h.b16 %v2810
    %v3546 = vunpack.c.l.b16 %v2811
    %v3547 = vunpack.c.h.b16 %v2811
    %v3548 = vunpack.c.l.b16 %v2812
    %v3549 = vunpack.c.h.b16 %v2812
    %v3550 = vunpack.c.l.b16 %v2813
    %v3551 = vunpack.c.h.b16 %v2813
    %v3552 = vunpack.c.l.b16 %v2814
    %v3553 = vunpack.c.h.b16 %v2814
    %v3554 = vunpack.c.l.b16 %v2815
    %v3555 = vunpack.c.h.b16 %v2815
    %v3556 = vunpack.c.l.b16 %v2816
    %v3557 = vunpack.c.h.b16 %v2816
    %v3558 = vunpack.c.l.b16 %v2817
    %v3559 = vunpack.c.h.b16 %v2817
    %v3560 = vunpack.c.l.b16 %v2818
    %v3561 = vunpack.c.h.b16 %v2818
    %v3562 = vunpack.c.l.b16 %v2819
    %v3563 = vunpack.c.h.b16 %v2819
    %v3564 = vunpack.c.l.b16 %v2820
    %v3565 = vunpack.c.h.b16 %v2820
    %v3566 = vunpack.c.l.b16 %v2821
    %v3567 = vunpack.c.h.b16 %v2821
    %v3568 = vunpack.c.l.b16 %v2822
    %v3569 = vunpack.c.h.b16 %v2822
    %v3570 = vunpack.c.l.b16 %v2823
    %v3571 = vunpack.c.h.b16 %v2823
    %v3572 = vunpack.c.l.b16 %v2824
    %v3573 = vunpack.c.h.b16 %v2824
    %v3574 = vunpack.c.l.b16 %v2825
    %v3575 = vunpack.c.h.b16 %v2825
    %v3576 = vunpack.c.l.b16 %v2826
    %v3577 = vunpack.c.h.b16 %v2826
    %v3578 = vunpack.c.l.b16 %v2827
    %v3579 = vunpack.c.h.b16 %v2827
    %v3580 = vunpack.c.l.b16 %v2828
    %v3581 = vunpack.c.h.b16 %v2828
    %v3582 = vunpack.c.l.b16 %v2829
    %v3583 = vunpack.c.h.b16 %v2829
    %v3584 = vunpack.c.l.b16 %v2830
    %v3585 = vunpack.c.h.b16 %v2830
    %v3586 = vunpack.c.l.b16 %v2831
    %v3587 = vunpack.c.h.b16 %v2831
    %v3588 = vunpack.c.l.b16 %v2832
    %v3589 = vunpack.c.h.b16 %v2832
    %v3590 = vunpack.c.l.b16 %v2833
    %v3591 = vunpack.c.h.b16 %v2833
    %v3592 = vunpack.c.l.b16 %v2834
    %v3593 = vunpack.c.h.b16 %v2834
    %v3594 = vunpack.c.l.b16 %v2835
    %v3595 = vunpack.c.h.b16 %v2835
    %v3596 = vunpack.c.l.b16 %v2836
    %v3597 = vunpack.c.h.b16 %v2836
    %v3598 = vunpack.c.l.b16 %v2837
    %v3599 = vunpack.c.h.b16 %v2837
    %v3600 = vunpack.c.l.b16 %v2838
    %v3601 = vunpack.c.h.b16 %v2838
    %v3602 = vunpack.c.l.b16 %v2839
    %v3603 = vunpack.c.h.b16 %v2839
    %v3604 = vunpack.c.l.b16 %v2840
    %v3605 = vunpack.c.h.b16 %v2840
    %v3606 = vunpack.c.l.b16 %v2841
    %v3607 = vunpack.c.h.b16 %v2841
    %v3608 = vunpack.c.l.b16 %v2842
    %v3609 = vunpack.c.h.b16 %v2842
    %v3610 = vunpack.c.l.b16 %v2843
    %v3611 = vunpack.c.h.b16 %v2843
    %v3612 = vunpack.c.l.b16 %v2844
    %v3613 = vunpack.c.h.b16 %v2844
    %v3614 = vunpack.c.l.b16 %v2845
    %v3615 = vunpack.c.h.b16 %v2845
    %v3616 = vunpack.c.l.b16 %v2846
    %v3617 = vunpack.c.h.b16 %v2846
    %v3618 = vunpack.c.l.b16 %v2847
    %v3619 = vunpack.c.h.b16 %v2847
    %v3620 = vunpack.c.l.b16 %v2848
    %v3621 = vunpack.c.h.b16 %v2848
    %v3622 = vunpack.c.l.b16 %v2849
    %v3623 = vunpack.c.h.b16 %v2849
    %v3624 = vpack.c.b16 %v3114, %v3112
    %v3625 = vpack.c.b16 %v3115, %v3113
    %v3626 = vpack.c.b16 %v3118, %v3116
    %v3627 = vpack.c.b16 %v3119, %v3117
    %v3628 = vpack.c.b16 %v3122, %v3120
    %v3629 = vpack.c.b16 %v3123, %v3121
    %v3630 = vpack.c.b16 %v3126, %v3124
    %v3631 = vpack.c.b16 %v3127, %v3125
    %v3632 = vpack.c.b16 %v3130, %v3128
    %v3633 = vpack.c.b16 %v3131, %v3129
    %v3634 = vpack.c.b16 %v3134, %v3132
    %v3635 = vpack.c.b16 %v3135, %v3133
    %v3636 = vpack.c.b16 %v3138, %v3136
    %v3637 = vpack.c.b16 %v3139, %v3137
    %v3638 = vpack.c.b16 %v3142, %v3140
    %v3639 = vpack.c.b16 %v3143, %v3141
    %v3640 = vpack.c.b16 %v3146, %v3144
    %v3641 = vpack.c.b16 %v3147, %v3145
    %v3642 = vpack.c.b16 %v3150, %v3148
    %v3643 = vpack.c.b16 %v3151, %v3149
    %v3644 = vpack.c.b16 %v3154, %v3152
    %v3645 = vpack.c.b16 %v3155, %v3153
    %v3646 = vpack.c.b16 %v3158, %v3156
    %v3647 = vpack.c.b16 %v3159, %v3157
    %v3648 = vpack.c.b16 %v3162, %v3160
    %v3649 = vpack.c.b16 %v3163, %v3161
    %v3650 = vpack.c.b16 %v3166, %v3164
    %v3651 = vpack.c.b16 %v3167, %v3165
    %v3652 = vpack.c.b16 %v3170, %v3168
    %v3653 = vpack.c.b16 %v3171, %v3169
    %v3654 = vpack.c.b16 %v3174, %v3172
    %v3655 = vpack.c.b16 %v3175, %v3173
    %v3656 = vpack.c.b16 %v3178, %v3176
    %v3657 = vpack.c.b16 %v3179, %v3177
    %v3658 = vpack.c.b16 %v3182, %v3180
    %v3659 = vpack.c.b16 %v3183, %v3181
    %v3660 = vpack.c.b16 %v3186, %v3184
    %v3661 = vpack.c.b16 %v3187, %v3185
    %v3662 = vpack.c.b16 %v3190, %v3188
    %v3663 = vpack.c.b16 %v3191, %v3189
    %v3664 = vpack.c.b16 %v3194, %v3192
    %v3665 = vpack.c.b16 %v3195, %v3193
    %v3666 = vpack.c.b16 %v3198, %v3196
    %v3667 = vpack.c.b16 %v3199, %v3197
    %v3668 = vpack.c.b16 %v3202, %v3200
    %v3669 = vpack.c.b16 %v3203, %v3201
    %v3670 = vpack.c.b16 %v3206, %v3204
    %v3671 = vpack.c.b16 %v3207, %v3205
    %v3672 = vpack.c.b16 %v3210, %v3208
    %v3673 = vpack.c.b16 %v3211, %v3209
    %v3674 = vpack.c.b16 %v3214, %v3212
    %v3675 = vpack.c.b16 %v3215, %v3213
    %v3676 = vpack.c.b16 %v3218, %v3216
    %v3677 = vpack.c.b16 %v3219, %v3217
    %v3678 = vpack.c.b16 %v3222, %v3220
    %v3679 = vpack.c.b16 %v3223, %v3221
    %v3680 = vpack.c.b16 %v3226, %v3224
    %v3681 = vpack.c.b16 %v3227, %v3225
    %v3682 = vpack.c.b16 %v3230, %v3228
    %v3683 = vpack.c.b16 %v3231, %v3229
    %v3684 = vpack.c.b16 %v3234, %v3232
    %v3685 = vpack.c.b16 %v3235, %v3233
    %v3686 = vpack.c.b16 %v3238, %v3236
    %v3687 = vpack.c.b16 %v3239, %v3237
    %v3688 = vpack.c.b16 %v3242, %v3240
    %v3689 = vpack.c.b16 %v3243, %v3241
    %v3690 = vpack.c.b16 %v3246, %v3244
    %v3691 = vpack.c.b16 %v3247, %v3245
    %v3692 = vpack.c.b16 %v3250, %v3248
    %v3693 = vpack.c.b16 %v3251, %v3249
    %v3694 = vpack.c.b16 %v3254, %v3252
    %v3695 = vpack.c.b16 %v3255, %v3253
    %v3696 = vpack.c.b16 %v3258, %v3256
    %v3697 = vpack.c.b16 %v3259, %v3257
    %v3698 = vpack.c.b16 %v3262, %v3260
    %v3699 = vpack.c.b16 %v3263, %v3261
    %v3700 = vpack.c.b16 %v3266, %v3264
    %v3701 = vpack.c.b16 %v3267, %v3265
    %v3702 = vpack.c.b16 %v3270, %v3268
    %v3703 = vpack.c.b16 %v3271, %v3269
    %v3704 = vpack.c.b16 %v3274, %v3272
    %v3705 = vpack.c.b16 %v3275, %v3273
    %v3706 = vpack.c.b16 %v3278, %v3276
    %v3707 = vpack.c.b16 %v3279, %v3277
    %v3708 = vpack.c.b16 %v3282, %v3280
    %v3709 = vpack.c.b16 %v3283, %v3281
    %v3710 = vpack.c.b16 %v3286, %v3284
    %v3711 = vpack.c.b16 %v3287, %v3285
    %v3712 = vpack.c.b16 %v3290, %v3288
    %v3713 = vpack.c.b16 %v3291, %v3289
    %v3714 = vpack.c.b16 %v3294, %v3292
    %v3715 = vpack.c.b16 %v3295, %v3293
    %v3716 = vpack.c.b16 %v3298, %v3296
    %v3717 = vpack.c.b16 %v3299, %v3297
    %v3718 = vpack.c.b16 %v3302, %v3300
    %v3719 = vpack.c.b16 %v3303, %v3301
    %v3720 = vpack.c.b16 %v3306, %v3304
    %v3721 = vpack.c.b16 %v3307, %v3305
    %v3722 = vpack.c.b16 %v3310, %v3308
    %v3723 = vpack.c.b16 %v3311, %v3309
    %v3724 = vpack.c.b16 %v3314, %v3312
    %v3725 = vpack.c.b16 %v3315, %v3313
    %v3726 = vpack.c.b16 %v3318, %v3316
    %v3727 = vpack.c.b16 %v3319, %v3317
    %v3728 = vpack.c.b16 %v3322, %v3320
    %v3729 = vpack.c.b16 %v3323, %v3321
    %v3730 = vpack.c.b16 %v3326, %v3324
    %v3731 = vpack.c.b16 %v3327, %v3325
    %v3732 = vpack.c.b16 %v3330, %v3328
    %v3733 = vpack.c.b16 %v3331, %v3329
    %v3734 = vpack.c.b16 %v3334, %v3332
    %v3735 = vpack.c.b16 %v3335, %v3333
    %v3736 = vpack.c.b16 %v3338, %v3336
    %v3737 = vpack.c.b16 %v3339, %v3337
    %v3738 = vpack.c.b16 %v3342, %v3340
    %v3739 = vpack.c.b16 %v3343, %v3341
    %v3740 = vpack.c.b16 %v3346, %v3344
    %v3741 = vpack.c.b16 %v3347, %v3345
    %v3742 = vpack.c.b16 %v3350, %v3348
    %v3743 = vpack.c.b16 %v3351, %v3349
    %v3744 = vpack.c.b16 %v3354, %v3352
    %v3745 = vpack.c.b16 %v3355, %v3353
    %v3746 = vpack.c.b16 %v3358, %v3356
    %v3747 = vpack.c.b16 %v3359, %v3357
    %v3748 = vpack.c.b16 %v3362, %v3360
    %v3749 = vpack.c.b16 %v3363, %v3361
    %v3750 = vpack.c.b16 %v3366, %v3364
    %v3751 = vpack.c.b16 %v3367, %v3365
    %v3752 = vpack.c.b16 %v3370, %v3368
    %v3753 = vpack.c.b16 %v3371, %v3369
    %v3754 = vpack.c.b16 %v3374, %v3372
    %v3755 = vpack.c.b16 %v3375, %v3373
    %v3756 = vpack.c.b16 %v3378, %v3376
    %v3757 = vpack.c.b16 %v3379, %v3377
    %v3758 = vpack.c.b16 %v3382, %v3380
    %v3759 = vpack.c.b16 %v3383, %v3381
    %v3760 = vpack.c.b16 %v3386, %v3384
    %v3761 = vpack.c.b16 %v3387, %v3385
    %v3762 = vpack.c.b16 %v3390, %v3388
    %v3763 = vpack.c.b16 %v3391, %v3389
    %v3764 = vpack.c.b16 %v3394, %v3392
    %v3765 = vpack.c.b16 %v3395, %v3393
    %v3766 = vpack.c.b16 %v3398, %v3396
    %v3767 = vpack.c.b16 %v3399, %v3397
    %v3768 = vpack.c.b16 %v3402, %v3400
    %v3769 = vpack.c.b16 %v3403, %v3401
    %v3770 = vpack.c.b16 %v3406, %v3404
    %v3771 = vpack.c.b16 %v3407, %v3405
    %v3772 = vpack.c.b16 %v3410, %v3408
    %v3773 = vpack.c.b16 %v3411, %v3409
    %v3774 = vpack.c.b16 %v3414, %v3412
    %v3775 = vpack.c.b16 %v3415, %v3413
    %v3776 = vpack.c.b16 %v3418, %v3416
    %v3777 = vpack.c.b16 %v3419, %v3417
    %v3778 = vpack.c.b16 %v3422, %v3420
    %v3779 = vpack.c.b16 %v3423, %v3421
    %v3780 = vpack.c.b16 %v3426, %v3424
    %v3781 = vpack.c.b16 %v3427, %v3425
    %v3782 = vpack.c.b16 %v3430, %v3428
    %v3783 = vpack.c.b16 %v3431, %v3429
    %v3784 = vpack.c.b16 %v3434, %v3432
    %v3785 = vpack.c.b16 %v3435, %v3433
    %v3786 = vpack.c.b16 %v3438, %v3436
    %v3787 = vpack.c.b16 %v3439, %v3437
    %v3788 = vpack.c.b16 %v3442, %v3440
    %v3789 = vpack.c.b16 %v3443, %v3441
    %v3790 = vpack.c.b16 %v3446, %v3444
    %v3791 = vpack.c.b16 %v3447, %v3445
    %v3792 = vpack.c.b16 %v3450, %v3448
    %v3793 = vpack.c.b16 %v3451, %v3449
    %v3794 = vpack.c.b16 %v3454, %v3452
    %v3795 = vpack.c.b16 %v3455, %v3453
    %v3796 = vpack.c.b16 %v3458, %v3456
    %v3797 = vpack.c.b16 %v3459, %v3457
    %v3798 = vpack.c.b16 %v3462, %v3460
    %v3799 = vpack.c.b16 %v3463, %v3461
    %v3800 = vpack.c.b16 %v3466, %v3464
    %v3801 = vpack.c.b16 %v3467, %v3465
    %v3802 = vpack.c.b16 %v3470, %v3468
    %v3803 = vpack.c.b16 %v3471, %v3469
    %v3804 = vpack.c.b16 %v3474, %v3472
    %v3805 = vpack.c.b16 %v3475, %v3473
    %v3806 = vpack.c.b16 %v3478, %v3476
    %v3807 = vpack.c.b16 %v3479, %v3477
    %v3808 = vpack.c.b16 %v3482, %v3480
    %v3809 = vpack.c.b16 %v3483, %v3481
    %v3810 = vpack.c.b16 %v3486, %v3484
    %v3811 = vpack.c.b16 %v3487, %v3485
    %v3812 = vpack.c.b16 %v3490, %v3488
    %v3813 = vpack.c.b16 %v3491, %v3489
    %v3814 = vpack.c.b16 %v3494, %v3492
    %v3815 = vpack.c.b16 %v3495, %v3493
    %v3816 = vpack.c.b16 %v3498, %v3496
    %v3817 = vpack.c.b16 %v3499, %v3497
    %v3818 = vpack.c.b16 %v3502, %v3500
    %v3819 = vpack.c.b16 %v3503, %v3501
    %v3820 = vpack.c.b16 %v3506, %v3504
    %v3821 = vpack.c.b16 %v3507, %v3505
    %v3822 = vpack.c.b16 %v3510, %v3508
    %v3823 = vpack.c.b16 %v3511, %v3509
    %v3824 = vpack.c.b16 %v3514, %v3512
    %v3825 = vpack.c.b16 %v3515, %v3513
    %v3826 = vpack.c.b16 %v3518, %v3516
    %v3827 = vpack.c.b16 %v3519, %v3517
    %v3828 = vpack.c.b16 %v3522, %v3520
    %v3829 = vpack.c.b16 %v3523, %v3521
    %v3830 = vpack.c.b16 %v3526, %v3524
    %v3831 = vpack.c.b16 %v3527, %v3525
    %v3832 = vpack.c.b16 %v3530, %v3528
    %v3833 = vpack.c.b16 %v3531, %v3529
    %v3834 = vpack.c.b16 %v3534, %v3532
    %v3835 = vpack.c.b16 %v3535, %v3533
    %v3836 = vpack.c.b16 %v3538, %v3536
    %v3837 = vpack.c.b16 %v3539, %v3537
    %v3838 = vpack.c.b16 %v3542, %v3540
    %v3839 = vpack.c.b16 %v3543, %v3541
    %v3840 = vpack.c.b16 %v3546, %v3544
    %v3841 = vpack.c.b16 %v3547, %v3545
    %v3842 = vpack.c.b16 %v3550, %v3548
    %v3843 = vpack.c.b16 %v3551, %v3549
    %v3844 = vpack.c.b16 %v3554, %v3552
    %v3845 = vpack.c.b16 %v3555, %v3553
    %v3846 = vpack.c.b16 %v3558, %v3556
    %v3847 = vpack.c.b16 %v3559, %v3557
    %v3848 = vpack.c.b16 %v3562, %v3560
    %v3849 = vpack.c.b16 %v3563, %v3561
    %v3850 = vpack.c.b16 %v3566, %v3564
    %v3851 = vpack.c.b16 %v3567, %v3565
    %v3852 = vpack.c.b16 %v3570, %v3568
    %v3853 = vpack.c.b16 %v3571, %v3569
    %v3854 = vpack.c.b16 %v3574, %v3572
    %v3855 = vpack.c.b16 %v3575, %v3573
    %v3856 = vpack.c.b16 %v3578, %v3576
    %v3857 = vpack.c.b16 %v3579, %v3577
    %v3858 = vpack.c.b16 %v3582, %v3580
    %v3859 = vpack.c.b16 %v3583, %v3581
    %v3860 = vpack.c.b16 %v3586, %v3584
    %v3861 = vpack.c.b16 %v3587, %v3585
    %v3862 = vpack.c.b16 %v3590, %v3588
    %v3863 = vpack.c.b16 %v3591, %v3589
    %v3864 = vpack.c.b16 %v3594, %v3592
    %v3865 = vpack.c.b16 %v3595, %v3593
    %v3866 = vpack.c.b16 %v3598, %v3596
    %v3867 = vpack.c.b16 %v3599, %v3597
    %v3868 = vpack.c.b16 %v3602, %v3600
    %v3869 = vpack.c.b16 %v3603, %v3601
    %v3870 = vpack.c.b16 %v3606, %v3604
    %v3871 = vpack.c.b16 %v3607, %v3605
    %v3872 = vpack.c.b16 %v3610, %v3608
    %v3873 = vpack.c.b16 %v3611, %v3609
    %v3874 = vpack.c.b16 %v3614, %v3612
    %v3875 = vpack.c.b16 %v3615, %v3613
    %v3876 = vpack.c.b16 %v3618, %v3616
    %v3877 = vpack.c.b16 %v3619, %v3617
    %v3878 = vpack.c.b16 %v3622, %v3620
    %v3879 = vpack.c.b16 %v3623, %v3621
    %4136 = vmatpush.bf16.msra.mxu0 %v3638
    %4137 = vmatpush.bf16.msra.mxu0 %v3636
    %4138 = vmatpush.bf16.msra.mxu0 %v3634
    %4139 = vmatpush.bf16.msra.mxu0 %v3632
    %4140 = vmatpush.bf16.msra.mxu0 %v3630
    %4141 = vmatpush.bf16.msra.mxu0 %v3628
    %4142 = vmatpush.bf16.msra.mxu0 %v3626
    %4143 = vmatpush.bf16.msra.mxu0 %v3624
    %4144 = vmatmul.bf16.gmra.mxu0 %v2578
    %v4145 = vpop.f32.mrf.mxu0
    %v4146 = vadd.f32 %v2852, %v4145
    %v4147 = vpop.f32.mrf.mxu0
    %4148 = vdwg.mxu0
    %4149 = vmatpush.bf16.msra.mxu0 %v3654
    %4150 = vmatpush.bf16.msra.mxu0 %v3652
    %4151 = vmatpush.bf16.msra.mxu0 %v3650
    %4152 = vmatpush.bf16.msra.mxu0 %v3648
    %4153 = vmatpush.bf16.msra.mxu0 %v3646
    %4154 = vmatpush.bf16.msra.mxu0 %v3644
    %4155 = vmatpush.bf16.msra.mxu0 %v3642
    %4156 = vmatpush.bf16.msra.mxu0 %v3640
    %4157 = vmatmul.bf16.gmra.mxu0 %v2579
    %v4158 = vpop.f32.mrf.mxu0
    %v4159 = vadd.f32 %v4146, %v4158
    %v4160 = vpop.f32.mrf.mxu0
    %4161 = vdwg.mxu0
    %4162 = vmatpush.bf16.msra.mxu0 %v3670
    %4163 = vmatpush.bf16.msra.mxu0 %v3668
    %4164 = vmatpush.bf16.msra.mxu0 %v3666
    %4165 = vmatpush.bf16.msra.mxu0 %v3664
    %4166 = vmatpush.bf16.msra.mxu0 %v3662
    %4167 = vmatpush.bf16.msra.mxu0 %v3660
    %4168 = vmatpush.bf16.msra.mxu0 %v3658
    %4169 = vmatpush.bf16.msra.mxu0 %v3656
    %4170 = vmatmul.bf16.gmra.mxu0 %v2580
    %v4171 = vpop.f32.mrf.mxu0
    %v4172 = vadd.f32 %v4159, %v4171
    %v4173 = vpop.f32.mrf.mxu0
    %4174 = vdwg.mxu0
    %4175 = vmatpush.bf16.msra.mxu0 %v3686
    %4176 = vmatpush.bf16.msra.mxu0 %v3684
    %4177 = vmatpush.bf16.msra.mxu0 %v3682
    %4178 = vmatpush.bf16.msra.mxu0 %v3680
    %4179 = vmatpush.bf16.msra.mxu0 %v3678
    %4180 = vmatpush.bf16.msra.mxu0 %v3676
    %4181 = vmatpush.bf16.msra.mxu0 %v3674
    %4182 = vmatpush.bf16.msra.mxu0 %v3672
    %4183 = vmatmul.bf16.gmra.mxu0 %v2581
    %v4184 = vpop.f32.mrf.mxu0
    %v4185 = vadd.f32 %v4172, %v4184
    %v4186 = vpop.f32.mrf.mxu0
    %4187 = vdwg.mxu0
    %4188 = vmatpush.bf16.msra.mxu0 %v3702
    %4189 = vmatpush.bf16.msra.mxu0 %v3700
    %4190 = vmatpush.bf16.msra.mxu0 %v3698
    %4191 = vmatpush.bf16.msra.mxu0 %v3696
    %4192 = vmatpush.bf16.msra.mxu0 %v3694
    %4193 = vmatpush.bf16.msra.mxu0 %v3692
    %4194 = vmatpush.bf16.msra.mxu0 %v3690
    %4195 = vmatpush.bf16.msra.mxu0 %v3688
    %4196 = vmatmul.bf16.gmra.mxu0 %v2582
    %v4197 = vpop.f32.mrf.mxu0
    %v4198 = vadd.f32 %v4185, %v4197
    %v4199 = vpop.f32.mrf.mxu0
    %4200 = vdwg.mxu0
    %4201 = vmatpush.bf16.msra.mxu0 %v3718
    %4202 = vmatpush.bf16.msra.mxu0 %v3716
    %4203 = vmatpush.bf16.msra.mxu0 %v3714
    %4204 = vmatpush.bf16.msra.mxu0 %v3712
    %4205 = vmatpush.bf16.msra.mxu0 %v3710
    %4206 = vmatpush.bf16.msra.mxu0 %v3708
    %4207 = vmatpush.bf16.msra.mxu0 %v3706
    %4208 = vmatpush.bf16.msra.mxu0 %v3704
    %4209 = vmatmul.bf16.gmra.mxu0 %v2583
    %v4210 = vpop.f32.mrf.mxu0
    %v4211 = vadd.f32 %v4198, %v4210
    %v4212 = vpop.f32.mrf.mxu0
    %4213 = vdwg.mxu0
    %4214 = vmatpush.bf16.msra.mxu0 %v3734
    %4215 = vmatpush.bf16.msra.mxu0 %v3732
    %4216 = vmatpush.bf16.msra.mxu0 %v3730
    %4217 = vmatpush.bf16.msra.mxu0 %v3728
    %4218 = vmatpush.bf16.msra.mxu0 %v3726
    %4219 = vmatpush.bf16.msra.mxu0 %v3724
    %4220 = vmatpush.bf16.msra.mxu0 %v3722
    %4221 = vmatpush.bf16.msra.mxu0 %v3720
    %4222 = vmatmul.bf16.gmra.mxu0 %v2584
    %v4223 = vpop.f32.mrf.mxu0
    %v4224 = vadd.f32 %v4211, %v4223
    %v4225 = vpop.f32.mrf.mxu0
    %4226 = vdwg.mxu0
    %4227 = vmatpush.bf16.msra.mxu0 %v3750
    %4228 = vmatpush.bf16.msra.mxu0 %v3748
    %4229 = vmatpush.bf16.msra.mxu0 %v3746
    %4230 = vmatpush.bf16.msra.mxu0 %v3744
    %4231 = vmatpush.bf16.msra.mxu0 %v3742
    %4232 = vmatpush.bf16.msra.mxu0 %v3740
    %4233 = vmatpush.bf16.msra.mxu0 %v3738
    %4234 = vmatpush.bf16.msra.mxu0 %v3736
    %4235 = vmatmul.bf16.gmra.mxu0 %v2585
    %v4236 = vpop.f32.mrf.mxu0
    %v4237 = vadd.f32 %v4224, %v4236
    %v4238 = vpop.f32.mrf.mxu0
    %4239 = vdwg.mxu0
    %4240 = vmatpush.bf16.msra.mxu0 %v3766
    %4241 = vmatpush.bf16.msra.mxu0 %v3764
    %4242 = vmatpush.bf16.msra.mxu0 %v3762
    %4243 = vmatpush.bf16.msra.mxu0 %v3760
    %4244 = vmatpush.bf16.msra.mxu0 %v3758
    %4245 = vmatpush.bf16.msra.mxu0 %v3756
    %4246 = vmatpush.bf16.msra.mxu0 %v3754
    %4247 = vmatpush.bf16.msra.mxu0 %v3752
    %4248 = vmatmul.bf16.gmra.mxu0 %v2586
    %v4249 = vpop.f32.mrf.mxu0
    %v4250 = vadd.f32 %v4237, %v4249
    %v4251 = vpop.f32.mrf.mxu0
    %4252 = vdwg.mxu0
    %4253 = vmatpush.bf16.msra.mxu0 %v3782
    %4254 = vmatpush.bf16.msra.mxu0 %v3780
    %4255 = vmatpush.bf16.msra.mxu0 %v3778
    %4256 = vmatpush.bf16.msra.mxu0 %v3776
    %4257 = vmatpush.bf16.msra.mxu0 %v3774
    %4258 = vmatpush.bf16.msra.mxu0 %v3772
    %4259 = vmatpush.bf16.msra.mxu0 %v3770
    %4260 = vmatpush.bf16.msra.mxu0 %v3768
    %4261 = vmatmul.bf16.gmra.mxu0 %v2587
    %v4262 = vpop.f32.mrf.mxu0
    %v4263 = vadd.f32 %v4250, %v4262
    %v4264 = vpop.f32.mrf.mxu0
    %4265 = vdwg.mxu0
    %4266 = vmatpush.bf16.msra.mxu0 %v3798
    %4267 = vmatpush.bf16.msra.mxu0 %v3796
    %4268 = vmatpush.bf16.msra.mxu0 %v3794
    %4269 = vmatpush.bf16.msra.mxu0 %v3792
    %4270 = vmatpush.bf16.msra.mxu0 %v3790
    %4271 = vmatpush.bf16.msra.mxu0 %v3788
    %4272 = vmatpush.bf16.msra.mxu0 %v3786
    %4273 = vmatpush.bf16.msra.mxu0 %v3784
    %4274 = vmatmul.bf16.gmra.mxu0 %v2588
    %v4275 = vpop.f32.mrf.mxu0
    %v4276 = vadd.f32 %v4263, %v4275
    %v4277 = vpop.f32.mrf.mxu0
    %4278 = vdwg.mxu0
    %4279 = vmatpush.bf16.msra.mxu0 %v3814
    %4280 = vmatpush.bf16.msra.mxu0 %v3812
    %4281 = vmatpush.bf16.msra.mxu0 %v3810
    %4282 = vmatpush.bf16.msra.mxu0 %v3808
    %4283 = vmatpush.bf16.msra.mxu0 %v3806
    %4284 = vmatpush.bf16.msra.mxu0 %v3804
    %4285 = vmatpush.bf16.msra.mxu0 %v3802
    %4286 = vmatpush.bf16.msra.mxu0 %v3800
    %4287 = vmatmul.bf16.gmra.mxu0 %v2589
    %v4288 = vpop.f32.mrf.mxu0
    %v4289 = vadd.f32 %v4276, %v4288
    %v4290 = vpop.f32.mrf.mxu0
    %4291 = vdwg.mxu0
    %4292 = vmatpush.bf16.msra.mxu0 %v3830
    %4293 = vmatpush.bf16.msra.mxu0 %v3828
    %4294 = vmatpush.bf16.msra.mxu0 %v3826
    %4295 = vmatpush.bf16.msra.mxu0 %v3824
    %4296 = vmatpush.bf16.msra.mxu0 %v3822
    %4297 = vmatpush.bf16.msra.mxu0 %v3820
    %4298 = vmatpush.bf16.msra.mxu0 %v3818
    %4299 = vmatpush.bf16.msra.mxu0 %v3816
    %4300 = vmatmul.bf16.gmra.mxu0 %v2590
    %v4301 = vpop.f32.mrf.mxu0
    %v4302 = vadd.f32 %v4289, %v4301
    %v4303 = vpop.f32.mrf.mxu0
    %4304 = vdwg.mxu0
    %4305 = vmatpush.bf16.msra.mxu0 %v3846
    %4306 = vmatpush.bf16.msra.mxu0 %v3844
    %4307 = vmatpush.bf16.msra.mxu0 %v3842
    %4308 = vmatpush.bf16.msra.mxu0 %v3840
    %4309 = vmatpush.bf16.msra.mxu0 %v3838
    %4310 = vmatpush.bf16.msra.mxu0 %v3836
    %4311 = vmatpush.bf16.msra.mxu0 %v3834
    %4312 = vmatpush.bf16.msra.mxu0 %v3832
    %4313 = vmatmul.bf16.gmra.mxu0 %v2591
    %v4314 = vpop.f32.mrf.mxu0
    %v4315 = vadd.f32 %v4302, %v4314
    %v4316 = vpop.f32.mrf.mxu0
    %4317 = vdwg.mxu0
    %4318 = vmatpush.bf16.msra.mxu0 %v3862
    %4319 = vmatpush.bf16.msra.mxu0 %v3860
    %4320 = vmatpush.bf16.msra.mxu0 %v3858
    %4321 = vmatpush.bf16.msra.mxu0 %v3856
    %4322 = vmatpush.bf16.msra.mxu0 %v3854
    %4323 = vmatpush.bf16.msra.mxu0 %v3852
    %4324 = vmatpush.bf16.msra.mxu0 %v3850
    %4325 = vmatpush.bf16.msra.mxu0 %v3848
    %4326 = vmatmul.bf16.gmra.mxu0 %v2592
    %v4327 = vpop.f32.mrf.mxu0
    %v4328 = vadd.f32 %v4315, %v4327
    %v4329 = vpop.f32.mrf.mxu0
    %4330 = vdwg.mxu0
    %4331 = vmatpush.bf16.msra.mxu0 %v3878
    %4332 = vmatpush.bf16.msra.mxu0 %v3876
    %4333 = vmatpush.bf16.msra.mxu0 %v3874
    %4334 = vmatpush.bf16.msra.mxu0 %v3872
    %4335 = vmatpush.bf16.msra.mxu0 %v3870
    %4336 = vmatpush.bf16.msra.mxu0 %v3868
    %4337 = vmatpush.bf16.msra.mxu0 %v3866
    %4338 = vmatpush.bf16.msra.mxu0 %v3864
    %4339 = vmatmul.bf16.gmra.mxu0 %v2593
    %v4340 = vpop.f32.mrf.mxu0
    %v4341 = vadd.f32 %v4328, %v4340
    %v4342 = vpop.f32.mrf.mxu0
    %4343 = vdwg.mxu0
    %4344 = vmatpush.bf16.msra.mxu0 %v3639
    %4345 = vmatpush.bf16.msra.mxu0 %v3637
    %4346 = vmatpush.bf16.msra.mxu0 %v3635
    %4347 = vmatpush.bf16.msra.mxu0 %v3633
    %4348 = vmatpush.bf16.msra.mxu0 %v3631
    %4349 = vmatpush.bf16.msra.mxu0 %v3629
    %4350 = vmatpush.bf16.msra.mxu0 %v3627
    %4351 = vmatpush.bf16.msra.mxu0 %v3625
    %4352 = vmatmul.bf16.gmra.mxu0 %v2578
    %v4353 = vpop.f32.mrf.mxu0
    %v4354 = vadd.f32 %v2853, %v4353
    %v4355 = vpop.f32.mrf.mxu0
    %4356 = vdwg.mxu0
    %4357 = vmatpush.bf16.msra.mxu0 %v3655
    %4358 = vmatpush.bf16.msra.mxu0 %v3653
    %4359 = vmatpush.bf16.msra.mxu0 %v3651
    %4360 = vmatpush.bf16.msra.mxu0 %v3649
    %4361 = vmatpush.bf16.msra.mxu0 %v3647
    %4362 = vmatpush.bf16.msra.mxu0 %v3645
    %4363 = vmatpush.bf16.msra.mxu0 %v3643
    %4364 = vmatpush.bf16.msra.mxu0 %v3641
    %4365 = vmatmul.bf16.gmra.mxu0 %v2579
    %v4366 = vpop.f32.mrf.mxu0
    %v4367 = vadd.f32 %v4354, %v4366
    %v4368 = vpop.f32.mrf.mxu0
    %4369 = vdwg.mxu0
    %4370 = vmatpush.bf16.msra.mxu0 %v3671
    %4371 = vmatpush.bf16.msra.mxu0 %v3669
    %4372 = vmatpush.bf16.msra.mxu0 %v3667
    %4373 = vmatpush.bf16.msra.mxu0 %v3665
    %4374 = vmatpush.bf16.msra.mxu0 %v3663
    %4375 = vmatpush.bf16.msra.mxu0 %v3661
    %4376 = vmatpush.bf16.msra.mxu0 %v3659
    %4377 = vmatpush.bf16.msra.mxu0 %v3657
    %4378 = vmatmul.bf16.gmra.mxu0 %v2580
    %v4379 = vpop.f32.mrf.mxu0
    %v4380 = vadd.f32 %v4367, %v4379
    %v4381 = vpop.f32.mrf.mxu0
    %4382 = vdwg.mxu0
    %4383 = vmatpush.bf16.msra.mxu0 %v3687
    %4384 = vmatpush.bf16.msra.mxu0 %v3685
    %4385 = vmatpush.bf16.msra.mxu0 %v3683
    %4386 = vmatpush.bf16.msra.mxu0 %v3681
    %4387 = vmatpush.bf16.msra.mxu0 %v3679
    %4388 = vmatpush.bf16.msra.mxu0 %v3677
    %4389 = vmatpush.bf16.msra.mxu0 %v3675
    %4390 = vmatpush.bf16.msra.mxu0 %v3673
    %4391 = vmatmul.bf16.gmra.mxu0 %v2581
    %v4392 = vpop.f32.mrf.mxu0
    %v4393 = vadd.f32 %v4380, %v4392
    %v4394 = vpop.f32.mrf.mxu0
    %4395 = vdwg.mxu0
    %4396 = vmatpush.bf16.msra.mxu0 %v3703
    %4397 = vmatpush.bf16.msra.mxu0 %v3701
    %4398 = vmatpush.bf16.msra.mxu0 %v3699
    %4399 = vmatpush.bf16.msra.mxu0 %v3697
    %4400 = vmatpush.bf16.msra.mxu0 %v3695
    %4401 = vmatpush.bf16.msra.mxu0 %v3693
    %4402 = vmatpush.bf16.msra.mxu0 %v3691
    %4403 = vmatpush.bf16.msra.mxu0 %v3689
    %4404 = vmatmul.bf16.gmra.mxu0 %v2582
    %v4405 = vpop.f32.mrf.mxu0
    %v4406 = vadd.f32 %v4393, %v4405
    %v4407 = vpop.f32.mrf.mxu0
    %4408 = vdwg.mxu0
    %4409 = vmatpush.bf16.msra.mxu0 %v3719
    %4410 = vmatpush.bf16.msra.mxu0 %v3717
    %4411 = vmatpush.bf16.msra.mxu0 %v3715
    %4412 = vmatpush.bf16.msra.mxu0 %v3713
    %4413 = vmatpush.bf16.msra.mxu0 %v3711
    %4414 = vmatpush.bf16.msra.mxu0 %v3709
    %4415 = vmatpush.bf16.msra.mxu0 %v3707
    %4416 = vmatpush.bf16.msra.mxu0 %v3705
    %4417 = vmatmul.bf16.gmra.mxu0 %v2583
    %v4418 = vpop.f32.mrf.mxu0
    %v4419 = vadd.f32 %v4406, %v4418
    %v4420 = vpop.f32.mrf.mxu0
    %4421 = vdwg.mxu0
    %4422 = vmatpush.bf16.msra.mxu0 %v3735
    %4423 = vmatpush.bf16.msra.mxu0 %v3733
    %4424 = vmatpush.bf16.msra.mxu0 %v3731
    %4425 = vmatpush.bf16.msra.mxu0 %v3729
    %4426 = vmatpush.bf16.msra.mxu0 %v3727
    %4427 = vmatpush.bf16.msra.mxu0 %v3725
    %4428 = vmatpush.bf16.msra.mxu0 %v3723
    %4429 = vmatpush.bf16.msra.mxu0 %v3721
    %4430 = vmatmul.bf16.gmra.mxu0 %v2584
    %v4431 = vpop.f32.mrf.mxu0
    %v4432 = vadd.f32 %v4419, %v4431
    %v4433 = vpop.f32.mrf.mxu0
    %4434 = vdwg.mxu0
    %4435 = vmatpush.bf16.msra.mxu0 %v3751
    %4436 = vmatpush.bf16.msra.mxu0 %v3749
    %4437 = vmatpush.bf16.msra.mxu0 %v3747
    %4438 = vmatpush.bf16.msra.mxu0 %v3745
    %4439 = vmatpush.bf16.msra.mxu0 %v3743
    %4440 = vmatpush.bf16.msra.mxu0 %v3741
    %4441 = vmatpush.bf16.msra.mxu0 %v3739
    %4442 = vmatpush.bf16.msra.mxu0 %v3737
    %4443 = vmatmul.bf16.gmra.mxu0 %v2585
    %v4444 = vpop.f32.mrf.mxu0
    %v4445 = vadd.f32 %v4432, %v4444
    %v4446 = vpop.f32.mrf.mxu0
    %4447 = vdwg.mxu0
    %4448 = vmatpush.bf16.msra.mxu0 %v3767
    %4449 = vmatpush.bf16.msra.mxu0 %v3765
    %4450 = vmatpush.bf16.msra.mxu0 %v3763
    %4451 = vmatpush.bf16.msra.mxu0 %v3761
    %4452 = vmatpush.bf16.msra.mxu0 %v3759
    %4453 = vmatpush.bf16.msra.mxu0 %v3757
    %4454 = vmatpush.bf16.msra.mxu0 %v3755
    %4455 = vmatpush.bf16.msra.mxu0 %v3753
    %4456 = vmatmul.bf16.gmra.mxu0 %v2586
    %v4457 = vpop.f32.mrf.mxu0
    %v4458 = vadd.f32 %v4445, %v4457
    %v4459 = vpop.f32.mrf.mxu0
    %4460 = vdwg.mxu0
    %4461 = vmatpush.bf16.msra.mxu0 %v3783
    %4462 = vmatpush.bf16.msra.mxu0 %v3781
    %4463 = vmatpush.bf16.msra.mxu0 %v3779
    %4464 = vmatpush.bf16.msra.mxu0 %v3777
    %4465 = vmatpush.bf16.msra.mxu0 %v3775
    %4466 = vmatpush.bf16.msra.mxu0 %v3773
    %4467 = vmatpush.bf16.msra.mxu0 %v3771
    %4468 = vmatpush.bf16.msra.mxu0 %v3769
    %4469 = vmatmul.bf16.gmra.mxu0 %v2587
    %v4470 = vpop.f32.mrf.mxu0
    %v4471 = vadd.f32 %v4458, %v4470
    %v4472 = vpop.f32.mrf.mxu0
    %4473 = vdwg.mxu0
    %4474 = vmatpush.bf16.msra.mxu0 %v3799
    %4475 = vmatpush.bf16.msra.mxu0 %v3797
    %4476 = vmatpush.bf16.msra.mxu0 %v3795
    %4477 = vmatpush.bf16.msra.mxu0 %v3793
    %4478 = vmatpush.bf16.msra.mxu0 %v3791
    %4479 = vmatpush.bf16.msra.mxu0 %v3789
    %4480 = vmatpush.bf16.msra.mxu0 %v3787
    %4481 = vmatpush.bf16.msra.mxu0 %v3785
    %4482 = vmatmul.bf16.gmra.mxu0 %v2588
    %v4483 = vpop.f32.mrf.mxu0
    %v4484 = vadd.f32 %v4471, %v4483
    %v4485 = vpop.f32.mrf.mxu0
    %4486 = vdwg.mxu0
    %4487 = vmatpush.bf16.msra.mxu0 %v3815
    %4488 = vmatpush.bf16.msra.mxu0 %v3813
    %4489 = vmatpush.bf16.msra.mxu0 %v3811
    %4490 = vmatpush.bf16.msra.mxu0 %v3809
    %4491 = vmatpush.bf16.msra.mxu0 %v3807
    %4492 = vmatpush.bf16.msra.mxu0 %v3805
    %4493 = vmatpush.bf16.msra.mxu0 %v3803
    %4494 = vmatpush.bf16.msra.mxu0 %v3801
    %4495 = vmatmul.bf16.gmra.mxu0 %v2589
    %v4496 = vpop.f32.mrf.mxu0
    %v4497 = vadd.f32 %v4484, %v4496
    %v4498 = vpop.f32.mrf.mxu0
    %4499 = vdwg.mxu0
    %4500 = vmatpush.bf16.msra.mxu0 %v3831
    %4501 = vmatpush.bf16.msra.mxu0 %v3829
    %4502 = vmatpush.bf16.msra.mxu0 %v3827
    %4503 = vmatpush.bf16.msra.mxu0 %v3825
    %4504 = vmatpush.bf16.msra.mxu0 %v3823
    %4505 = vmatpush.bf16.msra.mxu0 %v3821
    %4506 = vmatpush.bf16.msra.mxu0 %v3819
    %4507 = vmatpush.bf16.msra.mxu0 %v3817
    %4508 = vmatmul.bf16.gmra.mxu0 %v2590
    %v4509 = vpop.f32.mrf.mxu0
    %v4510 = vadd.f32 %v4497, %v4509
    %v4511 = vpop.f32.mrf.mxu0
    %4512 = vdwg.mxu0
    %4513 = vmatpush.bf16.msra.mxu0 %v3847
    %4514 = vmatpush.bf16.msra.mxu0 %v3845
    %4515 = vmatpush.bf16.msra.mxu0 %v3843
    %4516 = vmatpush.bf16.msra.mxu0 %v3841
    %4517 = vmatpush.bf16.msra.mxu0 %v3839
    %4518 = vmatpush.bf16.msra.mxu0 %v3837
    %4519 = vmatpush.bf16.msra.mxu0 %v3835
    %4520 = vmatpush.bf16.msra.mxu0 %v3833
    %4521 = vmatmul.bf16.gmra.mxu0 %v2591
    %v4522 = vpop.f32.mrf.mxu0
    %v4523 = vadd.f32 %v4510, %v4522
    %v4524 = vpop.f32.mrf.mxu0
    %4525 = vdwg.mxu0
    %4526 = vmatpush.bf16.msra.mxu0 %v3863
    %4527 = vmatpush.bf16.msra.mxu0 %v3861
    %4528 = vmatpush.bf16.msra.mxu0 %v3859
    %4529 = vmatpush.bf16.msra.mxu0 %v3857
    %4530 = vmatpush.bf16.msra.mxu0 %v3855
    %4531 = vmatpush.bf16.msra.mxu0 %v3853
    %4532 = vmatpush.bf16.msra.mxu0 %v3851
    %4533 = vmatpush.bf16.msra.mxu0 %v3849
    %4534 = vmatmul.bf16.gmra.mxu0 %v2592
    %v4535 = vpop.f32.mrf.mxu0
    %v4536 = vadd.f32 %v4523, %v4535
    %v4537 = vpop.f32.mrf.mxu0
    %4538 = vdwg.mxu0
    %4539 = vmatpush.bf16.msra.mxu0 %v3879
    %4540 = vmatpush.bf16.msra.mxu0 %v3877
    %4541 = vmatpush.bf16.msra.mxu0 %v3875
    %4542 = vmatpush.bf16.msra.mxu0 %v3873
    %4543 = vmatpush.bf16.msra.mxu0 %v3871
    %4544 = vmatpush.bf16.msra.mxu0 %v3869
    %4545 = vmatpush.bf16.msra.mxu0 %v3867
    %4546 = vmatpush.bf16.msra.mxu0 %v3865
    %4547 = vmatmul.bf16.gmra.mxu0 %v2593
    %v4548 = vpop.f32.mrf.mxu0
    %v4549 = vadd.f32 %v4536, %v4548
    %v4550 = vpop.f32.mrf.mxu0
    %4551 = vdwg.mxu0
    %v4552 = vmax.f32 %v4341, 0.0
    %v4553 = vmax.f32 %v4549, 0.0
    %v4554 = vpack.c.bf16 %v4552, %v4552
    %v4555 = vpack.c.bf16 %v4553, %v4553
    %v4556 = vld [vmem:[%s7] sm:$0xf]
    %v4557 = vld [vmem:[%s7 + $0x4] sm:$0xf]
    %v4558 = vld [vmem:[%s7 + $0x8] sm:$0xf]
    %v4559 = vld [vmem:[%s7 + $0xc] sm:$0xf]
    %v4560 = vld [vmem:[%s7 + $0x10] sm:$0xf]
    %v4561 = vld [vmem:[%s7 + $0x14] sm:$0xf]
    %v4562 = vld [vmem:[%s7 + $0x18] sm:$0xf]
    %v4563 = vld [vmem:[%s7 + $0x1c] sm:$0xf]
    %v4564 = vld [vmem:[%s7 + $0x20] sm:$0xf]
    %v4565 = vld [vmem:[%s7 + $0x24] sm:$0xf]
    %v4566 = vld [vmem:[%s7 + $0x28] sm:$0xf]
    %v4567 = vld [vmem:[%s7 + $0x2c] sm:$0xf]
    %v4568 = vld [vmem:[%s7 + $0x30] sm:$0xf]
    %v4569 = vld [vmem:[%s7 + $0x34] sm:$0xf]
    %v4570 = vld [vmem:[%s7 + $0x38] sm:$0xf]
    %v4571 = vld [vmem:[%s7 + $0x3c] sm:$0xf]
    %v4572 = vld [vmem:[%s7 + $0x40] sm:$0xf]
    %v4573 = vld [vmem:[%s7 + $0x44] sm:$0xf]
    %v4574 = vld [vmem:[%s7 + $0x48] sm:$0xf]
    %v4575 = vld [vmem:[%s7 + $0x4c] sm:$0xf]
    %v4576 = vld [vmem:[%s7 + $0x50] sm:$0xf]
    %v4577 = vld [vmem:[%s7 + $0x54] sm:$0xf]
    %v4578 = vld [vmem:[%s7 + $0x58] sm:$0xf]
    %v4579 = vld [vmem:[%s7 + $0x5c] sm:$0xf]
    %v4580 = vld [vmem:[%s7 + $0x60] sm:$0xf]
    %v4581 = vld [vmem:[%s7 + $0x64] sm:$0xf]
    %v4582 = vld [vmem:[%s7 + $0x68] sm:$0xf]
    %v4583 = vld [vmem:[%s7 + $0x6c] sm:$0xf]
    %v4584 = vld [vmem:[%s7 + $0x70] sm:$0xf]
    %v4585 = vld [vmem:[%s7 + $0x74] sm:$0xf]
    %v4586 = vld [vmem:[%s7 + $0x78] sm:$0xf]
    %v4587 = vld [vmem:[%s7 + $0x7c] sm:$0xf]
    %v4588 = vld [vmem:[%s8] sm:$0x1]
    %v4590 = vperm.slane %v4588, 0
    %v4624 = vunpack.c.l.b16 %v4556
    %v4625 = vunpack.c.l.b16 %v4557
    %v4626 = vunpack.c.l.b16 %v4558
    %v4627 = vunpack.c.l.b16 %v4559
    %v4628 = vunpack.c.l.b16 %v4560
    %v4629 = vunpack.c.l.b16 %v4561
    %v4630 = vunpack.c.l.b16 %v4562
    %v4631 = vunpack.c.l.b16 %v4563
    %v4632 = vunpack.c.l.b16 %v4564
    %v4633 = vunpack.c.l.b16 %v4565
    %v4634 = vunpack.c.l.b16 %v4566
    %v4635 = vunpack.c.l.b16 %v4567
    %v4636 = vunpack.c.l.b16 %v4568
    %v4637 = vunpack.c.l.b16 %v4569
    %v4638 = vunpack.c.l.b16 %v4570
    %v4639 = vunpack.c.l.b16 %v4571
    %v4640 = vunpack.c.l.b16 %v4572
    %v4641 = vunpack.c.l.b16 %v4573
    %v4642 = vunpack.c.l.b16 %v4574
    %v4643 = vunpack.c.l.b16 %v4575
    %v4644 = vunpack.c.l.b16 %v4576
    %v4645 = vunpack.c.l.b16 %v4577
    %v4646 = vunpack.c.l.b16 %v4578
    %v4647 = vunpack.c.l.b16 %v4579
    %v4648 = vunpack.c.l.b16 %v4580
    %v4649 = vunpack.c.l.b16 %v4581
    %v4650 = vunpack.c.l.b16 %v4582
    %v4651 = vunpack.c.l.b16 %v4583
    %v4652 = vunpack.c.l.b16 %v4584
    %v4653 = vunpack.c.l.b16 %v4585
    %v4654 = vunpack.c.l.b16 %v4586
    %v4655 = vunpack.c.l.b16 %v4587
    %v4656 = vpack.c.b16 %v4625, %v4624
    %v4657 = vpack.c.b16 %v4627, %v4626
    %v4658 = vpack.c.b16 %v4629, %v4628
    %v4659 = vpack.c.b16 %v4631, %v4630
    %v4660 = vpack.c.b16 %v4633, %v4632
    %v4661 = vpack.c.b16 %v4635, %v4634
    %v4662 = vpack.c.b16 %v4637, %v4636
    %v4663 = vpack.c.b16 %v4639, %v4638
    %v4664 = vpack.c.b16 %v4641, %v4640
    %v4665 = vpack.c.b16 %v4643, %v4642
    %v4666 = vpack.c.b16 %v4645, %v4644
    %v4667 = vpack.c.b16 %v4647, %v4646
    %v4668 = vpack.c.b16 %v4649, %v4648
    %v4669 = vpack.c.b16 %v4651, %v4650
    %v4670 = vpack.c.b16 %v4653, %v4652
    %v4671 = vpack.c.b16 %v4655, %v4654
    %4688 = vmatpush.bf16.msra.mxu0 %v4663
    %4689 = vmatpush.bf16.msra.mxu0 %v4662
    %4690 = vmatpush.bf16.msra.mxu0 %v4661
    %4691 = vmatpush.bf16.msra.mxu0 %v4660
    %4692 = vmatpush.bf16.msra.mxu0 %v4659
    %4693 = vmatpush.bf16.msra.mxu0 %v4658
    %4694 = vmatpush.bf16.msra.mxu0 %v4657
    %4695 = vmatpush.bf16.msra.mxu0 %v4656
    %4696 = vmatmul.bf16.gmra.mxu0 %v4554
    %v4697 = vpop.f32.mrf.mxu0
    %v4698 = vadd.f32 %v4590, %v4697
    %v4699 = vpop.f32.mrf.mxu0
    %4700 = vdwg.mxu0
    %4701 = vmatpush.bf16.msra.mxu0 %v4671
    %4702 = vmatpush.bf16.msra.mxu0 %v4670
    %4703 = vmatpush.bf16.msra.mxu0 %v4669
    %4704 = vmatpush.bf16.msra.mxu0 %v4668
    %4705 = vmatpush.bf16.msra.mxu0 %v4667
    %4706 = vmatpush.bf16.msra.mxu0 %v4666
    %4707 = vmatpush.bf16.msra.mxu0 %v4665
    %4708 = vmatpush.bf16.msra.mxu0 %v4664
    %4709 = vmatmul.bf16.gmra.mxu0 %v4555
    %v4710 = vpop.f32.mrf.mxu0
    %v4711 = vadd.f32 %v4698, %v4710
    %v4712 = vpop.f32.mrf.mxu0
    %4713 = vdwg.mxu0
    %v4714 = vmax.f32 %v4711, 0.0
    %vm4715 = vcmask 74752
    %v4716 = vsel %vm4715, %v4714, -inf
    %4717 = vmax.xlane.f32.xlu0 %v4716
    %v4718 = vpop.xlane.xlu0 %4717
    %v4719 = vsub.f32 %v4714, %v4718
    %v4720 = vmul.f32 %v4719, 1.442695
    %v4721 = vpow.pop %v4720
    %v4722 = vsel %vm4715, %v4721, 0.0
    %4723 = vadd.xlane.f32.xlu0 %v4722
    %v4724 = vpop.xlane.xlu0 %4723
    %v4725 = vlog2.pop %v4724
    %v4726 = vmul.f32 %v4725, 0.6931472
    %v4727 = vsub.f32 %v4719, %v4726
    %4728 = vst.msk [vmem:[#allocation10] sm:$0x3] %vm4715, %v4727
    // Predicated region
    $region46: #{lenet_supernet_forward.1} parent=1 // pred_check
      _
    $region47: #{lenet_supernet_forward.1} parent=1 // pred_check_branch
      %4730 = sbr.rel (0) target = $region49
    $region48: #{lenet_supernet_forward.1} parent=1 // pred_region
      %4732 = vsyncadd [#allocation7], 0
      %s4734 = sshll.u32 [#allocation10], 4
      %s4735 = int_to_ptr.vmem [resolvable:$true] %s4734
      %s4736 = sshll.u32 %s9, 4
      %s4737 = int_to_ptr.hbm [resolvable:$true] %s4736
      %4739 = dma.vmem_to_hbm [thread:$0]  %s4735, 32, %s4737, [#allocation7]
    $region49: #{lenet_supernet_forward.1} parent=1 // pred_fallthru
      _
    // Predicated region
    $region50: #{lenet_supernet_forward.1} parent=1 // pred_check
      _
    $region51: #{lenet_supernet_forward.1} parent=1 // pred_check_branch
      %4741 = sbr.rel (0) target = $region53
    $region52: #{lenet_supernet_forward.1} parent=1 // pred_region
      %4743 = dma.done [#allocation7], 32
    $region53: #{lenet_supernet_forward.1} parent=1 // pred_fallthru
      _
    %4744 = vsyncpa [#allocation6], 1
    %4745 = vsyncpa [#allocation9], 1
    %4746 = vsyncpa [#allocation7], 1

</llo_original>
